<compile_context>
chip_gen: v5e
topology: v5e:2x2
jax: 0.10.0
libtpu: 0.0.40
codegen_flags: <defaults>
</compile_context>

<pallas_src>
import functools
import math

import jax
import jax.numpy as jnp
import numpy as np
from jax.experimental import pallas as pl
from jax.experimental.pallas import tpu as pltpu

# ---- hyperparameters from the PyTorch module ----
EVENT_TYPE_EMB = 32
QUESTION_EMB = 31
D_MODEL = EVENT_TYPE_EMB + QUESTION_EMB + 1   # input_size = 64
HIDDEN_DIM = 200                              # dim_feedforward
HIDDEN_PAD = 256                              # padded FFN width (lane-dense)
NUM_HEADS = 1
NUM_LAYERS = 2
NUM_LABELS = 1
LN_EPS = 1e-5
MASK_NEG = -1e30
TARGET_ROWS = 512                             # flattened M per grid step
FLAT_ATTN_MAX_T = 64                          # flattened attention when t_pad <= this


def _round_up(x, m):
    return ((x + m - 1) // m) * m


def _layer_norm(x, gamma, beta):
    mu = jnp.mean(x, axis=-1, keepdims=True)
    var = jnp.mean(jnp.square(x - mu), axis=-1, keepdims=True)
    return (x - mu) * jax.lax.rsqrt(var + LN_EPS) * gamma + beta


# ---------------------------------------------------------------------------
# Pallas kernel: 2-layer post-norm transformer encoder for b_blk sequences per
# grid step, emitting the CLS activations only.
# ---------------------------------------------------------------------------
def clickbert_encoder_kernel(tok_ref, kp_ref, bd_ref,
                             wqkv_ref, bqkv_ref, wo_ref, bo_ref,
                             g1_ref, be1_ref,
                             w1_ref, bf1_ref, w2_ref, bf2_ref,
                             g2_ref, be2_ref,
                             out_ref, *, b_blk, t_pad, use_flat):
    D = D_MODEL
    rows = b_blk * t_pad
    x = tok_ref[...].reshape(rows, D)                         # [R, D] f32

    if use_flat:
        # Full-width additive attention bias, built once per grid step:
        # resident block-diagonal mask (0 / -1e30, DMA'd once via constant
        # index_map) + per-step key-padding bias broadcast over queries.
        attn_bias = bd_ref[...] + kp_ref[0]                   # [R, R] f32
    else:
        kp = kp_ref[...]                                      # [b_blk, 1, t_pad]

    for l in range(NUM_LAYERS):
        # --- self-attention block (fused QKV, 1/sqrt(d) folded into Wq) ---
        qkv = jnp.dot(x.astype(jnp.bfloat16), wqkv_ref[l],
                      preferred_element_type=jnp.float32) + bqkv_ref[l]
        qkv_b = qkv.astype(jnp.bfloat16)                      # one pack, sliced 3 ways
        q = qkv_b[:, 0 * D:1 * D]
        k = qkv_b[:, 1 * D:2 * D]
        v = qkv_b[:, 2 * D:3 * D]

        if use_flat:
            # One [R,64]x[64,R] matmul with block-diagonal masking instead of
            # b_blk tiny per-sequence matmuls (keeps the MXU full for short T).
            s = jnp.einsum('qd,kd->qk', q, k,
                           preferred_element_type=jnp.float32) + attn_bias
            s = s - jnp.max(s, axis=-1, keepdims=True)
            p = jnp.exp(s)
            p = p * pl.reciprocal(jnp.sum(p, axis=-1, keepdims=True), approx=True)
            ctx = jnp.dot(p.astype(jnp.bfloat16), v,
                          preferred_element_type=jnp.float32)            # [R, D]
        else:
            q3 = q.reshape(b_blk, t_pad, D)
            k3 = k.reshape(b_blk, t_pad, D)
            v3 = v.reshape(b_blk, t_pad, D)
            # key-padding bias added via broadcasting over the query axis
            s = jnp.einsum('bqd,bkd->bqk', q3, k3,
                           preferred_element_type=jnp.float32) + kp
            s = s - jnp.max(s, axis=-1, keepdims=True)
            p = jnp.exp(s)
            p = p * pl.reciprocal(jnp.sum(p, axis=-1, keepdims=True), approx=True)
            ctx = jnp.einsum('bqk,bkd->bqd', p.astype(jnp.bfloat16), v3,
                             preferred_element_type=jnp.float32).reshape(rows, D)

        attn = jnp.dot(ctx.astype(jnp.bfloat16), wo_ref[l],
                       preferred_element_type=jnp.float32) + bo_ref[l]
        x = _layer_norm(x + attn, g1_ref[l], be1_ref[l])

        # --- feed-forward block (relu, hidden zero-padded 200 -> 256) ---
        # (post-norm: the FFN input differs from the QKV input, so their bf16
        #  casts cannot be shared)
        h = jnp.maximum(
            jnp.dot(x.astype(jnp.bfloat16), w1_ref[l],
                    preferred_element_type=jnp.float32) + bf1_ref[l], 0.0)
        ff = jnp.dot(h.astype(jnp.bfloat16), w2_ref[l],
                     preferred_element_type=jnp.float32) + bf2_ref[l]
        x = _layer_norm(x + ff, g2_ref[l], be2_ref[l])

    # emit CLS activations only; the [64, num_labels] head runs in the wrapper
    out_ref[...] = x.reshape(b_blk, t_pad, D)[:, 0:1, :]


def _pack_kernel_params(params):
    """Fuse QKV (fold 1/sqrt(d) into Wq/bq), zero-pad the FFN to 256, and cast
    matmul weights to bf16 (biases / LN params stay f32)."""
    s = 1.0 / math.sqrt(D_MODEL)   # num_heads == 1 -> head_dim == D_MODEL
    pad = HIDDEN_PAD - HIDDEN_DIM
    wqkv = jnp.concatenate([params['wq'] * s, params['wk'], params['wv']], axis=-1)
    bqkv = jnp.concatenate([params['bq'] * s, params['bk'], params['bv']], axis=-1)
    w1 = jnp.pad(params['w1'], ((0, 0), (0, 0), (0, pad)))
    bf1 = jnp.pad(params['bf1'], ((0, 0), (0, 0), (0, pad)))
    w2 = jnp.pad(params['w2'], ((0, 0), (0, pad), (0, 0)))
    return dict(
        wqkv=wqkv.astype(jnp.bfloat16), bqkv=bqkv.astype(jnp.float32),
        wo=params['wo'].astype(jnp.bfloat16), bo=params['bo'],
        g1=params['g1'], be1=params['be1'],
        w1=w1.astype(jnp.bfloat16), bf1=bf1,
        w2=w2.astype(jnp.bfloat16), bf2=params['bf2'],
        g2=params['g2'], be2=params['be2'],
    )


def _choose_block(B, t_pad):
    """Pick sequences-per-grid-step so rows ~ TARGET_ROWS, multiple of 8, and
    (when the batch allows it) the grid has >= 2 steps for v7x megacore."""
    b_round = _round_up(B, 8)
    b_blk = max(8, (TARGET_ROWS // t_pad) // 8 * 8)
    b_blk = min(b_blk, b_round)
    if b_round >= 16:
        b_blk = min(b_blk, max(8, (b_round // 16) * 8))
    b_pad = _round_up(B, b_blk)
    return b_blk, b_pad


def clickbert_encoder(tokens, mask_f, params):
    """tokens: [B, T, D] f32 (CLS already prepended), mask_f: [B, 1, T] f32
    (1.0 = valid key).  Returns CLS logits [B, num_labels]."""
    B, T, D = tokens.shape
    assert D == D_MODEL
    L = NUM_LAYERS

    t_pad = _round_up(T, 8)                    # sublane-aligned sequence length
    b_blk, b_pad = _choose_block(B, t_pad)
    n_blk = b_pad // b_blk
    rows = b_blk * t_pad
    use_flat = t_pad <= FLAT_ATTN_MAX_T

    tok_p = jnp.pad(tokens.astype(jnp.float32),
                    ((0, b_pad - B), (0, t_pad - T), (0, 0)))

    # additive key-padding bias per (sequence, key): 0 = attend, -1e30 = masked
    kp2d = jnp.where(mask_f[:, 0, :] > 0.5, 0.0, MASK_NEG).astype(jnp.float32)
    kp2d = jnp.pad(kp2d, ((0, 0), (0, t_pad - T)), constant_values=MASK_NEG)
    kp2d = jnp.pad(kp2d, ((0, b_pad - B), (0, 0)))   # padded batch rows: harmless

    if use_flat:
        kp_in = kp2d.reshape(n_blk, 1, rows)                          # flat keys
        kp_spec = pl.BlockSpec((1, 1, rows), lambda i: (i, 0, 0))
        seq_id = jnp.repeat(jnp.arange(b_blk, dtype=jnp.int32), t_pad)
        bd_in = jnp.where(seq_id[:, None] == seq_id[None, :],
                          0.0, MASK_NEG).astype(jnp.float32)          # [rows, rows]
        bd_spec = pl.BlockSpec((rows, rows), lambda i: (0, 0))        # resident
    else:
        kp_in = kp2d[:, None, :]                                      # [b_pad,1,t_pad]
        kp_spec = pl.BlockSpec((b_blk, 1, t_pad), lambda i: (i, 0, 0))
        bd_in = jnp.zeros((8, 128), jnp.float32)                      # unused dummy
        bd_spec = pl.BlockSpec((8, 128), lambda i: (0, 0))

    wts = _pack_kernel_params(params)

    def const3(shape):
        return pl.BlockSpec(shape, lambda i: (0, 0, 0))   # resident weights

    in_specs = [
        pl.BlockSpec((b_blk, t_pad, D), lambda i: (i, 0, 0)),     # tokens
        kp_spec,                                                  # key-pad bias
        bd_spec,                                                  # block-diag mask
        const3((L, D, 3 * D)), const3((L, 1, 3 * D)),             # fused QKV
        const3((L, D, D)), const3((L, 1, D)),                     # out proj
        const3((L, 1, D)), const3((L, 1, D)),                     # norm1
        const3((L, D, HIDDEN_PAD)), const3((L, 1, HIDDEN_PAD)),   # ffn linear1
        const3((L, HIDDEN_PAD, D)), const3((L, 1, D)),            # ffn linear2
        const3((L, 1, D)), const3((L, 1, D)),                     # norm2
    ]
    out_spec = pl.BlockSpec((b_blk, 1, D), lambda i: (i, 0, 0))

    cls = pl.pallas_call(
        functools.partial(clickbert_encoder_kernel,
                          b_blk=b_blk, t_pad=t_pad, use_flat=use_flat),
        out_shape=jax.ShapeDtypeStruct((b_pad, 1, D), jnp.float32),
        grid_spec=pltpu.PrefetchScalarGridSpec(
            num_scalar_prefetch=0,
            grid=(n_blk,),
            in_specs=in_specs,
            out_specs=out_spec,
        ),
        compiler_params=pltpu.CompilerParams(
            dimension_semantics=("parallel",)),   # batch axis -> both TCs on v7x
    )(tok_p, kp_in, bd_in,
      wts['wqkv'], wts['bqkv'], wts['wo'], wts['bo'],
      wts['g1'], wts['be1'], wts['w1'], wts['bf1'],
      wts['w2'], wts['bf2'], wts['g2'], wts['be2'])

    cls = cls[:B, 0, :]                                   # [B, D] CLS activations
    # prediction head on CLS only (num_labels = 1), f32 in the wrapper
    return cls @ params['wp'] + params['bp']              # [B, num_labels]


# ---------------------------------------------------------------------------
# Plain-JAX glue (embeddings, positional encoding, CLS prepend, BCE loss)
# ---------------------------------------------------------------------------
def positional_encoding(seq_len, d_model):
    position = jnp.arange(seq_len, dtype=jnp.float32)[:, None]
    div_term = jnp.exp(jnp.arange(0, d_model, 2, dtype=jnp.float32)
                       * (-math.log(10000.0) / d_model))
    pe = jnp.zeros((seq_len, d_model), jnp.float32)
    pe = pe.at[:, 0::2].set(jnp.sin(position * div_term))
    pe = pe.at[:, 1::2].set(jnp.cos(position * div_term))
    return pe


def init_params(key, num_event_types, num_questions, num_labels=NUM_LABELS):
    keys = jax.random.split(key, 20)
    D, F, L = D_MODEL, HIDDEN_DIM, NUM_LAYERS

    def rnorm(k, shape, scale=0.05):
        return jax.random.normal(k, shape, dtype=jnp.float32) * scale

    p = {
        'event_type_emb': rnorm(keys[0], (num_event_types, EVENT_TYPE_EMB), 0.1),
        'question_emb':   rnorm(keys[1], (num_questions, QUESTION_EMB), 0.1),
        'cls_emb':        rnorm(keys[2], (1, EVENT_TYPE_EMB + QUESTION_EMB), 0.1),
        'mask_emb':       rnorm(keys[3], (1, EVENT_TYPE_EMB + QUESTION_EMB), 0.1),
        'wq': rnorm(keys[4], (L, D, D)),  'bq': rnorm(keys[5], (L, 1, D)),
        'wk': rnorm(keys[6], (L, D, D)),  'bk': rnorm(keys[7], (L, 1, D)),
        'wv': rnorm(keys[8], (L, D, D)),  'bv': rnorm(keys[9], (L, 1, D)),
        'wo': rnorm(keys[10], (L, D, D)), 'bo': rnorm(keys[11], (L, 1, D)),
        'g1': jnp.ones((L, 1, D), jnp.float32),
        'be1': jnp.zeros((L, 1, D), jnp.float32),
        'w1': rnorm(keys[12], (L, D, F)), 'bf1': rnorm(keys[13], (L, 1, F)),
        'w2': rnorm(keys[14], (L, F, D)), 'bf2': rnorm(keys[15], (L, 1, D)),
        'g2': jnp.ones((L, 1, D), jnp.float32),
        'be2': jnp.zeros((L, 1, D), jnp.float32),
        'wp': rnorm(keys[16], (D, num_labels)), 'bp': rnorm(keys[17], (1, num_labels)),
        # event_pred_layer / time_pred_layer exist in __init__ but are only
        # used in the PRE_TRAIN branch (not implemented here).
    }
    return p


def prepare_tokens(params, batch):
    B, S = batch['event_types'].shape
    ev = params['event_type_emb'][batch['event_types']] * math.sqrt(EVENT_TYPE_EMB)
    qu = params['question_emb'][batch['question_ids']] * math.sqrt(QUESTION_EMB)
    td = batch['time_deltas'][..., None].astype(jnp.float32)
    tokens = jnp.concatenate([ev, qu, td], axis=2)                 # [B, S, 64]
    tokens = tokens + positional_encoding(S, D_MODEL)[None]        # dropout: eval no-op
    cls = jnp.pad(params['cls_emb'][0], (0, 1))                    # [64]
    cls = jnp.broadcast_to(cls, (B, 1, D_MODEL))
    tokens = jnp.concatenate([cls, tokens], axis=1)                # [B, S+1, 64]
    mask = jnp.concatenate([jnp.ones((B, 1), dtype=bool), batch['mask']], axis=1)
    mask_f = mask.astype(jnp.float32)[:, None, :]                  # [B, 1, S+1]
    return tokens.astype(jnp.float32), mask_f


def clickbert_forward(params, batch):
    # TODO(synk): PRE_TRAIN branch (masked event CE loss + time BCE loss) not
    # implemented; this reproduces the fine-tune (label prediction) branch.
    tokens, mask_f = prepare_tokens(params, batch)
    logits = clickbert_encoder(tokens, mask_f, params)             # [B, NL]
    preds = logits.reshape(-1)                                     # num_labels == 1
    labels = batch['labels'].astype(jnp.float32)
    # BCEWithLogitsLoss (mean reduction), numerically stable form
    loss = jnp.mean(jnp.maximum(preds, 0.0) - preds * labels
                    + jnp.log1p(jnp.exp(-jnp.abs(preds))))
    return loss, preds


# ---------------------------------------------------------------------------
# Pure-JAX f32 reference of the original (unfused, unpadded) encoder math
# ---------------------------------------------------------------------------
def ref_encoder(tokens, mask_f, params):
    B, T, D = tokens.shape
    outs = []
    for b in range(B):
        x = tokens[b]
        kv = mask_f[b, 0] > 0.5
        for l in range(NUM_LAYERS):
            q = x @ params['wq'][l] + params['bq'][l]
            k = x @ params['wk'][l] + params['bk'][l]
            v = x @ params['wv'][l] + params['bv'][l]
            s = (q @ k.T) / math.sqrt(D)
            s = jnp.where(kv[None, :], s, MASK_NEG)
            p = jax.nn.softmax(s, axis=-1)
            a = (p @ v) @ params['wo'][l] + params['bo'][l]
            x = _layer_norm(x + a, params['g1'][l], params['be1'][l])
            h = jax.nn.relu(x @ params['w1'][l] + params['bf1'][l])
            f = h @ params['w2'][l] + params['bf2'][l]
            x = _layer_norm(x + f, params['g2'][l], params['be2'][l])
        outs.append((x[0:1] @ params['wp'] + params['bp'])[0])
    return jnp.stack(outs)   # [B, NL]


if __name__ == "__main__":
    key = jax.random.PRNGKey(0)
    num_event_types, num_questions = 10, 6

    def make_batch(k, B, S, valid_lens):
        k1, k2, k3, k4 = jax.random.split(k, 4)
        mask = jnp.arange(S)[None, :] < jnp.asarray(valid_lens)[:, None]
        return {
            'event_types': jax.random.randint(k1, (B, S), 0, num_event_types),
            'question_ids': jax.random.randint(k2, (B, S), 0, num_questions),
            'time_deltas': jax.random.uniform(k3, (B, S), dtype=jnp.float32),
            'mask': mask,
            'labels': (jax.random.uniform(k4, (B,)) > 0.5).astype(jnp.float32),
        }

    kparam, kb1, kb2, kb3 = jax.random.split(key, 4)
    params = init_params(kparam, num_event_types, num_questions)

    # --- main small test (flat block-diagonal attention path) ---
    batch = make_batch(kb1, 2, 8, [8, 6])
    loss, preds = clickbert_forward(params, batch)
    jax.block_until_ready((loss, preds))

    tokens, mask_f = prepare_tokens(params, batch)
    np.testing.assert_allclose(np.asarray(clickbert_encoder(tokens, mask_f, params)),
                               np.asarray(ref_encoder(tokens, mask_f, params)),
                               rtol=3e-2, atol=3e-2)
    assert np.isfinite(float(loss))

    # --- multi-grid-step test (batch padding + 2 grid steps, flat path) ---
    batch2 = make_batch(kb2, 12, 13, [13, 11, 9, 13, 5, 13, 7, 13, 13, 2, 13, 10])
    tokens2, mask2 = prepare_tokens(params, batch2)
    np.testing.assert_allclose(np.asarray(clickbert_encoder(tokens2, mask2, params)),
                               np.asarray(ref_encoder(tokens2, mask2, params)),
                               rtol=3e-2, atol=3e-2)

    # --- long-sequence fallback path (per-sequence batched attention) ---
    batch3 = make_batch(kb3, 2, 70, [70, 55])
    tokens3, mask3 = prepare_tokens(params, batch3)
    np.testing.assert_allclose(np.asarray(clickbert_encoder(tokens3, mask3, params)),
                               np.asarray(ref_encoder(tokens3, mask3, params)),
                               rtol=3e-2, atol=3e-2)

    print("KERNEL_OK")
</pallas_src>

<mosaic_0001>
module attributes {stable_mosaic.version = 11 : i64} {
  func.func @clickbert_encoder_kernel(%arg0: i32, %arg1: memref<8x16x64xf32, #tpu.memory_space<vmem>>, %arg2: memref<1x1x128xf32, #tpu.memory_space<vmem>>, %arg3: memref<128x128xf32, #tpu.memory_space<vmem>>, %arg4: memref<2x64x192xbf16, #tpu.memory_space<vmem>>, %arg5: memref<2x1x192xf32, #tpu.memory_space<vmem>>, %arg6: memref<2x64x64xbf16, #tpu.memory_space<vmem>>, %arg7: memref<2x1x64xf32, #tpu.memory_space<vmem>>, %arg8: memref<2x1x64xf32, #tpu.memory_space<vmem>>, %arg9: memref<2x1x64xf32, #tpu.memory_space<vmem>>, %arg10: memref<2x64x256xbf16, #tpu.memory_space<vmem>>, %arg11: memref<2x1x256xf32, #tpu.memory_space<vmem>>, %arg12: memref<2x256x64xbf16, #tpu.memory_space<vmem>>, %arg13: memref<2x1x64xf32, #tpu.memory_space<vmem>>, %arg14: memref<2x1x64xf32, #tpu.memory_space<vmem>>, %arg15: memref<2x1x64xf32, #tpu.memory_space<vmem>>, %arg16: memref<8x1x64xf32, #tpu.memory_space<vmem>>) attributes {dimension_semantics = [#tpu.dimension_semantics<parallel>], iteration_bounds = array<i64: 1>, scalar_prefetch = 0 : i64, scratch_operands = 0 : i64, tpu.core_type = #tpu.core_type<tc>, window_params = [{transform_indices = @transform_0, window_bounds = array<i64: 8, 16, 64>}, {transform_indices = @transform_1, window_bounds = array<i64: 1, 1, 128>}, {pipeline_mode = #tpu.pipeline_mode<synchronous>, transform_indices = @transform_2, window_bounds = array<i64: 128, 128>}, {pipeline_mode = #tpu.pipeline_mode<synchronous>, transform_indices = @transform_3, window_bounds = array<i64: 2, 64, 192>}, {pipeline_mode = #tpu.pipeline_mode<synchronous>, transform_indices = @transform_4, window_bounds = array<i64: 2, 1, 192>}, {pipeline_mode = #tpu.pipeline_mode<synchronous>, transform_indices = @transform_5, window_bounds = array<i64: 2, 64, 64>}, {pipeline_mode = #tpu.pipeline_mode<synchronous>, transform_indices = @transform_6, window_bounds = array<i64: 2, 1, 64>}, {pipeline_mode = #tpu.pipeline_mode<synchronous>, transform_indices = @transform_7, window_bounds = array<i64: 2, 1, 64>}, {pipeline_mode = #tpu.pipeline_mode<synchronous>, transform_indices = @transform_8, window_bounds = array<i64: 2, 1, 64>}, {pipeline_mode = #tpu.pipeline_mode<synchronous>, transform_indices = @transform_9, window_bounds = array<i64: 2, 64, 256>}, {pipeline_mode = #tpu.pipeline_mode<synchronous>, transform_indices = @transform_10, window_bounds = array<i64: 2, 1, 256>}, {pipeline_mode = #tpu.pipeline_mode<synchronous>, transform_indices = @transform_11, window_bounds = array<i64: 2, 256, 64>}, {pipeline_mode = #tpu.pipeline_mode<synchronous>, transform_indices = @transform_12, window_bounds = array<i64: 2, 1, 64>}, {pipeline_mode = #tpu.pipeline_mode<synchronous>, transform_indices = @transform_13, window_bounds = array<i64: 2, 1, 64>}, {pipeline_mode = #tpu.pipeline_mode<synchronous>, transform_indices = @transform_14, window_bounds = array<i64: 2, 1, 64>}, {transform_indices = @transform_15, window_bounds = array<i64: 8, 1, 64>}]} {
    %c0 = arith.constant 0 : index
    %c0_0 = arith.constant 0 : index
    %c0_1 = arith.constant 0 : index
    %0 = vector.load %arg1[%c0, %c0_0, %c0_1] : memref<8x16x64xf32, #tpu.memory_space<vmem>>, vector<8x16x64xf32>
    %1 = vector.shape_cast %0 : vector<8x16x64xf32> to vector<128x64xf32>
    %c0_2 = arith.constant 0 : index
    %c0_3 = arith.constant 0 : index
    %2 = vector.load %arg3[%c0_2, %c0_3] : memref<128x128xf32, #tpu.memory_space<vmem>>, vector<128x128xf32>
    %c0_4 = arith.constant 0 : index
    %c0_5 = arith.constant 0 : index
    %c0_6 = arith.constant 0 : index
    %3 = vector.load %arg2[%c0_4, %c0_5, %c0_6] : memref<1x1x128xf32, #tpu.memory_space<vmem>>, vector<1x1x128xf32>
    %4 = vector.shape_cast %3 : vector<1x1x128xf32> to vector<1x128xf32>
    %5 = vector.broadcast %4 : vector<1x128xf32> to vector<128x128xf32>
    %6 = arith.addf %2, %5 : vector<128x128xf32>
    %7 = arith.truncf %1 : vector<128x64xf32> to vector<128x64xbf16>
    %c0_7 = arith.constant 0 : index
    %c0_8 = arith.constant 0 : index
    %c0_9 = arith.constant 0 : index
    %8 = vector.load %arg4[%c0_7, %c0_8, %c0_9] : memref<2x64x192xbf16, #tpu.memory_space<vmem>>, vector<1x64x192xbf16>
    %9 = vector.shape_cast %8 : vector<1x64x192xbf16> to vector<64x192xbf16>
    %cst = arith.constant dense<0.000000e+00> : vector<128x192xf32>
    %10 = tpu.matmul %7, %9, %cst {dimension_numbers = #tpu.dot_dimension_numbers<[1], [0], [0], [1], [0, 0, 1, 1], [], []>} : vector<128x64xbf16>, vector<64x192xbf16>, vector<128x192xf32> -> vector<128x192xf32>
    %c0_10 = arith.constant 0 : index
    %c0_11 = arith.constant 0 : index
    %c0_12 = arith.constant 0 : index
    %11 = vector.load %arg5[%c0_10, %c0_11, %c0_12] : memref<2x1x192xf32, #tpu.memory_space<vmem>>, vector<1x1x192xf32>
    %12 = vector.shape_cast %11 : vector<1x1x192xf32> to vector<1x192xf32>
    %13 = vector.broadcast %12 : vector<1x192xf32> to vector<128x192xf32>
    %14 = arith.addf %10, %13 : vector<128x192xf32>
    %15 = arith.truncf %14 : vector<128x192xf32> to vector<128x192xbf16>
    %16 = vector.extract_strided_slice %15 {offsets = [0, 0], sizes = [128, 64], strides = [1, 1]} : vector<128x192xbf16> to vector<128x64xbf16>
    %17 = vector.extract_strided_slice %15 {offsets = [0, 64], sizes = [128, 64], strides = [1, 1]} : vector<128x192xbf16> to vector<128x64xbf16>
    %18 = vector.extract_strided_slice %15 {offsets = [0, 128], sizes = [128, 64], strides = [1, 1]} : vector<128x192xbf16> to vector<128x64xbf16>
    "tpu.trace_start"() <{level = 10 : i32, message = "qd,kd->qk"}> : () -> ()
    %cst_13 = arith.constant dense<0.000000e+00> : vector<128x128xf32>
    %19 = tpu.matmul %16, %17, %cst_13 {dimension_numbers = #tpu.dot_dimension_numbers<[1], [1], [0], [0], [0, 0, 1, 0], [], []>} : vector<128x64xbf16>, vector<128x64xbf16>, vector<128x128xf32> -> vector<128x128xf32>
    "tpu.trace_stop"() : () -> ()
    %20 = arith.addf %19, %6 : vector<128x128xf32>
    %cst_14 = arith.constant dense<0xFF800000> : vector<128xf32>
    %21 = vector.multi_reduction <maximumf>, %20, %cst_14 [1] : vector<128x128xf32> to vector<128xf32>
    %22 = vector.shape_cast %21 : vector<128xf32> to vector<128x1xf32>
    %23 = vector.broadcast %22 : vector<128x1xf32> to vector<128x128xf32>
    %24 = arith.subf %20, %23 : vector<128x128xf32>
    %25 = math.exp %24 : vector<128x128xf32>
    %cst_15 = arith.constant dense<0.000000e+00> : vector<128xf32>
    %26 = vector.multi_reduction <add>, %25, %cst_15 [1] : vector<128x128xf32> to vector<128xf32>
    %27 = vector.shape_cast %26 : vector<128xf32> to vector<128x1xf32>
    %28 = tpu.reciprocal %27 {approx = true} : vector<128x1xf32> -> vector<128x1xf32>
    %29 = vector.broadcast %28 : vector<128x1xf32> to vector<128x128xf32>
    %30 = arith.mulf %25, %29 : vector<128x128xf32>
    %31 = arith.truncf %30 : vector<128x128xf32> to vector<128x128xbf16>
    %cst_16 = arith.constant dense<0.000000e+00> : vector<128x64xf32>
    %32 = tpu.matmul %31, %18, %cst_16 {dimension_numbers = #tpu.dot_dimension_numbers<[1], [0], [0], [1], [0, 0, 1, 1], [], []>} : vector<128x128xbf16>, vector<128x64xbf16>, vector<128x64xf32> -> vector<128x64xf32>
    %33 = arith.truncf %32 : vector<128x64xf32> to vector<128x64xbf16>
    %c0_17 = arith.constant 0 : index
    %c0_18 = arith.constant 0 : index
    %c0_19 = arith.constant 0 : index
    %34 = vector.load %arg6[%c0_17, %c0_18, %c0_19] : memref<2x64x64xbf16, #tpu.memory_space<vmem>>, vector<1x64x64xbf16>
    %35 = vector.shape_cast %34 : vector<1x64x64xbf16> to vector<64x64xbf16>
    %cst_20 = arith.constant dense<0.000000e+00> : vector<128x64xf32>
    %36 = tpu.matmul %33, %35, %cst_20 {dimension_numbers = #tpu.dot_dimension_numbers<[1], [0], [0], [1], [0, 0, 1, 1], [], []>} : vector<128x64xbf16>, vector<64x64xbf16>, vector<128x64xf32> -> vector<128x64xf32>
    %c0_21 = arith.constant 0 : index
    %c0_22 = arith.constant 0 : index
    %c0_23 = arith.constant 0 : index
    %37 = vector.load %arg7[%c0_21, %c0_22, %c0_23] : memref<2x1x64xf32, #tpu.memory_space<vmem>>, vector<1x1x64xf32>
    %38 = vector.shape_cast %37 : vector<1x1x64xf32> to vector<1x64xf32>
    %39 = vector.broadcast %38 : vector<1x64xf32> to vector<128x64xf32>
    %40 = arith.addf %36, %39 : vector<128x64xf32>
    %41 = arith.addf %1, %40 : vector<128x64xf32>
    %c0_24 = arith.constant 0 : index
    %c0_25 = arith.constant 0 : index
    %c0_26 = arith.constant 0 : index
    %42 = vector.load %arg8[%c0_24, %c0_25, %c0_26] : memref<2x1x64xf32, #tpu.memory_space<vmem>>, vector<1x1x64xf32>
    %43 = vector.shape_cast %42 : vector<1x1x64xf32> to vector<1x64xf32>
    %c0_27 = arith.constant 0 : index
    %c0_28 = arith.constant 0 : index
    %c0_29 = arith.constant 0 : index
    %44 = vector.load %arg9[%c0_27, %c0_28, %c0_29] : memref<2x1x64xf32, #tpu.memory_space<vmem>>, vector<1x1x64xf32>
    %45 = vector.shape_cast %44 : vector<1x1x64xf32> to vector<1x64xf32>
    %cst_30 = arith.constant dense<0.000000e+00> : vector<128xf32>
    %46 = vector.multi_reduction <add>, %41, %cst_30 [1] : vector<128x64xf32> to vector<128xf32>
    %47 = vector.shape_cast %46 : vector<128xf32> to vector<128x1xf32>
    %cst_31 = arith.constant 6.400000e+01 : f32
    %48 = vector.broadcast %cst_31 : f32 to vector<128x1xf32>
    %49 = arith.divf %47, %48 : vector<128x1xf32>
    %50 = vector.broadcast %49 : vector<128x1xf32> to vector<128x64xf32>
    %51 = arith.subf %41, %50 : vector<128x64xf32>
    %52 = arith.mulf %51, %51 : vector<128x64xf32>
    %cst_32 = arith.constant dense<0.000000e+00> : vector<128xf32>
    %53 = vector.multi_reduction <add>, %52, %cst_32 [1] : vector<128x64xf32> to vector<128xf32>
    %54 = vector.shape_cast %53 : vector<128xf32> to vector<128x1xf32>
    %cst_33 = arith.constant 6.400000e+01 : f32
    %55 = vector.broadcast %cst_33 : f32 to vector<128x1xf32>
    %56 = arith.divf %54, %55 : vector<128x1xf32>
    %57 = vector.broadcast %49 : vector<128x1xf32> to vector<128x64xf32>
    %58 = arith.subf %41, %57 : vector<128x64xf32>
    %cst_34 = arith.constant 9.99999974E-6 : f32
    %59 = vector.broadcast %cst_34 : f32 to vector<128x1xf32>
    %60 = arith.addf %56, %59 : vector<128x1xf32>
    %61 = math.rsqrt %60 : vector<128x1xf32>
    %62 = vector.broadcast %61 : vector<128x1xf32> to vector<128x64xf32>
    %63 = arith.mulf %58, %62 : vector<128x64xf32>
    %64 = vector.broadcast %43 : vector<1x64xf32> to vector<128x64xf32>
    %65 = arith.mulf %63, %64 : vector<128x64xf32>
    %66 = vector.broadcast %45 : vector<1x64xf32> to vector<128x64xf32>
    %67 = arith.addf %65, %66 : vector<128x64xf32>
    %68 = arith.truncf %67 : vector<128x64xf32> to vector<128x64xbf16>
    %c0_35 = arith.constant 0 : index
    %c0_36 = arith.constant 0 : index
    %c0_37 = arith.constant 0 : index
    %69 = vector.load %arg10[%c0_35, %c0_36, %c0_37] : memref<2x64x256xbf16, #tpu.memory_space<vmem>>, vector<1x64x256xbf16>
    %70 = vector.shape_cast %69 : vector<1x64x256xbf16> to vector<64x256xbf16>
    %cst_38 = arith.constant dense<0.000000e+00> : vector<128x256xf32>
    %71 = tpu.matmul %68, %70, %cst_38 {dimension_numbers = #tpu.dot_dimension_numbers<[1], [0], [0], [1], [0, 0, 1, 1], [], []>} : vector<128x64xbf16>, vector<64x256xbf16>, vector<128x256xf32> -> vector<128x256xf32>
    %c0_39 = arith.constant 0 : index
    %c0_40 = arith.constant 0 : index
    %c0_41 = arith.constant 0 : index
    %72 = vector.load %arg11[%c0_39, %c0_40, %c0_41] : memref<2x1x256xf32, #tpu.memory_space<vmem>>, vector<1x1x256xf32>
    %73 = vector.shape_cast %72 : vector<1x1x256xf32> to vector<1x256xf32>
    %74 = vector.broadcast %73 : vector<1x256xf32> to vector<128x256xf32>
    %75 = arith.addf %71, %74 : vector<128x256xf32>
    %cst_42 = arith.constant 0.000000e+00 : f32
    %76 = vector.broadcast %cst_42 : f32 to vector<128x256xf32>
    %77 = arith.maximumf %75, %76 : vector<128x256xf32>
    %78 = arith.truncf %77 : vector<128x256xf32> to vector<128x256xbf16>
    %c0_43 = arith.constant 0 : index
    %c0_44 = arith.constant 0 : index
    %c0_45 = arith.constant 0 : index
    %79 = vector.load %arg12[%c0_43, %c0_44, %c0_45] : memref<2x256x64xbf16, #tpu.memory_space<vmem>>, vector<1x256x64xbf16>
    %80 = vector.shape_cast %79 : vector<1x256x64xbf16> to vector<256x64xbf16>
    %cst_46 = arith.constant dense<0.000000e+00> : vector<128x64xf32>
    %81 = tpu.matmul %78, %80, %cst_46 {dimension_numbers = #tpu.dot_dimension_numbers<[1], [0], [0], [1], [0, 0, 1, 1], [], []>} : vector<128x256xbf16>, vector<256x64xbf16>, vector<128x64xf32> -> vector<128x64xf32>
    %c0_47 = arith.constant 0 : index
    %c0_48 = arith.constant 0 : index
    %c0_49 = arith.constant 0 : index
    %82 = vector.load %arg13[%c0_47, %c0_48, %c0_49] : memref<2x1x64xf32, #tpu.memory_space<vmem>>, vector<1x1x64xf32>
    %83 = vector.shape_cast %82 : vector<1x1x64xf32> to vector<1x64xf32>
    %84 = vector.broadcast %83 : vector<1x64xf32> to vector<128x64xf32>
    %85 = arith.addf %81, %84 : vector<128x64xf32>
    %86 = arith.addf %67, %85 : vector<128x64xf32>
    %c0_50 = arith.constant 0 : index
    %c0_51 = arith.constant 0 : index
    %c0_52 = arith.constant 0 : index
    %87 = vector.load %arg14[%c0_50, %c0_51, %c0_52] : memref<2x1x64xf32, #tpu.memory_space<vmem>>, vector<1x1x64xf32>
    %88 = vector.shape_cast %87 : vector<1x1x64xf32> to vector<1x64xf32>
    %c0_53 = arith.constant 0 : index
    %c0_54 = arith.constant 0 : index
    %c0_55 = arith.constant 0 : index
    %89 = vector.load %arg15[%c0_53, %c0_54, %c0_55] : memref<2x1x64xf32, #tpu.memory_space<vmem>>, vector<1x1x64xf32>
    %90 = vector.shape_cast %89 : vector<1x1x64xf32> to vector<1x64xf32>
    %cst_56 = arith.constant dense<0.000000e+00> : vector<128xf32>
    %91 = vector.multi_reduction <add>, %86, %cst_56 [1] : vector<128x64xf32> to vector<128xf32>
    %92 = vector.shape_cast %91 : vector<128xf32> to vector<128x1xf32>
    %cst_57 = arith.constant 6.400000e+01 : f32
    %93 = vector.broadcast %cst_57 : f32 to vector<128x1xf32>
    %94 = arith.divf %92, %93 : vector<128x1xf32>
    %95 = vector.broadcast %94 : vector<128x1xf32> to vector<128x64xf32>
    %96 = arith.subf %86, %95 : vector<128x64xf32>
    %97 = arith.mulf %96, %96 : vector<128x64xf32>
    %cst_58 = arith.constant dense<0.000000e+00> : vector<128xf32>
    %98 = vector.multi_reduction <add>, %97, %cst_58 [1] : vector<128x64xf32> to vector<128xf32>
    %99 = vector.shape_cast %98 : vector<128xf32> to vector<128x1xf32>
    %cst_59 = arith.constant 6.400000e+01 : f32
    %100 = vector.broadcast %cst_59 : f32 to vector<128x1xf32>
    %101 = arith.divf %99, %100 : vector<128x1xf32>
    %102 = vector.broadcast %94 : vector<128x1xf32> to vector<128x64xf32>
    %103 = arith.subf %86, %102 : vector<128x64xf32>
    %cst_60 = arith.constant 9.99999974E-6 : f32
    %104 = vector.broadcast %cst_60 : f32 to vector<128x1xf32>
    %105 = arith.addf %101, %104 : vector<128x1xf32>
    %106 = math.rsqrt %105 : vector<128x1xf32>
    %107 = vector.broadcast %106 : vector<128x1xf32> to vector<128x64xf32>
    %108 = arith.mulf %103, %107 : vector<128x64xf32>
    %109 = vector.broadcast %88 : vector<1x64xf32> to vector<128x64xf32>
    %110 = arith.mulf %108, %109 : vector<128x64xf32>
    %111 = vector.broadcast %90 : vector<1x64xf32> to vector<128x64xf32>
    %112 = arith.addf %110, %111 : vector<128x64xf32>
    %113 = arith.truncf %112 : vector<128x64xf32> to vector<128x64xbf16>
    %c1 = arith.constant 1 : index
    %c0_61 = arith.constant 0 : index
    %c0_62 = arith.constant 0 : index
    %114 = vector.load %arg4[%c1, %c0_61, %c0_62] : memref<2x64x192xbf16, #tpu.memory_space<vmem>>, vector<1x64x192xbf16>
    %115 = vector.shape_cast %114 : vector<1x64x192xbf16> to vector<64x192xbf16>
    %cst_63 = arith.constant dense<0.000000e+00> : vector<128x192xf32>
    %116 = tpu.matmul %113, %115, %cst_63 {dimension_numbers = #tpu.dot_dimension_numbers<[1], [0], [0], [1], [0, 0, 1, 1], [], []>} : vector<128x64xbf16>, vector<64x192xbf16>, vector<128x192xf32> -> vector<128x192xf32>
    %c1_64 = arith.constant 1 : index
    %c0_65 = arith.constant 0 : index
    %c0_66 = arith.constant 0 : index
    %117 = vector.load %arg5[%c1_64, %c0_65, %c0_66] : memref<2x1x192xf32, #tpu.memory_space<vmem>>, vector<1x1x192xf32>
    %118 = vector.shape_cast %117 : vector<1x1x192xf32> to vector<1x192xf32>
    %119 = vector.broadcast %118 : vector<1x192xf32> to vector<128x192xf32>
    %120 = arith.addf %116, %119 : vector<128x192xf32>
    %121 = arith.truncf %120 : vector<128x192xf32> to vector<128x192xbf16>
    %122 = vector.extract_strided_slice %121 {offsets = [0, 0], sizes = [128, 64], strides = [1, 1]} : vector<128x192xbf16> to vector<128x64xbf16>
    %123 = vector.extract_strided_slice %121 {offsets = [0, 64], sizes = [128, 64], strides = [1, 1]} : vector<128x192xbf16> to vector<128x64xbf16>
    %124 = vector.extract_strided_slice %121 {offsets = [0, 128], sizes = [128, 64], strides = [1, 1]} : vector<128x192xbf16> to vector<128x64xbf16>
    "tpu.trace_start"() <{level = 10 : i32, message = "qd,kd->qk"}> : () -> ()
    %cst_67 = arith.constant dense<0.000000e+00> : vector<128x128xf32>
    %125 = tpu.matmul %122, %123, %cst_67 {dimension_numbers = #tpu.dot_dimension_numbers<[1], [1], [0], [0], [0, 0, 1, 0], [], []>} : vector<128x64xbf16>, vector<128x64xbf16>, vector<128x128xf32> -> vector<128x128xf32>
    "tpu.trace_stop"() : () -> ()
    %126 = arith.addf %125, %6 : vector<128x128xf32>
    %cst_68 = arith.constant dense<0xFF800000> : vector<128xf32>
    %127 = vector.multi_reduction <maximumf>, %126, %cst_68 [1] : vector<128x128xf32> to vector<128xf32>
    %128 = vector.shape_cast %127 : vector<128xf32> to vector<128x1xf32>
    %129 = vector.broadcast %128 : vector<128x1xf32> to vector<128x128xf32>
    %130 = arith.subf %126, %129 : vector<128x128xf32>
    %131 = math.exp %130 : vector<128x128xf32>
    %cst_69 = arith.constant dense<0.000000e+00> : vector<128xf32>
    %132 = vector.multi_reduction <add>, %131, %cst_69 [1] : vector<128x128xf32> to vector<128xf32>
    %133 = vector.shape_cast %132 : vector<128xf32> to vector<128x1xf32>
    %134 = tpu.reciprocal %133 {approx = true} : vector<128x1xf32> -> vector<128x1xf32>
    %135 = vector.broadcast %134 : vector<128x1xf32> to vector<128x128xf32>
    %136 = arith.mulf %131, %135 : vector<128x128xf32>
    %137 = arith.truncf %136 : vector<128x128xf32> to vector<128x128xbf16>
    %cst_70 = arith.constant dense<0.000000e+00> : vector<128x64xf32>
    %138 = tpu.matmul %137, %124, %cst_70 {dimension_numbers = #tpu.dot_dimension_numbers<[1], [0], [0], [1], [0, 0, 1, 1], [], []>} : vector<128x128xbf16>, vector<128x64xbf16>, vector<128x64xf32> -> vector<128x64xf32>
    %139 = arith.truncf %138 : vector<128x64xf32> to vector<128x64xbf16>
    %c1_71 = arith.constant 1 : index
    %c0_72 = arith.constant 0 : index
    %c0_73 = arith.constant 0 : index
    %140 = vector.load %arg6[%c1_71, %c0_72, %c0_73] : memref<2x64x64xbf16, #tpu.memory_space<vmem>>, vector<1x64x64xbf16>
    %141 = vector.shape_cast %140 : vector<1x64x64xbf16> to vector<64x64xbf16>
    %cst_74 = arith.constant dense<0.000000e+00> : vector<128x64xf32>
    %142 = tpu.matmul %139, %141, %cst_74 {dimension_numbers = #tpu.dot_dimension_numbers<[1], [0], [0], [1], [0, 0, 1, 1], [], []>} : vector<128x64xbf16>, vector<64x64xbf16>, vector<128x64xf32> -> vector<128x64xf32>
    %c1_75 = arith.constant 1 : index
    %c0_76 = arith.constant 0 : index
    %c0_77 = arith.constant 0 : index
    %143 = vector.load %arg7[%c1_75, %c0_76, %c0_77] : memref<2x1x64xf32, #tpu.memory_space<vmem>>, vector<1x1x64xf32>
    %144 = vector.shape_cast %143 : vector<1x1x64xf32> to vector<1x64xf32>
    %145 = vector.broadcast %144 : vector<1x64xf32> to vector<128x64xf32>
    %146 = arith.addf %142, %145 : vector<128x64xf32>
    %147 = arith.addf %112, %146 : vector<128x64xf32>
    %c1_78 = arith.constant 1 : index
    %c0_79 = arith.constant 0 : index
    %c0_80 = arith.constant 0 : index
    %148 = vector.load %arg8[%c1_78, %c0_79, %c0_80] : memref<2x1x64xf32, #tpu.memory_space<vmem>>, vector<1x1x64xf32>
    %149 = vector.shape_cast %148 : vector<1x1x64xf32> to vector<1x64xf32>
    %c1_81 = arith.constant 1 : index
    %c0_82 = arith.constant 0 : index
    %c0_83 = arith.constant 0 : index
    %150 = vector.load %arg9[%c1_81, %c0_82, %c0_83] : memref<2x1x64xf32, #tpu.memory_space<vmem>>, vector<1x1x64xf32>
    %151 = vector.shape_cast %150 : vector<1x1x64xf32> to vector<1x64xf32>
    %cst_84 = arith.constant dense<0.000000e+00> : vector<128xf32>
    %152 = vector.multi_reduction <add>, %147, %cst_84 [1] : vector<128x64xf32> to vector<128xf32>
    %153 = vector.shape_cast %152 : vector<128xf32> to vector<128x1xf32>
    %cst_85 = arith.constant 6.400000e+01 : f32
    %154 = vector.broadcast %cst_85 : f32 to vector<128x1xf32>
    %155 = arith.divf %153, %154 : vector<128x1xf32>
    %156 = vector.broadcast %155 : vector<128x1xf32> to vector<128x64xf32>
    %157 = arith.subf %147, %156 : vector<128x64xf32>
    %158 = arith.mulf %157, %157 : vector<128x64xf32>
    %cst_86 = arith.constant dense<0.000000e+00> : vector<128xf32>
    %159 = vector.multi_reduction <add>, %158, %cst_86 [1] : vector<128x64xf32> to vector<128xf32>
    %160 = vector.shape_cast %159 : vector<128xf32> to vector<128x1xf32>
    %cst_87 = arith.constant 6.400000e+01 : f32
    %161 = vector.broadcast %cst_87 : f32 to vector<128x1xf32>
    %162 = arith.divf %160, %161 : vector<128x1xf32>
    %163 = vector.broadcast %155 : vector<128x1xf32> to vector<128x64xf32>
    %164 = arith.subf %147, %163 : vector<128x64xf32>
    %cst_88 = arith.constant 9.99999974E-6 : f32
    %165 = vector.broadcast %cst_88 : f32 to vector<128x1xf32>
    %166 = arith.addf %162, %165 : vector<128x1xf32>
    %167 = math.rsqrt %166 : vector<128x1xf32>
    %168 = vector.broadcast %167 : vector<128x1xf32> to vector<128x64xf32>
    %169 = arith.mulf %164, %168 : vector<128x64xf32>
    %170 = vector.broadcast %149 : vector<1x64xf32> to vector<128x64xf32>
    %171 = arith.mulf %169, %170 : vector<128x64xf32>
    %172 = vector.broadcast %151 : vector<1x64xf32> to vector<128x64xf32>
    %173 = arith.addf %171, %172 : vector<128x64xf32>
    %174 = arith.truncf %173 : vector<128x64xf32> to vector<128x64xbf16>
    %c1_89 = arith.constant 1 : index
    %c0_90 = arith.constant 0 : index
    %c0_91 = arith.constant 0 : index
    %175 = vector.load %arg10[%c1_89, %c0_90, %c0_91] : memref<2x64x256xbf16, #tpu.memory_space<vmem>>, vector<1x64x256xbf16>
    %176 = vector.shape_cast %175 : vector<1x64x256xbf16> to vector<64x256xbf16>
    %cst_92 = arith.constant dense<0.000000e+00> : vector<128x256xf32>
    %177 = tpu.matmul %174, %176, %cst_92 {dimension_numbers = #tpu.dot_dimension_numbers<[1], [0], [0], [1], [0, 0, 1, 1], [], []>} : vector<128x64xbf16>, vector<64x256xbf16>, vector<128x256xf32> -> vector<128x256xf32>
    %c1_93 = arith.constant 1 : index
    %c0_94 = arith.constant 0 : index
    %c0_95 = arith.constant 0 : index
    %178 = vector.load %arg11[%c1_93, %c0_94, %c0_95] : memref<2x1x256xf32, #tpu.memory_space<vmem>>, vector<1x1x256xf32>
    %179 = vector.shape_cast %178 : vector<1x1x256xf32> to vector<1x256xf32>
    %180 = vector.broadcast %179 : vector<1x256xf32> to vector<128x256xf32>
    %181 = arith.addf %177, %180 : vector<128x256xf32>
    %cst_96 = arith.constant 0.000000e+00 : f32
    %182 = vector.broadcast %cst_96 : f32 to vector<128x256xf32>
    %183 = arith.maximumf %181, %182 : vector<128x256xf32>
    %184 = arith.truncf %183 : vector<128x256xf32> to vector<128x256xbf16>
    %c1_97 = arith.constant 1 : index
    %c0_98 = arith.constant 0 : index
    %c0_99 = arith.constant 0 : index
    %185 = vector.load %arg12[%c1_97, %c0_98, %c0_99] : memref<2x256x64xbf16, #tpu.memory_space<vmem>>, vector<1x256x64xbf16>
    %186 = vector.shape_cast %185 : vector<1x256x64xbf16> to vector<256x64xbf16>
    %cst_100 = arith.constant dense<0.000000e+00> : vector<128x64xf32>
    %187 = tpu.matmul %184, %186, %cst_100 {dimension_numbers = #tpu.dot_dimension_numbers<[1], [0], [0], [1], [0, 0, 1, 1], [], []>} : vector<128x256xbf16>, vector<256x64xbf16>, vector<128x64xf32> -> vector<128x64xf32>
    %c1_101 = arith.constant 1 : index
    %c0_102 = arith.constant 0 : index
    %c0_103 = arith.constant 0 : index
    %188 = vector.load %arg13[%c1_101, %c0_102, %c0_103] : memref<2x1x64xf32, #tpu.memory_space<vmem>>, vector<1x1x64xf32>
    %189 = vector.shape_cast %188 : vector<1x1x64xf32> to vector<1x64xf32>
    %190 = vector.broadcast %189 : vector<1x64xf32> to vector<128x64xf32>
    %191 = arith.addf %187, %190 : vector<128x64xf32>
    %192 = arith.addf %173, %191 : vector<128x64xf32>
    %c1_104 = arith.constant 1 : index
    %c0_105 = arith.constant 0 : index
    %c0_106 = arith.constant 0 : index
    %193 = vector.load %arg14[%c1_104, %c0_105, %c0_106] : memref<2x1x64xf32, #tpu.memory_space<vmem>>, vector<1x1x64xf32>
    %194 = vector.shape_cast %193 : vector<1x1x64xf32> to vector<1x64xf32>
    %c1_107 = arith.constant 1 : index
    %c0_108 = arith.constant 0 : index
    %c0_109 = arith.constant 0 : index
    %195 = vector.load %arg15[%c1_107, %c0_108, %c0_109] : memref<2x1x64xf32, #tpu.memory_space<vmem>>, vector<1x1x64xf32>
    %196 = vector.shape_cast %195 : vector<1x1x64xf32> to vector<1x64xf32>
    %cst_110 = arith.constant dense<0.000000e+00> : vector<128xf32>
    %197 = vector.multi_reduction <add>, %192, %cst_110 [1] : vector<128x64xf32> to vector<128xf32>
    %198 = vector.shape_cast %197 : vector<128xf32> to vector<128x1xf32>
    %cst_111 = arith.constant 6.400000e+01 : f32
    %199 = vector.broadcast %cst_111 : f32 to vector<128x1xf32>
    %200 = arith.divf %198, %199 : vector<128x1xf32>
    %201 = vector.broadcast %200 : vector<128x1xf32> to vector<128x64xf32>
    %202 = arith.subf %192, %201 : vector<128x64xf32>
    %203 = arith.mulf %202, %202 : vector<128x64xf32>
    %cst_112 = arith.constant dense<0.000000e+00> : vector<128xf32>
    %204 = vector.multi_reduction <add>, %203, %cst_112 [1] : vector<128x64xf32> to vector<128xf32>
    %205 = vector.shape_cast %204 : vector<128xf32> to vector<128x1xf32>
    %cst_113 = arith.constant 6.400000e+01 : f32
    %206 = vector.broadcast %cst_113 : f32 to vector<128x1xf32>
    %207 = arith.divf %205, %206 : vector<128x1xf32>
    %208 = vector.broadcast %200 : vector<128x1xf32> to vector<128x64xf32>
    %209 = arith.subf %192, %208 : vector<128x64xf32>
    %cst_114 = arith.constant 9.99999974E-6 : f32
    %210 = vector.broadcast %cst_114 : f32 to vector<128x1xf32>
    %211 = arith.addf %207, %210 : vector<128x1xf32>
    %212 = math.rsqrt %211 : vector<128x1xf32>
    %213 = vector.broadcast %212 : vector<128x1xf32> to vector<128x64xf32>
    %214 = arith.mulf %209, %213 : vector<128x64xf32>
    %215 = vector.broadcast %194 : vector<1x64xf32> to vector<128x64xf32>
    %216 = arith.mulf %214, %215 : vector<128x64xf32>
    %217 = vector.broadcast %196 : vector<1x64xf32> to vector<128x64xf32>
    %218 = arith.addf %216, %217 : vector<128x64xf32>
    %219 = vector.shape_cast %218 : vector<128x64xf32> to vector<8x16x64xf32>
    %220 = vector.extract_strided_slice %219 {offsets = [0, 0, 0], sizes = [8, 1, 64], strides = [1, 1, 1]} : vector<8x16x64xf32> to vector<8x1x64xf32>
    %c0_115 = arith.constant 0 : index
    %c0_116 = arith.constant 0 : index
    %c0_117 = arith.constant 0 : index
    %221 = vector.load %arg16[%c0_115, %c0_116, %c0_117] : memref<8x1x64xf32, #tpu.memory_space<vmem>>, vector<8x1x64xf32>
    tpu.vector_store %arg16[%c0_115, %c0_116, %c0_117], %220 {strides = array<i32>} : memref<8x1x64xf32, #tpu.memory_space<vmem>>, vector<8x1x64xf32>,
    return
  }
  func.func @transform_0(%arg0: i32) -> (i32, i32, i32) {
    %c0_i32 = arith.constant 0 : i32
    %c0_i32_0 = arith.constant 0 : i32
    %c0_i32_1 = arith.constant 0 : i32
    return %arg0, %c0_i32, %c0_i32_0 : i32, i32, i32
  }
  func.func @transform_1(%arg0: i32) -> (i32, i32, i32) {
    %c0_i32 = arith.constant 0 : i32
    %c0_i32_0 = arith.constant 0 : i32
    %c0_i32_1 = arith.constant 0 : i32
    return %arg0, %c0_i32, %c0_i32_0 : i32, i32, i32
  }
  func.func @transform_2(%arg0: i32) -> (i32, i32) {
    %c0_i32 = arith.constant 0 : i32
    %c0_i32_0 = arith.constant 0 : i32
    %c0_i32_1 = arith.constant 0 : i32
    return %c0_i32, %c0_i32_0 : i32, i32
  }
  func.func @transform_3(%arg0: i32) -> (i32, i32, i32) {
    %c0_i32 = arith.constant 0 : i32
    %c0_i32_0 = arith.constant 0 : i32
    %c0_i32_1 = arith.constant 0 : i32
    %c0_i32_2 = arith.constant 0 : i32
    return %c0_i32, %c0_i32_0, %c0_i32_1 : i32, i32, i32
  }
  func.func @transform_4(%arg0: i32) -> (i32, i32, i32) {
    %c0_i32 = arith.constant 0 : i32
    %c0_i32_0 = arith.constant 0 : i32
    %c0_i32_1 = arith.constant 0 : i32
    %c0_i32_2 = arith.constant 0 : i32
    return %c0_i32, %c0_i32_0, %c0_i32_1 : i32, i32, i32
  }
  func.func @transform_5(%arg0: i32) -> (i32, i32, i32) {
    %c0_i32 = arith.constant 0 : i32
    %c0_i32_0 = arith.constant 0 : i32
    %c0_i32_1 = arith.constant 0 : i32
    %c0_i32_2 = arith.constant 0 : i32
    return %c0_i32, %c0_i32_0, %c0_i32_1 : i32, i32, i32
  }
  func.func @transform_6(%arg0: i32) -> (i32, i32, i32) {
    %c0_i32 = arith.constant 0 : i32
    %c0_i32_0 = arith.constant 0 : i32
    %c0_i32_1 = arith.constant 0 : i32
    %c0_i32_2 = arith.constant 0 : i32
    return %c0_i32, %c0_i32_0, %c0_i32_1 : i32, i32, i32
  }
  func.func @transform_7(%arg0: i32) -> (i32, i32, i32) {
    %c0_i32 = arith.constant 0 : i32
    %c0_i32_0 = arith.constant 0 : i32
    %c0_i32_1 = arith.constant 0 : i32
    %c0_i32_2 = arith.constant 0 : i32
    return %c0_i32, %c0_i32_0, %c0_i32_1 : i32, i32, i32
  }
  func.func @transform_8(%arg0: i32) -> (i32, i32, i32) {
    %c0_i32 = arith.constant 0 : i32
    %c0_i32_0 = arith.constant 0 : i32
    %c0_i32_1 = arith.constant 0 : i32
    %c0_i32_2 = arith.constant 0 : i32
    return %c0_i32, %c0_i32_0, %c0_i32_1 : i32, i32, i32
  }
  func.func @transform_9(%arg0: i32) -> (i32, i32, i32) {
    %c0_i32 = arith.constant 0 : i32
    %c0_i32_0 = arith.constant 0 : i32
    %c0_i32_1 = arith.constant 0 : i32
    %c0_i32_2 = arith.constant 0 : i32
    return %c0_i32, %c0_i32_0, %c0_i32_1 : i32, i32, i32
  }
  func.func @transform_10(%arg0: i32) -> (i32, i32, i32) {
    %c0_i32 = arith.constant 0 : i32
    %c0_i32_0 = arith.constant 0 : i32
    %c0_i32_1 = arith.constant 0 : i32
    %c0_i32_2 = arith.constant 0 : i32
    return %c0_i32, %c0_i32_0, %c0_i32_1 : i32, i32, i32
  }
  func.func @transform_11(%arg0: i32) -> (i32, i32, i32) {
    %c0_i32 = arith.constant 0 : i32
    %c0_i32_0 = arith.constant 0 : i32
    %c0_i32_1 = arith.constant 0 : i32
    %c0_i32_2 = arith.constant 0 : i32
    return %c0_i32, %c0_i32_0, %c0_i32_1 : i32, i32, i32
  }
  func.func @transform_12(%arg0: i32) -> (i32, i32, i32) {
    %c0_i32 = arith.constant 0 : i32
    %c0_i32_0 = arith.constant 0 : i32
    %c0_i32_1 = arith.constant 0 : i32
    %c0_i32_2 = arith.constant 0 : i32
    return %c0_i32, %c0_i32_0, %c0_i32_1 : i32, i32, i32
  }
  func.func @transform_13(%arg0: i32) -> (i32, i32, i32) {
    %c0_i32 = arith.constant 0 : i32
    %c0_i32_0 = arith.constant 0 : i32
    %c0_i32_1 = arith.constant 0 : i32
    %c0_i32_2 = arith.constant 0 : i32
    return %c0_i32, %c0_i32_0, %c0_i32_1 : i32, i32, i32
  }
  func.func @transform_14(%arg0: i32) -> (i32, i32, i32) {
    %c0_i32 = arith.constant 0 : i32
    %c0_i32_0 = arith.constant 0 : i32
    %c0_i32_1 = arith.constant 0 : i32
    %c0_i32_2 = arith.constant 0 : i32
    return %c0_i32, %c0_i32_0, %c0_i32_1 : i32, i32, i32
  }
  func.func @transform_15(%arg0: i32) -> (i32, i32, i32) {
    %c0_i32 = arith.constant 0 : i32
    %c0_i32_0 = arith.constant 0 : i32
    %c0_i32_1 = arith.constant 0 : i32
    return %arg0, %c0_i32, %c0_i32_0 : i32, i32, i32
  }
}

</mosaic_0001>

<llo_original>
// kernel: tpu_custom_call.1
$region0: #{tpu_custom_call.1}
  #allocation0 [shape = 'u32[]', space=smem, size = 0x4, offset = 0x4, fixed_abs, tag = 'smem constant byte address 0x4 - core index']
  #allocation1 [shape = 'u32[72,128]{1,0:T(1,128)}', space=vmem, size = 0x9000, scoped, tag = 'internal scratch']
  %s0 = inlined_call_operand.vmem [shape: f32[8,16,64], index: 0, kind: input, shape index: {}]
  %s1 = inlined_call_operand.hbm [shape: f32[1,1,128], index: 1, kind: input, shape index: {}]
  %s2 = inlined_call_operand.vmem [shape: f32[128,128], index: 2, kind: input, shape index: {}]
  %s3 = inlined_call_operand.vmem [shape: bf16[2,64,192], index: 3, kind: input, shape index: {}]
  %s4 = inlined_call_operand.hbm [shape: f32[2,1,192], index: 4, kind: input, shape index: {}]
  %s5 = inlined_call_operand.hbm [shape: bf16[2,64,64], index: 5, kind: input, shape index: {}]
  %s6 = inlined_call_operand.hbm [shape: f32[2,1,64], index: 6, kind: input, shape index: {}]
  %s7 = inlined_call_operand.hbm [shape: f32[2,1,64], index: 7, kind: input, shape index: {}]
  %s8 = inlined_call_operand.hbm [shape: f32[2,1,64], index: 8, kind: input, shape index: {}]
  %s9 = inlined_call_operand.hbm [shape: bf16[2,64,256], index: 9, kind: input, shape index: {}]
  %s10 = inlined_call_operand.vmem [shape: f32[2,1,256], index: 10, kind: input, shape index: {}]
  %s11 = inlined_call_operand.vmem [shape: bf16[2,256,64], index: 11, kind: input, shape index: {}]
  %s12 = inlined_call_operand.vmem [shape: f32[2,1,64], index: 12, kind: input, shape index: {}]
  %s13 = inlined_call_operand.vmem [shape: f32[2,1,64], index: 13, kind: input, shape index: {}]
  %s14 = inlined_call_operand.hbm [shape: f32[2,1,64], index: 14, kind: input, shape index: {}]
  %s15 = inlined_call_operand.hbm [shape: f32[8,1,64], index: 15, kind: output, shape index: {}]
  %s16 = sld [smem:[#allocation0]]
  $region102: #{tpu_custom_call.1} parent=0
    _
  %s18 = ssub.s32 1, %s16
  %s19 = scalar_select 0, %s18, %s16
  $region1: #{tpu_custom_call.1} parent=0
    #allocation2 [shape = 'u8[512]{0}', space=vmem, size = 0x400, scoped, tag = 'input window, operand 1, single buffered']
    #allocation3 [shape = 's32[1]{0}', space=sflag, size = 0x4, scoped, tag = 'scoped memory for tpu_custom_call.1']
    #allocation4 [shape = 's32[1]{0}', space=sflag, size = 0x4, scoped, tag = 'scoped memory for tpu_custom_call.1']
    #allocation5 [shape = 'u8[2048]{0}', space=vmem, size = 0x800, scoped, tag = 'input window, operand 4, single buffered']
    #allocation6 [shape = 's32[1]{0}', space=sflag, size = 0x4, scoped, tag = 'scoped memory for tpu_custom_call.1']
    #allocation7 [shape = 'u8[32768]{0}', space=vmem, size = 0x8000, scoped, tag = 'input window, operand 5, single buffered']
    #allocation8 [shape = 'u8[1024]{0}', space=vmem, size = 0x400, scoped, tag = 'input window, operand 6, single buffered']
    #allocation9 [shape = 's32[1]{0}', space=sflag, size = 0x4, scoped, tag = 'scoped memory for tpu_custom_call.1']
    #allocation10 [shape = 'u8[1024]{0}', space=vmem, size = 0x400, scoped, tag = 'input window, operand 7, single buffered']
    #allocation11 [shape = 'u8[1024]{0}', space=vmem, size = 0x400, scoped, tag = 'input window, operand 8, single buffered']
    #allocation12 [shape = 's32[1]{0}', space=sflag, size = 0x4, scoped, tag = 'scoped memory for tpu_custom_call.1']
    #allocation13 [shape = 'u8[65536]{0}', space=vmem, size = 0x10000, scoped, tag = 'input window, operand 9, single buffered']
    #allocation14 [shape = 'u8[1024]{0}', space=vmem, size = 0x400, scoped, tag = 'input window, operand 14, single buffered']
    #allocation15 [shape = 's32[1]{0}', space=sflag, size = 0x4, scoped, tag = 'scoped memory for tpu_custom_call.1']
    #allocation16 [shape = 'u8[4096]{0}', space=vmem, size = 0x1000, scoped, tag = 'output window, operand 0, single buffered']
    %20 = vsyncpa [#allocation3], 0
    %21 = vsyncpa [#allocation6], 0
    %22 = vsyncpa [#allocation9], 0
    %23 = vsyncpa [#allocation12], 0
    %24 = vsyncpa [#allocation15], 0
    %25 = vsyncpa [#allocation4], 0
    // Predicated region
    $region2: #{tpu_custom_call.1} parent=1 // pred_check
      _
    $region3: #{tpu_custom_call.1} parent=1 // pred_check_branch
      %27 = sbr.rel (0) target = $region5
    $region4: #{tpu_custom_call.1} parent=1 // pred_region
      _
    $region5: #{tpu_custom_call.1} parent=1 // pred_fallthru
      _
    // Predicated region
    $region6: #{tpu_custom_call.1} parent=1 // pred_check
      _
    $region7: #{tpu_custom_call.1} parent=1 // pred_check_branch
      %29 = sbr.rel (0) target = $region9
    $region8: #{tpu_custom_call.1} parent=1 // pred_region
      %31 = vsyncadd [#allocation3], 0
      %s33 = sshll.u32 %s1, 4
      %s34 = int_to_ptr.hbm [resolvable:$true] %s33
      %s35 = sshll.u32 [#allocation2], 4
      %s36 = int_to_ptr.vmem [resolvable:$true] %s35
      %38 = dma.hbm_to_vmem [thread:$0]  %s34, 16, %s36, [#allocation3]
    $region9: #{tpu_custom_call.1} parent=1 // pred_fallthru
      _
    // Predicated region
    $region10: #{tpu_custom_call.1} parent=1 // pred_check
      _
    $region11: #{tpu_custom_call.1} parent=1 // pred_check_branch
      %40 = sbr.rel (0) target = $region13
    $region12: #{tpu_custom_call.1} parent=1 // pred_region
      _
    $region13: #{tpu_custom_call.1} parent=1 // pred_fallthru
      _
    // Predicated region
    $region14: #{tpu_custom_call.1} parent=1 // pred_check
      _
    $region15: #{tpu_custom_call.1} parent=1 // pred_check_branch
      %42 = sbr.rel (0) target = $region17
    $region16: #{tpu_custom_call.1} parent=1 // pred_region
      _
    $region17: #{tpu_custom_call.1} parent=1 // pred_fallthru
      _
    // Predicated region
    $region18: #{tpu_custom_call.1} parent=1 // pred_check
      _
    $region19: #{tpu_custom_call.1} parent=1 // pred_check_branch
      %44 = sbr.rel (0) target = $region21
    $region20: #{tpu_custom_call.1} parent=1 // pred_region
      %46 = vsyncadd [#allocation6], 0
      %s47 = sshll.u32 %s4, 4
      %s48 = int_to_ptr.hbm [resolvable:$true] %s47
      %s49 = sshll.u32 [#allocation5], 4
      %s50 = int_to_ptr.vmem [resolvable:$true] %s49
      %55 = dma.hbm_to_vmem [thread:$0]  %s48, 64, %s50, [#allocation6], 32, 32, 2
    $region21: #{tpu_custom_call.1} parent=1 // pred_fallthru
      _
    // Predicated region
    $region22: #{tpu_custom_call.1} parent=1 // pred_check
      _
    $region23: #{tpu_custom_call.1} parent=1 // pred_check_branch
      %57 = sbr.rel (0) target = $region25
    $region24: #{tpu_custom_call.1} parent=1 // pred_region
      %59 = vsyncadd [#allocation6], 0
      %s60 = sshll.u32 %s5, 4
      %s61 = int_to_ptr.hbm [resolvable:$true] %s60
      %s62 = sshll.u32 [#allocation7], 4
      %s63 = int_to_ptr.vmem [resolvable:$true] %s62
      %68 = dma.hbm_to_vmem [thread:$0]  %s61, 1024, %s63, [#allocation6], 64, 64, 4
    $region25: #{tpu_custom_call.1} parent=1 // pred_fallthru
      _
    // Predicated region
    $region26: #{tpu_custom_call.1} parent=1 // pred_check
      _
    $region27: #{tpu_custom_call.1} parent=1 // pred_check_branch
      %70 = sbr.rel (0) target = $region29
    $region28: #{tpu_custom_call.1} parent=1 // pred_region
      %72 = vsyncadd [#allocation9], 0
      %s73 = sshll.u32 %s6, 4
      %s74 = int_to_ptr.hbm [resolvable:$true] %s73
      %s75 = sshll.u32 [#allocation8], 4
      %s76 = int_to_ptr.vmem [resolvable:$true] %s75
      %81 = dma.hbm_to_vmem [thread:$0]  %s74, 32, %s76, [#allocation9], 16, 16, 1
    $region29: #{tpu_custom_call.1} parent=1 // pred_fallthru
      _
    // Predicated region
    $region30: #{tpu_custom_call.1} parent=1 // pred_check
      _
    $region31: #{tpu_custom_call.1} parent=1 // pred_check_branch
      %83 = sbr.rel (0) target = $region33
    $region32: #{tpu_custom_call.1} parent=1 // pred_region
      %85 = vsyncadd [#allocation9], 0
      %s86 = sshll.u32 %s7, 4
      %s87 = int_to_ptr.hbm [resolvable:$true] %s86
      %s88 = sshll.u32 [#allocation10], 4
      %s89 = int_to_ptr.vmem [resolvable:$true] %s88
      %94 = dma.hbm_to_vmem [thread:$0]  %s87, 32, %s89, [#allocation9], 16, 16, 1
    $region33: #{tpu_custom_call.1} parent=1 // pred_fallthru
      _
    // Predicated region
    $region34: #{tpu_custom_call.1} parent=1 // pred_check
      _
    $region35: #{tpu_custom_call.1} parent=1 // pred_check_branch
      %96 = sbr.rel (0) target = $region37
    $region36: #{tpu_custom_call.1} parent=1 // pred_region
      %98 = vsyncadd [#allocation12], 0
      %s99 = sshll.u32 %s8, 4
      %s100 = int_to_ptr.hbm [resolvable:$true] %s99
      %s101 = sshll.u32 [#allocation11], 4
      %s102 = int_to_ptr.vmem [resolvable:$true] %s101
      %107 = dma.hbm_to_vmem [thread:$0]  %s100, 32, %s102, [#allocation12], 16, 16, 1
    $region37: #{tpu_custom_call.1} parent=1 // pred_fallthru
      _
    // Predicated region
    $region38: #{tpu_custom_call.1} parent=1 // pred_check
      _
    $region39: #{tpu_custom_call.1} parent=1 // pred_check_branch
      %109 = sbr.rel (0) target = $region41
    $region40: #{tpu_custom_call.1} parent=1 // pred_region
      %111 = vsyncadd [#allocation12], 0
      %s112 = sshll.u32 %s9, 4
      %s113 = int_to_ptr.hbm [resolvable:$true] %s112
      %s114 = sshll.u32 [#allocation13], 4
      %s115 = int_to_ptr.vmem [resolvable:$true] %s114
      %120 = dma.hbm_to_vmem [thread:$0]  %s113, 2048, %s115, [#allocation12], 128, 128, 8
    $region41: #{tpu_custom_call.1} parent=1 // pred_fallthru
      _
    // Predicated region
    $region42: #{tpu_custom_call.1} parent=1 // pred_check
      _
    $region43: #{tpu_custom_call.1} parent=1 // pred_check_branch
      %122 = sbr.rel (0) target = $region45
    $region44: #{tpu_custom_call.1} parent=1 // pred_region
      _
    $region45: #{tpu_custom_call.1} parent=1 // pred_fallthru
      _
    // Predicated region
    $region46: #{tpu_custom_call.1} parent=1 // pred_check
      _
    $region47: #{tpu_custom_call.1} parent=1 // pred_check_branch
      %124 = sbr.rel (0) target = $region49
    $region48: #{tpu_custom_call.1} parent=1 // pred_region
      _
    $region49: #{tpu_custom_call.1} parent=1 // pred_fallthru
      _
    // Predicated region
    $region50: #{tpu_custom_call.1} parent=1 // pred_check
      _
    $region51: #{tpu_custom_call.1} parent=1 // pred_check_branch
      %126 = sbr.rel (0) target = $region53
    $region52: #{tpu_custom_call.1} parent=1 // pred_region
      _
    $region53: #{tpu_custom_call.1} parent=1 // pred_fallthru
      _
    // Predicated region
    $region54: #{tpu_custom_call.1} parent=1 // pred_check
      _
    $region55: #{tpu_custom_call.1} parent=1 // pred_check_branch
      %128 = sbr.rel (0) target = $region57
    $region56: #{tpu_custom_call.1} parent=1 // pred_region
      _
    $region57: #{tpu_custom_call.1} parent=1 // pred_fallthru
      _
    // Predicated region
    $region58: #{tpu_custom_call.1} parent=1 // pred_check
      _
    $region59: #{tpu_custom_call.1} parent=1 // pred_check_branch
      %130 = sbr.rel (0) target = $region61
    $region60: #{tpu_custom_call.1} parent=1 // pred_region
      %132 = vsyncadd [#allocation15], 0
      %s133 = sshll.u32 %s14, 4
      %s134 = int_to_ptr.hbm [resolvable:$true] %s133
      %s135 = sshll.u32 [#allocation14], 4
      %s136 = int_to_ptr.vmem [resolvable:$true] %s135
      %141 = dma.hbm_to_vmem [thread:$0]  %s134, 32, %s136, [#allocation15], 16, 16, 1
    $region61: #{tpu_custom_call.1} parent=1 // pred_fallthru
      _
    // Predicated region
    $region62: #{tpu_custom_call.1} parent=1 // pred_check
      _
    $region63: #{tpu_custom_call.1} parent=1 // pred_check_branch
      %143 = sbr.rel (0) target = $region65
    $region64: #{tpu_custom_call.1} parent=1 // pred_region
      %145 = dma.done [#allocation3], 16
    $region65: #{tpu_custom_call.1} parent=1 // pred_fallthru
      _
    // Predicated region
    $region66: #{tpu_custom_call.1} parent=1 // pred_check
      _
    $region67: #{tpu_custom_call.1} parent=1 // pred_check_branch
      %147 = sbr.rel (0) target = $region69
    $region68: #{tpu_custom_call.1} parent=1 // pred_region
      %149 = dma.done [#allocation6], 64
    $region69: #{tpu_custom_call.1} parent=1 // pred_fallthru
      _
    // Predicated region
    $region70: #{tpu_custom_call.1} parent=1 // pred_check
      _
    $region71: #{tpu_custom_call.1} parent=1 // pred_check_branch
      %151 = sbr.rel (0) target = $region73
    $region72: #{tpu_custom_call.1} parent=1 // pred_region
      %153 = dma.done [#allocation6], 1024
    $region73: #{tpu_custom_call.1} parent=1 // pred_fallthru
      _
    // Predicated region
    $region74: #{tpu_custom_call.1} parent=1 // pred_check
      _
    $region75: #{tpu_custom_call.1} parent=1 // pred_check_branch
      %155 = sbr.rel (0) target = $region77
    $region76: #{tpu_custom_call.1} parent=1 // pred_region
      %157 = dma.done [#allocation9], 32
    $region77: #{tpu_custom_call.1} parent=1 // pred_fallthru
      _
    // Predicated region
    $region78: #{tpu_custom_call.1} parent=1 // pred_check
      _
    $region79: #{tpu_custom_call.1} parent=1 // pred_check_branch
      %159 = sbr.rel (0) target = $region81
    $region80: #{tpu_custom_call.1} parent=1 // pred_region
      %161 = dma.done [#allocation9], 32
    $region81: #{tpu_custom_call.1} parent=1 // pred_fallthru
      _
    // Predicated region
    $region82: #{tpu_custom_call.1} parent=1 // pred_check
      _
    $region83: #{tpu_custom_call.1} parent=1 // pred_check_branch
      %163 = sbr.rel (0) target = $region85
    $region84: #{tpu_custom_call.1} parent=1 // pred_region
      %165 = dma.done [#allocation12], 32
    $region85: #{tpu_custom_call.1} parent=1 // pred_fallthru
      _
    // Predicated region
    $region86: #{tpu_custom_call.1} parent=1 // pred_check
      _
    $region87: #{tpu_custom_call.1} parent=1 // pred_check_branch
      %167 = sbr.rel (0) target = $region89
    $region88: #{tpu_custom_call.1} parent=1 // pred_region
      %169 = dma.done [#allocation12], 2048
    $region89: #{tpu_custom_call.1} parent=1 // pred_fallthru
      _
    // Predicated region
    $region90: #{tpu_custom_call.1} parent=1 // pred_check
      _
    $region91: #{tpu_custom_call.1} parent=1 // pred_check_branch
      %171 = sbr.rel (0) target = $region93
    $region92: #{tpu_custom_call.1} parent=1 // pred_region
      %173 = dma.done [#allocation15], 32
    $region93: #{tpu_custom_call.1} parent=1 // pred_fallthru
      _
    %v175 = vld [vmem:[%s0] sm:$0xff]
    %v176 = vld [vmem:[%s0 + $0x8] sm:$0xff]
    %v177 = vld [vmem:[%s0 + $0x10] sm:$0xff]
    %v178 = vld [vmem:[%s0 + $0x18] sm:$0xff]
    %v179 = vld [vmem:[%s0 + $0x20] sm:$0xff]
    %v180 = vld [vmem:[%s0 + $0x28] sm:$0xff]
    %v181 = vld [vmem:[%s0 + $0x30] sm:$0xff]
    %v182 = vld [vmem:[%s0 + $0x38] sm:$0xff]
    %v183 = vld [vmem:[%s0 + $0x40] sm:$0xff]
    %v184 = vld [vmem:[%s0 + $0x48] sm:$0xff]
    %v185 = vld [vmem:[%s0 + $0x50] sm:$0xff]
    %v186 = vld [vmem:[%s0 + $0x58] sm:$0xff]
    %v187 = vld [vmem:[%s0 + $0x60] sm:$0xff]
    %v188 = vld [vmem:[%s0 + $0x68] sm:$0xff]
    %v189 = vld [vmem:[%s0 + $0x70] sm:$0xff]
    %v190 = vld [vmem:[%s0 + $0x78] sm:$0xff]
    %v191 = vld [vmem:[%s2] sm:$0xff]
    %v192 = vld [vmem:[%s2 + $0x8] sm:$0xff]
    %v193 = vld [vmem:[%s2 + $0x10] sm:$0xff]
    %v194 = vld [vmem:[%s2 + $0x18] sm:$0xff]
    %v195 = vld [vmem:[%s2 + $0x20] sm:$0xff]
    %v196 = vld [vmem:[%s2 + $0x28] sm:$0xff]
    %v197 = vld [vmem:[%s2 + $0x30] sm:$0xff]
    %v198 = vld [vmem:[%s2 + $0x38] sm:$0xff]
    %v199 = vld [vmem:[%s2 + $0x40] sm:$0xff]
    %v200 = vld [vmem:[%s2 + $0x48] sm:$0xff]
    %v201 = vld [vmem:[%s2 + $0x50] sm:$0xff]
    %v202 = vld [vmem:[%s2 + $0x58] sm:$0xff]
    %v203 = vld [vmem:[%s2 + $0x60] sm:$0xff]
    %v204 = vld [vmem:[%s2 + $0x68] sm:$0xff]
    %v205 = vld [vmem:[%s2 + $0x70] sm:$0xff]
    %v206 = vld [vmem:[%s2 + $0x78] sm:$0xff]
    %v207 = vld [vmem:[#allocation2] sm:$0x1]
    %v209 = vperm.slane %v207, 0
    %v211 = vadd.f32 %v191, %v209
    %v212 = vadd.f32 %v192, %v209
    %v213 = vadd.f32 %v193, %v209
    %v214 = vadd.f32 %v194, %v209
    %v215 = vadd.f32 %v195, %v209
    %v216 = vadd.f32 %v196, %v209
    %v217 = vadd.f32 %v197, %v209
    %v218 = vadd.f32 %v198, %v209
    %v219 = vadd.f32 %v199, %v209
    %v220 = vadd.f32 %v200, %v209
    %v221 = vadd.f32 %v201, %v209
    %v222 = vadd.f32 %v202, %v209
    %v223 = vadd.f32 %v203, %v209
    %v224 = vadd.f32 %v204, %v209
    %v225 = vadd.f32 %v205, %v209
    %v226 = vadd.f32 %v206, %v209
    %v227 = vpack.c.bf16 %v176, %v175
    %v228 = vpack.c.bf16 %v178, %v177
    %v229 = vpack.c.bf16 %v180, %v179
    %v230 = vpack.c.bf16 %v182, %v181
    %v231 = vpack.c.bf16 %v184, %v183
    %v232 = vpack.c.bf16 %v186, %v185
    %v233 = vpack.c.bf16 %v188, %v187
    %v234 = vpack.c.bf16 %v190, %v189
    %v235 = vld [vmem:[%s3] sm:$0xff]
    %v236 = vld [vmem:[%s3 + $0x8] sm:$0xff]
    %v237 = vld [vmem:[%s3 + $0x10] sm:$0xff]
    %v238 = vld [vmem:[%s3 + $0x18] sm:$0xff]
    %v239 = vld [vmem:[%s3 + $0x20] sm:$0xff]
    %v240 = vld [vmem:[%s3 + $0x28] sm:$0xff]
    %v241 = vld [vmem:[%s3 + $0x30] sm:$0xff]
    %v242 = vld [vmem:[%s3 + $0x38] sm:$0xff]
    %v243 = vld [vmem:[#allocation5] sm:$0x3]
    %v245 = vperm.slane %v243, 0
    %v246 = vperm.slane %v243, 1
    %v257 = vunpack.c.l.b16 %v235
    %v258 = vunpack.c.h.b16 %v235
    %v259 = vunpack.c.l.b16 %v236
    %v260 = vunpack.c.h.b16 %v236
    %v261 = vunpack.c.l.b16 %v237
    %v262 = vunpack.c.h.b16 %v237
    %v263 = vunpack.c.l.b16 %v238
    %v264 = vunpack.c.h.b16 %v238
    %v265 = vunpack.c.l.b16 %v239
    %v266 = vunpack.c.h.b16 %v239
    %v267 = vunpack.c.l.b16 %v240
    %v268 = vunpack.c.h.b16 %v240
    %v269 = vunpack.c.l.b16 %v241
    %v270 = vunpack.c.h.b16 %v241
    %v271 = vunpack.c.l.b16 %v242
    %v272 = vunpack.c.h.b16 %v242
    %v273 = vpack.c.b16 %v259, %v257
    %v274 = vpack.c.b16 %v260, %v258
    %v275 = vpack.c.b16 %v263, %v261
    %v276 = vpack.c.b16 %v264, %v262
    %v277 = vpack.c.b16 %v267, %v265
    %v278 = vpack.c.b16 %v268, %v266
    %v279 = vpack.c.b16 %v271, %v269
    %v280 = vpack.c.b16 %v272, %v270
    %vm289 = vcmask 523264
    %v291 = vsel %vm289, %v227, 0
    %v294 = vsel %vm289, %v228, 0
    %v297 = vsel %vm289, %v229, 0
    %v300 = vsel %vm289, %v230, 0
    %v303 = vsel %vm289, %v231, 0
    %v306 = vsel %vm289, %v232, 0
    %v309 = vsel %vm289, %v233, 0
    %v312 = vsel %vm289, %v234, 0
    %314 = vmatpush.bf16.msra.mxu0 0
    %315 = vmatpush.bf16.msra.mxu0 0
    %316 = vmatpush.bf16.msra.mxu0 0
    %317 = vmatpush.bf16.msra.mxu0 0
    %318 = vmatpush.bf16.msra.mxu0 %v279
    %319 = vmatpush.bf16.msra.mxu0 %v277
    %320 = vmatpush.bf16.msra.mxu0 %v275
    %321 = vmatpush.bf16.msra.mxu0 %v273
    %322 = vmatmul.bf16.gmra.mxu0 %v291
    %v323 = vpop.f32.mrf.mxu0
    %v324 = vadd.f32 %v245, %v323
    %v325 = vpop.f32.mrf.mxu0
    %v326 = vadd.f32 %v245, %v325
    %327 = vmatmul.bf16.gmra.mxu0 %v294
    %v328 = vpop.f32.mrf.mxu0
    %v329 = vadd.f32 %v245, %v328
    %v330 = vpop.f32.mrf.mxu0
    %v331 = vadd.f32 %v245, %v330
    %332 = vmatmul.bf16.gmra.mxu0 %v297
    %v333 = vpop.f32.mrf.mxu0
    %v334 = vadd.f32 %v245, %v333
    %v335 = vpop.f32.mrf.mxu0
    %v336 = vadd.f32 %v245, %v335
    %337 = vmatmul.bf16.gmra.mxu0 %v300
    %v338 = vpop.f32.mrf.mxu0
    %v339 = vadd.f32 %v245, %v338
    %v340 = vpop.f32.mrf.mxu0
    %v341 = vadd.f32 %v245, %v340
    %342 = vmatmul.bf16.gmra.mxu0 %v303
    %v343 = vpop.f32.mrf.mxu0
    %v344 = vadd.f32 %v245, %v343
    %v345 = vpop.f32.mrf.mxu0
    %v346 = vadd.f32 %v245, %v345
    %347 = vmatmul.bf16.gmra.mxu0 %v306
    %v348 = vpop.f32.mrf.mxu0
    %v349 = vadd.f32 %v245, %v348
    %v350 = vpop.f32.mrf.mxu0
    %v351 = vadd.f32 %v245, %v350
    %352 = vmatmul.bf16.gmra.mxu0 %v309
    %v353 = vpop.f32.mrf.mxu0
    %v354 = vadd.f32 %v245, %v353
    %v355 = vpop.f32.mrf.mxu0
    %v356 = vadd.f32 %v245, %v355
    %357 = vmatmul.bf16.gmra.mxu0 %v312
    %v358 = vpop.f32.mrf.mxu0
    %v359 = vadd.f32 %v245, %v358
    %v360 = vpop.f32.mrf.mxu0
    %v361 = vadd.f32 %v245, %v360
    %362 = vdwg.mxu0
    %363 = vmatpush.bf16.msra.mxu0 0
    %364 = vmatpush.bf16.msra.mxu0 0
    %365 = vmatpush.bf16.msra.mxu0 0
    %366 = vmatpush.bf16.msra.mxu0 0
    %367 = vmatpush.bf16.msra.mxu0 %v280
    %368 = vmatpush.bf16.msra.mxu0 %v278
    %369 = vmatpush.bf16.msra.mxu0 %v276
    %370 = vmatpush.bf16.msra.mxu0 %v274
    %371 = vmatmul.bf16.gmra.mxu0 %v291
    %v372 = vpop.f32.mrf.mxu0
    %v373 = vadd.f32 %v246, %v372
    %v374 = vpop.f32.mrf.mxu0
    %v375 = vadd.f32 %v246, %v374
    %376 = vmatmul.bf16.gmra.mxu0 %v294
    %v377 = vpop.f32.mrf.mxu0
    %v378 = vadd.f32 %v246, %v377
    %v379 = vpop.f32.mrf.mxu0
    %v380 = vadd.f32 %v246, %v379
    %381 = vmatmul.bf16.gmra.mxu0 %v297
    %v382 = vpop.f32.mrf.mxu0
    %v383 = vadd.f32 %v246, %v382
    %v384 = vpop.f32.mrf.mxu0
    %v385 = vadd.f32 %v246, %v384
    %386 = vmatmul.bf16.gmra.mxu0 %v300
    %v387 = vpop.f32.mrf.mxu0
    %v388 = vadd.f32 %v246, %v387
    %v389 = vpop.f32.mrf.mxu0
    %v390 = vadd.f32 %v246, %v389
    %391 = vmatmul.bf16.gmra.mxu0 %v303
    %v392 = vpop.f32.mrf.mxu0
    %v393 = vadd.f32 %v246, %v392
    %v394 = vpop.f32.mrf.mxu0
    %v395 = vadd.f32 %v246, %v394
    %396 = vmatmul.bf16.gmra.mxu0 %v306
    %v397 = vpop.f32.mrf.mxu0
    %v398 = vadd.f32 %v246, %v397
    %v399 = vpop.f32.mrf.mxu0
    %v400 = vadd.f32 %v246, %v399
    %401 = vmatmul.bf16.gmra.mxu0 %v309
    %v402 = vpop.f32.mrf.mxu0
    %v403 = vadd.f32 %v246, %v402
    %v404 = vpop.f32.mrf.mxu0
    %v405 = vadd.f32 %v246, %v404
    %406 = vmatmul.bf16.gmra.mxu0 %v312
    %v407 = vpop.f32.mrf.mxu0
    %v408 = vadd.f32 %v246, %v407
    %v409 = vpop.f32.mrf.mxu0
    %v410 = vadd.f32 %v246, %v409
    %411 = vdwg.mxu0
    %v412 = vpack.c.bf16 %v373, %v324
    %v413 = vpack.c.bf16 %v375, %v326
    %v414 = vpack.c.bf16 %v378, %v329
    %v415 = vpack.c.bf16 %v380, %v331
    %v416 = vpack.c.bf16 %v383, %v334
    %v417 = vpack.c.bf16 %v385, %v336
    %v418 = vpack.c.bf16 %v388, %v339
    %v419 = vpack.c.bf16 %v390, %v341
    %v420 = vpack.c.bf16 %v393, %v344
    %v421 = vpack.c.bf16 %v395, %v346
    %v422 = vpack.c.bf16 %v398, %v349
    %v423 = vpack.c.bf16 %v400, %v351
    %v424 = vpack.c.bf16 %v403, %v354
    %v425 = vpack.c.bf16 %v405, %v356
    %v426 = vpack.c.bf16 %v408, %v359
    %v427 = vpack.c.bf16 %v410, %v361
    %v444 = vunpack.c.l.b16 %v412
    %v445 = vunpack.c.l.b16 %v413
    %v446 = vunpack.c.l.b16 %v414
    %v447 = vunpack.c.l.b16 %v415
    %v448 = vunpack.c.l.b16 %v416
    %v449 = vunpack.c.l.b16 %v417
    %v450 = vunpack.c.l.b16 %v418
    %v451 = vunpack.c.l.b16 %v419
    %v452 = vunpack.c.l.b16 %v420
    %v453 = vunpack.c.l.b16 %v421
    %v454 = vunpack.c.l.b16 %v422
    %v455 = vunpack.c.l.b16 %v423
    %v456 = vunpack.c.l.b16 %v424
    %v457 = vunpack.c.l.b16 %v425
    %v458 = vunpack.c.l.b16 %v426
    %v459 = vunpack.c.l.b16 %v427
    %v460 = vpack.c.b16 %v445, %v444
    %v461 = vpack.c.b16 %v447, %v446
    %v462 = vpack.c.b16 %v449, %v448
    %v463 = vpack.c.b16 %v451, %v450
    %v464 = vpack.c.b16 %v453, %v452
    %v465 = vpack.c.b16 %v455, %v454
    %v466 = vpack.c.b16 %v457, %v456
    %v467 = vpack.c.b16 %v459, %v458
    %468 = vrot.lane.b32.xlu0 %v460, 64
    %v469 = vpop.permute.xlu0 %468
    %470 = vrot.lane.b32.xlu0 %v461, 64
    %v471 = vpop.permute.xlu0 %470
    %472 = vrot.lane.b32.xlu0 %v462, 64
    %v473 = vpop.permute.xlu0 %472
    %474 = vrot.lane.b32.xlu0 %v463, 64
    %v475 = vpop.permute.xlu0 %474
    %476 = vrot.lane.b32.xlu0 %v464, 64
    %v477 = vpop.permute.xlu0 %476
    %478 = vrot.lane.b32.xlu0 %v465, 64
    %v479 = vpop.permute.xlu0 %478
    %480 = vrot.lane.b32.xlu0 %v466, 64
    %v481 = vpop.permute.xlu0 %480
    %482 = vrot.lane.b32.xlu0 %v467, 64
    %v483 = vpop.permute.xlu0 %482
    %v485 = vsel %vm289, %v460, 0
    %v488 = vsel %vm289, %v461, 0
    %v491 = vsel %vm289, %v462, 0
    %v494 = vsel %vm289, %v463, 0
    %v497 = vsel %vm289, %v464, 0
    %v500 = vsel %vm289, %v465, 0
    %v503 = vsel %vm289, %v466, 0
    %v506 = vsel %vm289, %v467, 0
    %v509 = vsel %vm289, %v469, 0
    %v512 = vsel %vm289, %v471, 0
    %v515 = vsel %vm289, %v473, 0
    %v518 = vsel %vm289, %v475, 0
    %v521 = vsel %vm289, %v477, 0
    %v524 = vsel %vm289, %v479, 0
    %v527 = vsel %vm289, %v481, 0
    %v530 = vsel %vm289, %v483, 0
    %532 = vmatpush.bf16.xpose.msra.mxu0 %v530
    %533 = vmatpush.bf16.xpose.msra.mxu0 %v527
    %534 = vmatpush.bf16.xpose.msra.mxu0 %v524
    %535 = vmatpush.bf16.xpose.msra.mxu0 %v521
    %536 = vmatpush.bf16.xpose.msra.mxu0 %v518
    %537 = vmatpush.bf16.xpose.msra.mxu0 %v515
    %538 = vmatpush.bf16.xpose.msra.mxu0 %v512
    %539 = vmatpush.bf16.xpose.msra.mxu0 %v509
    %540 = vmatmul.bf16.gmra.mxu0 %v485
    %v541 = vpop.f32.mrf.mxu0
    %v542 = vadd.f32 %v211, %v541
    %v543 = vpop.f32.mrf.mxu0
    %v544 = vadd.f32 %v212, %v543
    %545 = vmatmul.bf16.gmra.mxu0 %v488
    %v546 = vpop.f32.mrf.mxu0
    %v547 = vadd.f32 %v213, %v546
    %v548 = vpop.f32.mrf.mxu0
    %v549 = vadd.f32 %v214, %v548
    %550 = vmatmul.bf16.gmra.mxu0 %v491
    %v551 = vpop.f32.mrf.mxu0
    %v552 = vadd.f32 %v215, %v551
    %v553 = vpop.f32.mrf.mxu0
    %v554 = vadd.f32 %v216, %v553
    %555 = vmatmul.bf16.gmra.mxu0 %v494
    %v556 = vpop.f32.mrf.mxu0
    %v557 = vadd.f32 %v217, %v556
    %v558 = vpop.f32.mrf.mxu0
    %v559 = vadd.f32 %v218, %v558
    %560 = vmatmul.bf16.gmra.mxu0 %v497
    %v561 = vpop.f32.mrf.mxu0
    %v562 = vadd.f32 %v219, %v561
    %v563 = vpop.f32.mrf.mxu0
    %v564 = vadd.f32 %v220, %v563
    %565 = vmatmul.bf16.gmra.mxu0 %v500
    %v566 = vpop.f32.mrf.mxu0
    %v567 = vadd.f32 %v221, %v566
    %v568 = vpop.f32.mrf.mxu0
    %v569 = vadd.f32 %v222, %v568
    %570 = vmatmul.bf16.gmra.mxu0 %v503
    %v571 = vpop.f32.mrf.mxu0
    %v572 = vadd.f32 %v223, %v571
    %v573 = vpop.f32.mrf.mxu0
    %v574 = vadd.f32 %v224, %v573
    %575 = vmatmul.bf16.gmra.mxu0 %v506
    %v576 = vpop.f32.mrf.mxu0
    %v577 = vadd.f32 %v225, %v576
    %v578 = vpop.f32.mrf.mxu0
    %v579 = vadd.f32 %v226, %v578
    %580 = vdwg.mxu0
    %581 = vmax.xlane.f32.xlu0 %v542
    %v582 = vpop.xlane.xlu0 %581
    %583 = vmax.xlane.f32.xlu0 %v544
    %v584 = vpop.xlane.xlu0 %583
    %585 = vmax.xlane.f32.xlu0 %v547
    %v586 = vpop.xlane.xlu0 %585
    %587 = vmax.xlane.f32.xlu0 %v549
    %v588 = vpop.xlane.xlu0 %587
    %589 = vmax.xlane.f32.xlu0 %v552
    %v590 = vpop.xlane.xlu0 %589
    %591 = vmax.xlane.f32.xlu0 %v554
    %v592 = vpop.xlane.xlu0 %591
    %593 = vmax.xlane.f32.xlu0 %v557
    %v594 = vpop.xlane.xlu0 %593
    %595 = vmax.xlane.f32.xlu0 %v559
    %v596 = vpop.xlane.xlu0 %595
    %597 = vmax.xlane.f32.xlu0 %v562
    %v598 = vpop.xlane.xlu0 %597
    %599 = vmax.xlane.f32.xlu0 %v564
    %v600 = vpop.xlane.xlu0 %599
    %601 = vmax.xlane.f32.xlu0 %v567
    %v602 = vpop.xlane.xlu0 %601
    %603 = vmax.xlane.f32.xlu0 %v569
    %v604 = vpop.xlane.xlu0 %603
    %605 = vmax.xlane.f32.xlu0 %v572
    %v606 = vpop.xlane.xlu0 %605
    %607 = vmax.xlane.f32.xlu0 %v574
    %v608 = vpop.xlane.xlu0 %607
    %609 = vmax.xlane.f32.xlu0 %v577
    %v610 = vpop.xlane.xlu0 %609
    %611 = vmax.xlane.f32.xlu0 %v579
    %v612 = vpop.xlane.xlu0 %611
    %v613 = vsub.f32 %v542, %v582
    %v614 = vsub.f32 %v544, %v584
    %v615 = vsub.f32 %v547, %v586
    %v616 = vsub.f32 %v549, %v588
    %v617 = vsub.f32 %v552, %v590
    %v618 = vsub.f32 %v554, %v592
    %v619 = vsub.f32 %v557, %v594
    %v620 = vsub.f32 %v559, %v596
    %v621 = vsub.f32 %v562, %v598
    %v622 = vsub.f32 %v564, %v600
    %v623 = vsub.f32 %v567, %v602
    %v624 = vsub.f32 %v569, %v604
    %v625 = vsub.f32 %v572, %v606
    %v626 = vsub.f32 %v574, %v608
    %v627 = vsub.f32 %v577, %v610
    %v628 = vsub.f32 %v579, %v612
    %v629 = vmul.f32 %v613, 1.442695
    %v630 = vpow.pop %v629
    %v631 = vmul.f32 %v614, 1.442695
    %v632 = vpow.pop %v631
    %v633 = vmul.f32 %v615, 1.442695
    %v634 = vpow.pop %v633
    %v635 = vmul.f32 %v616, 1.442695
    %v636 = vpow.pop %v635
    %v637 = vmul.f32 %v617, 1.442695
    %v638 = vpow.pop %v637
    %v639 = vmul.f32 %v618, 1.442695
    %v640 = vpow.pop %v639
    %v641 = vmul.f32 %v619, 1.442695
    %v642 = vpow.pop %v641
    %v643 = vmul.f32 %v620, 1.442695
    %v644 = vpow.pop %v643
    %v645 = vmul.f32 %v621, 1.442695
    %v646 = vpow.pop %v645
    %v647 = vmul.f32 %v622, 1.442695
    %v648 = vpow.pop %v647
    %v649 = vmul.f32 %v623, 1.442695
    %v650 = vpow.pop %v649
    %v651 = vmul.f32 %v624, 1.442695
    %v652 = vpow.pop %v651
    %v653 = vmul.f32 %v625, 1.442695
    %v654 = vpow.pop %v653
    %v655 = vmul.f32 %v626, 1.442695
    %v656 = vpow.pop %v655
    %v657 = vmul.f32 %v627, 1.442695
    %v658 = vpow.pop %v657
    %v659 = vmul.f32 %v628, 1.442695
    %v660 = vpow.pop %v659
    %661 = vadd.xlane.f32.xlu0 %v630
    %v662 = vpop.xlane.xlu0 %661
    %663 = vadd.xlane.f32.xlu0 %v632
    %v664 = vpop.xlane.xlu0 %663
    %665 = vadd.xlane.f32.xlu0 %v634
    %v666 = vpop.xlane.xlu0 %665
    %667 = vadd.xlane.f32.xlu0 %v636
    %v668 = vpop.xlane.xlu0 %667
    %669 = vadd.xlane.f32.xlu0 %v638
    %v670 = vpop.xlane.xlu0 %669
    %671 = vadd.xlane.f32.xlu0 %v640
    %v672 = vpop.xlane.xlu0 %671
    %673 = vadd.xlane.f32.xlu0 %v642
    %v674 = vpop.xlane.xlu0 %673
    %675 = vadd.xlane.f32.xlu0 %v644
    %v676 = vpop.xlane.xlu0 %675
    %677 = vadd.xlane.f32.xlu0 %v646
    %v678 = vpop.xlane.xlu0 %677
    %679 = vadd.xlane.f32.xlu0 %v648
    %v680 = vpop.xlane.xlu0 %679
    %681 = vadd.xlane.f32.xlu0 %v650
    %v682 = vpop.xlane.xlu0 %681
    %683 = vadd.xlane.f32.xlu0 %v652
    %v684 = vpop.xlane.xlu0 %683
    %685 = vadd.xlane.f32.xlu0 %v654
    %v686 = vpop.xlane.xlu0 %685
    %687 = vadd.xlane.f32.xlu0 %v656
    %v688 = vpop.xlane.xlu0 %687
    %689 = vadd.xlane.f32.xlu0 %v658
    %v690 = vpop.xlane.xlu0 %689
    %691 = vadd.xlane.f32.xlu0 %v660
    %v692 = vpop.xlane.xlu0 %691
    %v693 = vrcp.pop %v662
    %v694 = vrcp.pop %v664
    %v695 = vrcp.pop %v666
    %v696 = vrcp.pop %v668
    %v697 = vrcp.pop %v670
    %v698 = vrcp.pop %v672
    %v699 = vrcp.pop %v674
    %v700 = vrcp.pop %v676
    %v701 = vrcp.pop %v678
    %v702 = vrcp.pop %v680
    %v703 = vrcp.pop %v682
    %v704 = vrcp.pop %v684
    %v705 = vrcp.pop %v686
    %v706 = vrcp.pop %v688
    %v707 = vrcp.pop %v690
    %v708 = vrcp.pop %v692
    %v709 = vmul.f32 %v630, %v693
    %v710 = vmul.f32 %v632, %v694
    %v711 = vmul.f32 %v634, %v695
    %v712 = vmul.f32 %v636, %v696
    %v713 = vmul.f32 %v638, %v697
    %v714 = vmul.f32 %v640, %v698
    %v715 = vmul.f32 %v642, %v699
    %v716 = vmul.f32 %v644, %v700
    %v717 = vmul.f32 %v646, %v701
    %v718 = vmul.f32 %v648, %v702
    %v719 = vmul.f32 %v650, %v703
    %v720 = vmul.f32 %v652, %v704
    %v721 = vmul.f32 %v654, %v705
    %v722 = vmul.f32 %v656, %v706
    %v723 = vmul.f32 %v658, %v707
    %v724 = vmul.f32 %v660, %v708
    %v725 = vpack.c.bf16 %v710, %v709
    %v726 = vpack.c.bf16 %v712, %v711
    %v727 = vpack.c.bf16 %v714, %v713
    %v728 = vpack.c.bf16 %v716, %v715
    %v729 = vpack.c.bf16 %v718, %v717
    %v730 = vpack.c.bf16 %v720, %v719
    %v731 = vpack.c.bf16 %v722, %v721
    %v732 = vpack.c.bf16 %v724, %v723
    %v733 = vunpack.c.h.b16 %v412
    %v734 = vunpack.c.h.b16 %v413
    %v735 = vunpack.c.h.b16 %v414
    %v736 = vunpack.c.h.b16 %v415
    %v737 = vunpack.c.h.b16 %v416
    %v738 = vunpack.c.h.b16 %v417
    %v739 = vunpack.c.h.b16 %v418
    %v740 = vunpack.c.h.b16 %v419
    %v741 = vunpack.c.h.b16 %v420
    %v742 = vunpack.c.h.b16 %v421
    %v743 = vunpack.c.h.b16 %v422
    %v744 = vunpack.c.h.b16 %v423
    %v745 = vunpack.c.h.b16 %v424
    %v746 = vunpack.c.h.b16 %v425
    %v747 = vunpack.c.h.b16 %v426
    %v748 = vunpack.c.h.b16 %v427
    %v749 = vpack.c.b16 %v734, %v733
    %v750 = vpack.c.b16 %v736, %v735
    %v751 = vpack.c.b16 %v738, %v737
    %v752 = vpack.c.b16 %v740, %v739
    %v753 = vpack.c.b16 %v742, %v741
    %v754 = vpack.c.b16 %v744, %v743
    %v755 = vpack.c.b16 %v746, %v745
    %v756 = vpack.c.b16 %v748, %v747
    %765 = vmatpush.bf16.msra.mxu0 %v756
    %766 = vmatpush.bf16.msra.mxu0 %v755
    %767 = vmatpush.bf16.msra.mxu0 %v754
    %768 = vmatpush.bf16.msra.mxu0 %v753
    %769 = vmatpush.bf16.msra.mxu0 %v752
    %770 = vmatpush.bf16.msra.mxu0 %v751
    %771 = vmatpush.bf16.msra.mxu0 %v750
    %772 = vmatpush.bf16.msra.mxu0 %v749
    %773 = vmatmul.bf16.gmra.mxu0 %v725
    %v774 = vpop.f32.mrf.mxu0
    %v775 = vadd.f32 0.0, %v774
    %v776 = vpop.f32.mrf.mxu0
    %v777 = vadd.f32 0.0, %v776
    %778 = vmatmul.bf16.gmra.mxu0 %v726
    %v779 = vpop.f32.mrf.mxu0
    %v780 = vadd.f32 0.0, %v779
    %v781 = vpop.f32.mrf.mxu0
    %v782 = vadd.f32 0.0, %v781
    %783 = vmatmul.bf16.gmra.mxu0 %v727
    %v784 = vpop.f32.mrf.mxu0
    %v785 = vadd.f32 0.0, %v784
    %v786 = vpop.f32.mrf.mxu0
    %v787 = vadd.f32 0.0, %v786
    %788 = vmatmul.bf16.gmra.mxu0 %v728
    %v789 = vpop.f32.mrf.mxu0
    %v790 = vadd.f32 0.0, %v789
    %v791 = vpop.f32.mrf.mxu0
    %v792 = vadd.f32 0.0, %v791
    %793 = vmatmul.bf16.gmra.mxu0 %v729
    %v794 = vpop.f32.mrf.mxu0
    %v795 = vadd.f32 0.0, %v794
    %v796 = vpop.f32.mrf.mxu0
    %v797 = vadd.f32 0.0, %v796
    %798 = vmatmul.bf16.gmra.mxu0 %v730
    %v799 = vpop.f32.mrf.mxu0
    %v800 = vadd.f32 0.0, %v799
    %v801 = vpop.f32.mrf.mxu0
    %v802 = vadd.f32 0.0, %v801
    %803 = vmatmul.bf16.gmra.mxu0 %v731
    %v804 = vpop.f32.mrf.mxu0
    %v805 = vadd.f32 0.0, %v804
    %v806 = vpop.f32.mrf.mxu0
    %v807 = vadd.f32 0.0, %v806
    %808 = vmatmul.bf16.gmra.mxu0 %v732
    %v809 = vpop.f32.mrf.mxu0
    %v810 = vadd.f32 0.0, %v809
    %v811 = vpop.f32.mrf.mxu0
    %v812 = vadd.f32 0.0, %v811
    %813 = vdwg.mxu0
    %v814 = vpack.c.bf16 %v777, %v775
    %v815 = vpack.c.bf16 %v782, %v780
    %v816 = vpack.c.bf16 %v787, %v785
    %v817 = vpack.c.bf16 %v792, %v790
    %v818 = vpack.c.bf16 %v797, %v795
    %v819 = vpack.c.bf16 %v802, %v800
    %v820 = vpack.c.bf16 %v807, %v805
    %v821 = vpack.c.bf16 %v812, %v810
    %v822 = vld [vmem:[#allocation7] sm:$0xf]
    %v823 = vld [vmem:[#allocation7 + $0x4] sm:$0xf]
    %v824 = vld [vmem:[#allocation7 + $0x8] sm:$0xf]
    %v825 = vld [vmem:[#allocation7 + $0xc] sm:$0xf]
    %v826 = vld [vmem:[#allocation7 + $0x10] sm:$0xf]
    %v827 = vld [vmem:[#allocation7 + $0x14] sm:$0xf]
    %v828 = vld [vmem:[#allocation7 + $0x18] sm:$0xf]
    %v829 = vld [vmem:[#allocation7 + $0x1c] sm:$0xf]
    %v830 = vld [vmem:[#allocation8] sm:$0x1]
    %v832 = vperm.slane %v830, 0
    %v842 = vunpack.c.l.b16 %v822
    %v843 = vunpack.c.l.b16 %v823
    %v844 = vunpack.c.l.b16 %v824
    %v845 = vunpack.c.l.b16 %v825
    %v846 = vunpack.c.l.b16 %v826
    %v847 = vunpack.c.l.b16 %v827
    %v848 = vunpack.c.l.b16 %v828
    %v849 = vunpack.c.l.b16 %v829
    %v850 = vpack.c.b16 %v843, %v842
    %v851 = vpack.c.b16 %v845, %v844
    %v852 = vpack.c.b16 %v847, %v846
    %v853 = vpack.c.b16 %v849, %v848
    %v859 = vsel %vm289, %v814, 0
    %v862 = vsel %vm289, %v815, 0
    %v865 = vsel %vm289, %v816, 0
    %v868 = vsel %vm289, %v817, 0
    %v871 = vsel %vm289, %v818, 0
    %v874 = vsel %vm289, %v819, 0
    %v877 = vsel %vm289, %v820, 0
    %v880 = vsel %vm289, %v821, 0
    %882 = vmatpush.bf16.msra.mxu0 0
    %883 = vmatpush.bf16.msra.mxu0 0
    %884 = vmatpush.bf16.msra.mxu0 0
    %885 = vmatpush.bf16.msra.mxu0 0
    %886 = vmatpush.bf16.msra.mxu0 %v853
    %887 = vmatpush.bf16.msra.mxu0 %v852
    %888 = vmatpush.bf16.msra.mxu0 %v851
    %889 = vmatpush.bf16.msra.mxu0 %v850
    %890 = vmatmul.bf16.gmra.mxu0 %v859
    %v891 = vpop.f32.mrf.mxu0
    %v892 = vadd.f32 %v832, %v891
    %v893 = vpop.f32.mrf.mxu0
    %v894 = vadd.f32 %v832, %v893
    %895 = vmatmul.bf16.gmra.mxu0 %v862
    %v896 = vpop.f32.mrf.mxu0
    %v897 = vadd.f32 %v832, %v896
    %v898 = vpop.f32.mrf.mxu0
    %v899 = vadd.f32 %v832, %v898
    %900 = vmatmul.bf16.gmra.mxu0 %v865
    %v901 = vpop.f32.mrf.mxu0
    %v902 = vadd.f32 %v832, %v901
    %v903 = vpop.f32.mrf.mxu0
    %v904 = vadd.f32 %v832, %v903
    %905 = vmatmul.bf16.gmra.mxu0 %v868
    %v906 = vpop.f32.mrf.mxu0
    %v907 = vadd.f32 %v832, %v906
    %v908 = vpop.f32.mrf.mxu0
    %v909 = vadd.f32 %v832, %v908
    %910 = vmatmul.bf16.gmra.mxu0 %v871
    %v911 = vpop.f32.mrf.mxu0
    %v912 = vadd.f32 %v832, %v911
    %v913 = vpop.f32.mrf.mxu0
    %v914 = vadd.f32 %v832, %v913
    %915 = vmatmul.bf16.gmra.mxu0 %v874
    %v916 = vpop.f32.mrf.mxu0
    %v917 = vadd.f32 %v832, %v916
    %v918 = vpop.f32.mrf.mxu0
    %v919 = vadd.f32 %v832, %v918
    %920 = vmatmul.bf16.gmra.mxu0 %v877
    %v921 = vpop.f32.mrf.mxu0
    %v922 = vadd.f32 %v832, %v921
    %v923 = vpop.f32.mrf.mxu0
    %v924 = vadd.f32 %v832, %v923
    %925 = vmatmul.bf16.gmra.mxu0 %v880
    %v926 = vpop.f32.mrf.mxu0
    %v927 = vadd.f32 %v832, %v926
    %v928 = vpop.f32.mrf.mxu0
    %v929 = vadd.f32 %v832, %v928
    %930 = vdwg.mxu0
    %v931 = vadd.f32 %v175, %v892
    %v932 = vadd.f32 %v176, %v894
    %v933 = vadd.f32 %v177, %v897
    %v934 = vadd.f32 %v178, %v899
    %v935 = vadd.f32 %v179, %v902
    %v936 = vadd.f32 %v180, %v904
    %v937 = vadd.f32 %v181, %v907
    %v938 = vadd.f32 %v182, %v909
    %v939 = vadd.f32 %v183, %v912
    %v940 = vadd.f32 %v184, %v914
    %v941 = vadd.f32 %v185, %v917
    %v942 = vadd.f32 %v186, %v919
    %v943 = vadd.f32 %v187, %v922
    %v944 = vadd.f32 %v188, %v924
    %v945 = vadd.f32 %v189, %v927
    %v946 = vadd.f32 %v190, %v929
    %v947 = vld [vmem:[#allocation10] sm:$0x1]
    %v948 = vld [vmem:[#allocation11] sm:$0x1]
    %v949 = vsel %vm289, %v931, 0.0
    %950 = vadd.xlane.f32.xlu0 %v949
    %v951 = vpop.xlane.xlu0 %950
    %v952 = vsel %vm289, %v932, 0.0
    %953 = vadd.xlane.f32.xlu0 %v952
    %v954 = vpop.xlane.xlu0 %953
    %v955 = vsel %vm289, %v933, 0.0
    %956 = vadd.xlane.f32.xlu0 %v955
    %v957 = vpop.xlane.xlu0 %956
    %v958 = vsel %vm289, %v934, 0.0
    %959 = vadd.xlane.f32.xlu0 %v958
    %v960 = vpop.xlane.xlu0 %959
    %v961 = vsel %vm289, %v935, 0.0
    %962 = vadd.xlane.f32.xlu0 %v961
    %v963 = vpop.xlane.xlu0 %962
    %v964 = vsel %vm289, %v936, 0.0
    %965 = vadd.xlane.f32.xlu0 %v964
    %v966 = vpop.xlane.xlu0 %965
    %v967 = vsel %vm289, %v937, 0.0
    %968 = vadd.xlane.f32.xlu0 %v967
    %v969 = vpop.xlane.xlu0 %968
    %v970 = vsel %vm289, %v938, 0.0
    %971 = vadd.xlane.f32.xlu0 %v970
    %v972 = vpop.xlane.xlu0 %971
    %v973 = vsel %vm289, %v939, 0.0
    %974 = vadd.xlane.f32.xlu0 %v973
    %v975 = vpop.xlane.xlu0 %974
    %v976 = vsel %vm289, %v940, 0.0
    %977 = vadd.xlane.f32.xlu0 %v976
    %v978 = vpop.xlane.xlu0 %977
    %v979 = vsel %vm289, %v941, 0.0
    %980 = vadd.xlane.f32.xlu0 %v979
    %v981 = vpop.xlane.xlu0 %980
    %v982 = vsel %vm289, %v942, 0.0
    %983 = vadd.xlane.f32.xlu0 %v982
    %v984 = vpop.xlane.xlu0 %983
    %v985 = vsel %vm289, %v943, 0.0
    %986 = vadd.xlane.f32.xlu0 %v985
    %v987 = vpop.xlane.xlu0 %986
    %v988 = vsel %vm289, %v944, 0.0
    %989 = vadd.xlane.f32.xlu0 %v988
    %v990 = vpop.xlane.xlu0 %989
    %v991 = vsel %vm289, %v945, 0.0
    %992 = vadd.xlane.f32.xlu0 %v991
    %v993 = vpop.xlane.xlu0 %992
    %v994 = vsel %vm289, %v946, 0.0
    %995 = vadd.xlane.f32.xlu0 %v994
    %v996 = vpop.xlane.xlu0 %995
    %v997 = vrcp.pop 64.0
    %v998 = vmul.f32 64.0, %v997
    %v999 = vsub.f32 1.0, %v998
    %v1000 = vmul.f32 %v997, %v999
    %v1001 = vadd.f32 %v997, %v1000
    %vm1002 = vweird.f32 %v997
    %v1003 = vsel %vm1002, %v997, %v1001
    %v1004 = vmul.f32 %v951, %v1003
    %v1005 = vmul.f32 %v954, %v1003
    %v1006 = vmul.f32 %v957, %v1003
    %v1007 = vmul.f32 %v960, %v1003
    %v1008 = vmul.f32 %v963, %v1003
    %v1009 = vmul.f32 %v966, %v1003
    %v1010 = vmul.f32 %v969, %v1003
    %v1011 = vmul.f32 %v972, %v1003
    %v1012 = vmul.f32 %v975, %v1003
    %v1013 = vmul.f32 %v978, %v1003
    %v1014 = vmul.f32 %v981, %v1003
    %v1015 = vmul.f32 %v984, %v1003
    %v1016 = vmul.f32 %v987, %v1003
    %v1017 = vmul.f32 %v990, %v1003
    %v1018 = vmul.f32 %v993, %v1003
    %v1019 = vmul.f32 %v996, %v1003
    %v1020 = vsub.f32 %v931, %v1004
    %v1021 = vsub.f32 %v932, %v1005
    %v1022 = vsub.f32 %v933, %v1006
    %v1023 = vsub.f32 %v934, %v1007
    %v1024 = vsub.f32 %v935, %v1008
    %v1025 = vsub.f32 %v936, %v1009
    %v1026 = vsub.f32 %v937, %v1010
    %v1027 = vsub.f32 %v938, %v1011
    %v1028 = vsub.f32 %v939, %v1012
    %v1029 = vsub.f32 %v940, %v1013
    %v1030 = vsub.f32 %v941, %v1014
    %v1031 = vsub.f32 %v942, %v1015
    %v1032 = vsub.f32 %v943, %v1016
    %v1033 = vsub.f32 %v944, %v1017
    %v1034 = vsub.f32 %v945, %v1018
    %v1035 = vsub.f32 %v946, %v1019
    %v1036 = vmul.f32 %v1020, %v1020
    %v1037 = vmul.f32 %v1021, %v1021
    %v1038 = vmul.f32 %v1022, %v1022
    %v1039 = vmul.f32 %v1023, %v1023
    %v1040 = vmul.f32 %v1024, %v1024
    %v1041 = vmul.f32 %v1025, %v1025
    %v1042 = vmul.f32 %v1026, %v1026
    %v1043 = vmul.f32 %v1027, %v1027
    %v1044 = vmul.f32 %v1028, %v1028
    %v1045 = vmul.f32 %v1029, %v1029
    %v1046 = vmul.f32 %v1030, %v1030
    %v1047 = vmul.f32 %v1031, %v1031
    %v1048 = vmul.f32 %v1032, %v1032
    %v1049 = vmul.f32 %v1033, %v1033
    %v1050 = vmul.f32 %v1034, %v1034
    %v1051 = vmul.f32 %v1035, %v1035
    %v1052 = vsel %vm289, %v1036, 0.0
    %1053 = vadd.xlane.f32.xlu0 %v1052
    %v1054 = vpop.xlane.xlu0 %1053
    %v1055 = vsel %vm289, %v1037, 0.0
    %1056 = vadd.xlane.f32.xlu0 %v1055
    %v1057 = vpop.xlane.xlu0 %1056
    %v1058 = vsel %vm289, %v1038, 0.0
    %1059 = vadd.xlane.f32.xlu0 %v1058
    %v1060 = vpop.xlane.xlu0 %1059
    %v1061 = vsel %vm289, %v1039, 0.0
    %1062 = vadd.xlane.f32.xlu0 %v1061
    %v1063 = vpop.xlane.xlu0 %1062
    %v1064 = vsel %vm289, %v1040, 0.0
    %1065 = vadd.xlane.f32.xlu0 %v1064
    %v1066 = vpop.xlane.xlu0 %1065
    %v1067 = vsel %vm289, %v1041, 0.0
    %1068 = vadd.xlane.f32.xlu0 %v1067
    %v1069 = vpop.xlane.xlu0 %1068
    %v1070 = vsel %vm289, %v1042, 0.0
    %1071 = vadd.xlane.f32.xlu0 %v1070
    %v1072 = vpop.xlane.xlu0 %1071
    %v1073 = vsel %vm289, %v1043, 0.0
    %1074 = vadd.xlane.f32.xlu0 %v1073
    %v1075 = vpop.xlane.xlu0 %1074
    %v1076 = vsel %vm289, %v1044, 0.0
    %1077 = vadd.xlane.f32.xlu0 %v1076
    %v1078 = vpop.xlane.xlu0 %1077
    %v1079 = vsel %vm289, %v1045, 0.0
    %1080 = vadd.xlane.f32.xlu0 %v1079
    %v1081 = vpop.xlane.xlu0 %1080
    %v1082 = vsel %vm289, %v1046, 0.0
    %1083 = vadd.xlane.f32.xlu0 %v1082
    %v1084 = vpop.xlane.xlu0 %1083
    %v1085 = vsel %vm289, %v1047, 0.0
    %1086 = vadd.xlane.f32.xlu0 %v1085
    %v1087 = vpop.xlane.xlu0 %1086
    %v1088 = vsel %vm289, %v1048, 0.0
    %1089 = vadd.xlane.f32.xlu0 %v1088
    %v1090 = vpop.xlane.xlu0 %1089
    %v1091 = vsel %vm289, %v1049, 0.0
    %1092 = vadd.xlane.f32.xlu0 %v1091
    %v1093 = vpop.xlane.xlu0 %1092
    %v1094 = vsel %vm289, %v1050, 0.0
    %1095 = vadd.xlane.f32.xlu0 %v1094
    %v1096 = vpop.xlane.xlu0 %1095
    %v1097 = vsel %vm289, %v1051, 0.0
    %1098 = vadd.xlane.f32.xlu0 %v1097
    %v1099 = vpop.xlane.xlu0 %1098
    %v1100 = vmul.f32 %v1054, %v1003
    %v1101 = vmul.f32 %v1057, %v1003
    %v1102 = vmul.f32 %v1060, %v1003
    %v1103 = vmul.f32 %v1063, %v1003
    %v1104 = vmul.f32 %v1066, %v1003
    %v1105 = vmul.f32 %v1069, %v1003
    %v1106 = vmul.f32 %v1072, %v1003
    %v1107 = vmul.f32 %v1075, %v1003
    %v1108 = vmul.f32 %v1078, %v1003
    %v1109 = vmul.f32 %v1081, %v1003
    %v1110 = vmul.f32 %v1084, %v1003
    %v1111 = vmul.f32 %v1087, %v1003
    %v1112 = vmul.f32 %v1090, %v1003
    %v1113 = vmul.f32 %v1093, %v1003
    %v1114 = vmul.f32 %v1096, %v1003
    %v1115 = vmul.f32 %v1099, %v1003
    %v1116 = vadd.f32 %v1100, 1e-05
    %v1117 = vadd.f32 %v1101, 1e-05
    %v1118 = vadd.f32 %v1102, 1e-05
    %v1119 = vadd.f32 %v1103, 1e-05
    %v1120 = vadd.f32 %v1104, 1e-05
    %v1121 = vadd.f32 %v1105, 1e-05
    %v1122 = vadd.f32 %v1106, 1e-05
    %v1123 = vadd.f32 %v1107, 1e-05
    %v1124 = vadd.f32 %v1108, 1e-05
    %v1125 = vadd.f32 %v1109, 1e-05
    %v1126 = vadd.f32 %v1110, 1e-05
    %v1127 = vadd.f32 %v1111, 1e-05
    %v1128 = vadd.f32 %v1112, 1e-05
    %v1129 = vadd.f32 %v1113, 1e-05
    %v1130 = vadd.f32 %v1114, 1e-05
    %v1131 = vadd.f32 %v1115, 1e-05
    %v1132 = vrsqrt.pop %v1116
    %v1133 = vmul.f32 %v1132, %v1116
    %v1134 = vmul.f32 %v1133, %v1132
    %v1135 = vmul.f32 0.5, %v1134
    %v1136 = vsub.f32 1.5, %v1135
    %v1137 = vmul.f32 %v1132, %v1136
    %vm1138 = vweird.f32 %v1116
    %vm1139 = vweird.f32 %v1132
    %vm1140 = vmor %vm1138, %vm1139
    %v1141 = vsel %vm1140, %v1132, %v1137
    %v1142 = vrsqrt.pop %v1117
    %v1143 = vmul.f32 %v1142, %v1117
    %v1144 = vmul.f32 %v1143, %v1142
    %v1145 = vmul.f32 0.5, %v1144
    %v1146 = vsub.f32 1.5, %v1145
    %v1147 = vmul.f32 %v1142, %v1146
    %vm1148 = vweird.f32 %v1117
    %vm1149 = vweird.f32 %v1142
    %vm1150 = vmor %vm1148, %vm1149
    %v1151 = vsel %vm1150, %v1142, %v1147
    %v1152 = vrsqrt.pop %v1118
    %v1153 = vmul.f32 %v1152, %v1118
    %v1154 = vmul.f32 %v1153, %v1152
    %v1155 = vmul.f32 0.5, %v1154
    %v1156 = vsub.f32 1.5, %v1155
    %v1157 = vmul.f32 %v1152, %v1156
    %vm1158 = vweird.f32 %v1118
    %vm1159 = vweird.f32 %v1152
    %vm1160 = vmor %vm1158, %vm1159
    %v1161 = vsel %vm1160, %v1152, %v1157
    %v1162 = vrsqrt.pop %v1119
    %v1163 = vmul.f32 %v1162, %v1119
    %v1164 = vmul.f32 %v1163, %v1162
    %v1165 = vmul.f32 0.5, %v1164
    %v1166 = vsub.f32 1.5, %v1165
    %v1167 = vmul.f32 %v1162, %v1166
    %vm1168 = vweird.f32 %v1119
    %vm1169 = vweird.f32 %v1162
    %vm1170 = vmor %vm1168, %vm1169
    %v1171 = vsel %vm1170, %v1162, %v1167
    %v1172 = vrsqrt.pop %v1120
    %v1173 = vmul.f32 %v1172, %v1120
    %v1174 = vmul.f32 %v1173, %v1172
    %v1175 = vmul.f32 0.5, %v1174
    %v1176 = vsub.f32 1.5, %v1175
    %v1177 = vmul.f32 %v1172, %v1176
    %vm1178 = vweird.f32 %v1120
    %vm1179 = vweird.f32 %v1172
    %vm1180 = vmor %vm1178, %vm1179
    %v1181 = vsel %vm1180, %v1172, %v1177
    %v1182 = vrsqrt.pop %v1121
    %v1183 = vmul.f32 %v1182, %v1121
    %v1184 = vmul.f32 %v1183, %v1182
    %v1185 = vmul.f32 0.5, %v1184
    %v1186 = vsub.f32 1.5, %v1185
    %v1187 = vmul.f32 %v1182, %v1186
    %vm1188 = vweird.f32 %v1121
    %vm1189 = vweird.f32 %v1182
    %vm1190 = vmor %vm1188, %vm1189
    %v1191 = vsel %vm1190, %v1182, %v1187
    %v1192 = vrsqrt.pop %v1122
    %v1193 = vmul.f32 %v1192, %v1122
    %v1194 = vmul.f32 %v1193, %v1192
    %v1195 = vmul.f32 0.5, %v1194
    %v1196 = vsub.f32 1.5, %v1195
    %v1197 = vmul.f32 %v1192, %v1196
    %vm1198 = vweird.f32 %v1122
    %vm1199 = vweird.f32 %v1192
    %vm1200 = vmor %vm1198, %vm1199
    %v1201 = vsel %vm1200, %v1192, %v1197
    %v1202 = vrsqrt.pop %v1123
    %v1203 = vmul.f32 %v1202, %v1123
    %v1204 = vmul.f32 %v1203, %v1202
    %v1205 = vmul.f32 0.5, %v1204
    %v1206 = vsub.f32 1.5, %v1205
    %v1207 = vmul.f32 %v1202, %v1206
    %vm1208 = vweird.f32 %v1123
    %vm1209 = vweird.f32 %v1202
    %vm1210 = vmor %vm1208, %vm1209
    %v1211 = vsel %vm1210, %v1202, %v1207
    %v1212 = vrsqrt.pop %v1124
    %v1213 = vmul.f32 %v1212, %v1124
    %v1214 = vmul.f32 %v1213, %v1212
    %v1215 = vmul.f32 0.5, %v1214
    %v1216 = vsub.f32 1.5, %v1215
    %v1217 = vmul.f32 %v1212, %v1216
    %vm1218 = vweird.f32 %v1124
    %vm1219 = vweird.f32 %v1212
    %vm1220 = vmor %vm1218, %vm1219
    %v1221 = vsel %vm1220, %v1212, %v1217
    %v1222 = vrsqrt.pop %v1125
    %v1223 = vmul.f32 %v1222, %v1125
    %v1224 = vmul.f32 %v1223, %v1222
    %v1225 = vmul.f32 0.5, %v1224
    %v1226 = vsub.f32 1.5, %v1225
    %v1227 = vmul.f32 %v1222, %v1226
    %vm1228 = vweird.f32 %v1125
    %vm1229 = vweird.f32 %v1222
    %vm1230 = vmor %vm1228, %vm1229
    %v1231 = vsel %vm1230, %v1222, %v1227
    %v1232 = vrsqrt.pop %v1126
    %v1233 = vmul.f32 %v1232, %v1126
    %v1234 = vmul.f32 %v1233, %v1232
    %v1235 = vmul.f32 0.5, %v1234
    %v1236 = vsub.f32 1.5, %v1235
    %v1237 = vmul.f32 %v1232, %v1236
    %vm1238 = vweird.f32 %v1126
    %vm1239 = vweird.f32 %v1232
    %vm1240 = vmor %vm1238, %vm1239
    %v1241 = vsel %vm1240, %v1232, %v1237
    %v1242 = vrsqrt.pop %v1127
    %v1243 = vmul.f32 %v1242, %v1127
    %v1244 = vmul.f32 %v1243, %v1242
    %v1245 = vmul.f32 0.5, %v1244
    %v1246 = vsub.f32 1.5, %v1245
    %v1247 = vmul.f32 %v1242, %v1246
    %vm1248 = vweird.f32 %v1127
    %vm1249 = vweird.f32 %v1242
    %vm1250 = vmor %vm1248, %vm1249
    %v1251 = vsel %vm1250, %v1242, %v1247
    %v1252 = vrsqrt.pop %v1128
    %v1253 = vmul.f32 %v1252, %v1128
    %v1254 = vmul.f32 %v1253, %v1252
    %v1255 = vmul.f32 0.5, %v1254
    %v1256 = vsub.f32 1.5, %v1255
    %v1257 = vmul.f32 %v1252, %v1256
    %vm1258 = vweird.f32 %v1128
    %vm1259 = vweird.f32 %v1252
    %vm1260 = vmor %vm1258, %vm1259
    %v1261 = vsel %vm1260, %v1252, %v1257
    %v1262 = vrsqrt.pop %v1129
    %v1263 = vmul.f32 %v1262, %v1129
    %v1264 = vmul.f32 %v1263, %v1262
    %v1265 = vmul.f32 0.5, %v1264
    %v1266 = vsub.f32 1.5, %v1265
    %v1267 = vmul.f32 %v1262, %v1266
    %vm1268 = vweird.f32 %v1129
    %vm1269 = vweird.f32 %v1262
    %vm1270 = vmor %vm1268, %vm1269
    %v1271 = vsel %vm1270, %v1262, %v1267
    %v1272 = vrsqrt.pop %v1130
    %v1273 = vmul.f32 %v1272, %v1130
    %v1274 = vmul.f32 %v1273, %v1272
    %v1275 = vmul.f32 0.5, %v1274
    %v1276 = vsub.f32 1.5, %v1275
    %v1277 = vmul.f32 %v1272, %v1276
    %vm1278 = vweird.f32 %v1130
    %vm1279 = vweird.f32 %v1272
    %vm1280 = vmor %vm1278, %vm1279
    %v1281 = vsel %vm1280, %v1272, %v1277
    %v1282 = vrsqrt.pop %v1131
    %v1283 = vmul.f32 %v1282, %v1131
    %v1284 = vmul.f32 %v1283, %v1282
    %v1285 = vmul.f32 0.5, %v1284
    %v1286 = vsub.f32 1.5, %v1285
    %v1287 = vmul.f32 %v1282, %v1286
    %vm1288 = vweird.f32 %v1131
    %vm1289 = vweird.f32 %v1282
    %vm1290 = vmor %vm1288, %vm1289
    %v1291 = vsel %vm1290, %v1282, %v1287
    %v1292 = vmul.f32 %v1020, %v1141
    %v1293 = vmul.f32 %v1021, %v1151
    %v1294 = vmul.f32 %v1022, %v1161
    %v1295 = vmul.f32 %v1023, %v1171
    %v1296 = vmul.f32 %v1024, %v1181
    %v1297 = vmul.f32 %v1025, %v1191
    %v1298 = vmul.f32 %v1026, %v1201
    %v1299 = vmul.f32 %v1027, %v1211
    %v1300 = vmul.f32 %v1028, %v1221
    %v1301 = vmul.f32 %v1029, %v1231
    %v1302 = vmul.f32 %v1030, %v1241
    %v1303 = vmul.f32 %v1031, %v1251
    %v1304 = vmul.f32 %v1032, %v1261
    %v1305 = vmul.f32 %v1033, %v1271
    %v1306 = vmul.f32 %v1034, %v1281
    %v1307 = vmul.f32 %v1035, %v1291
    %v1309 = vperm.slane %v947, 0
    %v1311 = vmul.f32 %v1292, %v1309
    %v1312 = vmul.f32 %v1293, %v1309
    %v1313 = vmul.f32 %v1294, %v1309
    %v1314 = vmul.f32 %v1295, %v1309
    %v1315 = vmul.f32 %v1296, %v1309
    %v1316 = vmul.f32 %v1297, %v1309
    %v1317 = vmul.f32 %v1298, %v1309
    %v1318 = vmul.f32 %v1299, %v1309
    %v1319 = vmul.f32 %v1300, %v1309
    %v1320 = vmul.f32 %v1301, %v1309
    %v1321 = vmul.f32 %v1302, %v1309
    %v1322 = vmul.f32 %v1303, %v1309
    %v1323 = vmul.f32 %v1304, %v1309
    %v1324 = vmul.f32 %v1305, %v1309
    %v1325 = vmul.f32 %v1306, %v1309
    %v1326 = vmul.f32 %v1307, %v1309
    %v1328 = vperm.slane %v948, 0
    %v1330 = vadd.f32 %v1311, %v1328
    %v1331 = vadd.f32 %v1312, %v1328
    %v1332 = vadd.f32 %v1313, %v1328
    %v1333 = vadd.f32 %v1314, %v1328
    %v1334 = vadd.f32 %v1315, %v1328
    %v1335 = vadd.f32 %v1316, %v1328
    %v1336 = vadd.f32 %v1317, %v1328
    %v1337 = vadd.f32 %v1318, %v1328
    %v1338 = vadd.f32 %v1319, %v1328
    %v1339 = vadd.f32 %v1320, %v1328
    %v1340 = vadd.f32 %v1321, %v1328
    %v1341 = vadd.f32 %v1322, %v1328
    %v1342 = vadd.f32 %v1323, %v1328
    %v1343 = vadd.f32 %v1324, %v1328
    %v1344 = vadd.f32 %v1325, %v1328
    %v1345 = vadd.f32 %v1326, %v1328
    %v1346 = vpack.c.bf16 %v1331, %v1330
    %v1347 = vpack.c.bf16 %v1333, %v1332
    %v1348 = vpack.c.bf16 %v1335, %v1334
    %v1349 = vpack.c.bf16 %v1337, %v1336
    %v1350 = vpack.c.bf16 %v1339, %v1338
    %v1351 = vpack.c.bf16 %v1341, %v1340
    %v1352 = vpack.c.bf16 %v1343, %v1342
    %v1353 = vpack.c.bf16 %v1345, %v1344
    %v1354 = vld [vmem:[#allocation13] sm:$0xff]
    %v1355 = vld [vmem:[#allocation13 + $0x8] sm:$0xff]
    %v1356 = vld [vmem:[#allocation13 + $0x10] sm:$0xff]
    %v1357 = vld [vmem:[#allocation13 + $0x18] sm:$0xff]
    %v1358 = vld [vmem:[#allocation13 + $0x20] sm:$0xff]
    %v1359 = vld [vmem:[#allocation13 + $0x28] sm:$0xff]
    %v1360 = vld [vmem:[#allocation13 + $0x30] sm:$0xff]
    %v1361 = vld [vmem:[#allocation13 + $0x38] sm:$0xff]
    %v1362 = vld [vmem:[%s10] sm:$0x3]
    %v1364 = vperm.slane %v1362, 0
    %v1365 = vperm.slane %v1362, 1
    %v1376 = vunpack.c.l.b16 %v1354
    %v1377 = vunpack.c.h.b16 %v1354
    %v1378 = vunpack.c.l.b16 %v1355
    %v1379 = vunpack.c.h.b16 %v1355
    %v1380 = vunpack.c.l.b16 %v1356
    %v1381 = vunpack.c.h.b16 %v1356
    %v1382 = vunpack.c.l.b16 %v1357
    %v1383 = vunpack.c.h.b16 %v1357
    %v1384 = vunpack.c.l.b16 %v1358
    %v1385 = vunpack.c.h.b16 %v1358
    %v1386 = vunpack.c.l.b16 %v1359
    %v1387 = vunpack.c.h.b16 %v1359
    %v1388 = vunpack.c.l.b16 %v1360
    %v1389 = vunpack.c.h.b16 %v1360
    %v1390 = vunpack.c.l.b16 %v1361
    %v1391 = vunpack.c.h.b16 %v1361
    %v1392 = vpack.c.b16 %v1378, %v1376
    %v1393 = vpack.c.b16 %v1379, %v1377
    %v1394 = vpack.c.b16 %v1382, %v1380
    %v1395 = vpack.c.b16 %v1383, %v1381
    %v1396 = vpack.c.b16 %v1386, %v1384
    %v1397 = vpack.c.b16 %v1387, %v1385
    %v1398 = vpack.c.b16 %v1390, %v1388
    %v1399 = vpack.c.b16 %v1391, %v1389
    %v1409 = vsel %vm289, %v1346, 0
    %v1412 = vsel %vm289, %v1347, 0
    %v1415 = vsel %vm289, %v1348, 0
    %v1418 = vsel %vm289, %v1349, 0
    %v1421 = vsel %vm289, %v1350, 0
    %v1424 = vsel %vm289, %v1351, 0
    %v1427 = vsel %vm289, %v1352, 0
    %v1430 = vsel %vm289, %v1353, 0
    %1432 = vmatpush.bf16.msra.mxu0 0
    %1433 = vmatpush.bf16.msra.mxu0 0
    %1434 = vmatpush.bf16.msra.mxu0 0
    %1435 = vmatpush.bf16.msra.mxu0 0
    %1436 = vmatpush.bf16.msra.mxu0 %v1398
    %1437 = vmatpush.bf16.msra.mxu0 %v1396
    %1438 = vmatpush.bf16.msra.mxu0 %v1394
    %1439 = vmatpush.bf16.msra.mxu0 %v1392
    %1440 = vmatmul.bf16.gmra.mxu0 %v1409
    %v1441 = vpop.f32.mrf.mxu0
    %v1442 = vadd.f32 %v1364, %v1441
    %v1443 = vpop.f32.mrf.mxu0
    %v1444 = vadd.f32 %v1364, %v1443
    %1445 = vmatmul.bf16.gmra.mxu0 %v1412
    %v1446 = vpop.f32.mrf.mxu0
    %v1447 = vadd.f32 %v1364, %v1446
    %v1448 = vpop.f32.mrf.mxu0
    %v1449 = vadd.f32 %v1364, %v1448
    %1450 = vmatmul.bf16.gmra.mxu0 %v1415
    %v1451 = vpop.f32.mrf.mxu0
    %v1452 = vadd.f32 %v1364, %v1451
    %v1453 = vpop.f32.mrf.mxu0
    %v1454 = vadd.f32 %v1364, %v1453
    %1455 = vmatmul.bf16.gmra.mxu0 %v1418
    %v1456 = vpop.f32.mrf.mxu0
    %v1457 = vadd.f32 %v1364, %v1456
    %v1458 = vpop.f32.mrf.mxu0
    %v1459 = vadd.f32 %v1364, %v1458
    %1460 = vmatmul.bf16.gmra.mxu0 %v1421
    %v1461 = vpop.f32.mrf.mxu0
    %v1462 = vadd.f32 %v1364, %v1461
    %v1463 = vpop.f32.mrf.mxu0
    %v1464 = vadd.f32 %v1364, %v1463
    %1465 = vmatmul.bf16.gmra.mxu0 %v1424
    %v1466 = vpop.f32.mrf.mxu0
    %v1467 = vadd.f32 %v1364, %v1466
    %v1468 = vpop.f32.mrf.mxu0
    %v1469 = vadd.f32 %v1364, %v1468
    %1470 = vmatmul.bf16.gmra.mxu0 %v1427
    %v1471 = vpop.f32.mrf.mxu0
    %v1472 = vadd.f32 %v1364, %v1471
    %v1473 = vpop.f32.mrf.mxu0
    %v1474 = vadd.f32 %v1364, %v1473
    %1475 = vmatmul.bf16.gmra.mxu0 %v1430
    %v1476 = vpop.f32.mrf.mxu0
    %v1477 = vadd.f32 %v1364, %v1476
    %v1478 = vpop.f32.mrf.mxu0
    %v1479 = vadd.f32 %v1364, %v1478
    %1480 = vdwg.mxu0
    %1481 = vmatpush.bf16.msra.mxu0 0
    %1482 = vmatpush.bf16.msra.mxu0 0
    %1483 = vmatpush.bf16.msra.mxu0 0
    %1484 = vmatpush.bf16.msra.mxu0 0
    %1485 = vmatpush.bf16.msra.mxu0 %v1399
    %1486 = vmatpush.bf16.msra.mxu0 %v1397
    %1487 = vmatpush.bf16.msra.mxu0 %v1395
    %1488 = vmatpush.bf16.msra.mxu0 %v1393
    %1489 = vmatmul.bf16.gmra.mxu0 %v1409
    %v1490 = vpop.f32.mrf.mxu0
    %v1491 = vadd.f32 %v1365, %v1490
    %v1492 = vpop.f32.mrf.mxu0
    %v1493 = vadd.f32 %v1365, %v1492
    %1494 = vmatmul.bf16.gmra.mxu0 %v1412
    %v1495 = vpop.f32.mrf.mxu0
    %v1496 = vadd.f32 %v1365, %v1495
    %v1497 = vpop.f32.mrf.mxu0
    %v1498 = vadd.f32 %v1365, %v1497
    %1499 = vmatmul.bf16.gmra.mxu0 %v1415
    %v1500 = vpop.f32.mrf.mxu0
    %v1501 = vadd.f32 %v1365, %v1500
    %v1502 = vpop.f32.mrf.mxu0
    %v1503 = vadd.f32 %v1365, %v1502
    %1504 = vmatmul.bf16.gmra.mxu0 %v1418
    %v1505 = vpop.f32.mrf.mxu0
    %v1506 = vadd.f32 %v1365, %v1505
    %v1507 = vpop.f32.mrf.mxu0
    %v1508 = vadd.f32 %v1365, %v1507
    %1509 = vmatmul.bf16.gmra.mxu0 %v1421
    %v1510 = vpop.f32.mrf.mxu0
    %v1511 = vadd.f32 %v1365, %v1510
    %v1512 = vpop.f32.mrf.mxu0
    %v1513 = vadd.f32 %v1365, %v1512
    %1514 = vmatmul.bf16.gmra.mxu0 %v1424
    %v1515 = vpop.f32.mrf.mxu0
    %v1516 = vadd.f32 %v1365, %v1515
    %v1517 = vpop.f32.mrf.mxu0
    %v1518 = vadd.f32 %v1365, %v1517
    %1519 = vmatmul.bf16.gmra.mxu0 %v1427
    %v1520 = vpop.f32.mrf.mxu0
    %v1521 = vadd.f32 %v1365, %v1520
    %v1522 = vpop.f32.mrf.mxu0
    %v1523 = vadd.f32 %v1365, %v1522
    %1524 = vmatmul.bf16.gmra.mxu0 %v1430
    %v1525 = vpop.f32.mrf.mxu0
    %v1526 = vadd.f32 %v1365, %v1525
    %v1527 = vpop.f32.mrf.mxu0
    %v1528 = vadd.f32 %v1365, %v1527
    %1529 = vdwg.mxu0
    %v1530 = vmax.f32 %v1442, 0.0
    %v1531 = vmax.f32 %v1491, 0.0
    %v1532 = vmax.f32 %v1444, 0.0
    %v1533 = vmax.f32 %v1493, 0.0
    %v1534 = vmax.f32 %v1447, 0.0
    %v1535 = vmax.f32 %v1496, 0.0
    %v1536 = vmax.f32 %v1449, 0.0
    %v1537 = vmax.f32 %v1498, 0.0
    %v1538 = vmax.f32 %v1452, 0.0
    %v1539 = vmax.f32 %v1501, 0.0
    %v1540 = vmax.f32 %v1454, 0.0
    %v1541 = vmax.f32 %v1503, 0.0
    %v1542 = vmax.f32 %v1457, 0.0
    %v1543 = vmax.f32 %v1506, 0.0
    %v1544 = vmax.f32 %v1459, 0.0
    %v1545 = vmax.f32 %v1508, 0.0
    %v1546 = vmax.f32 %v1462, 0.0
    %v1547 = vmax.f32 %v1511, 0.0
    %v1548 = vmax.f32 %v1464, 0.0
    %v1549 = vmax.f32 %v1513, 0.0
    %v1550 = vmax.f32 %v1467, 0.0
    %v1551 = vmax.f32 %v1516, 0.0
    %v1552 = vmax.f32 %v1469, 0.0
    %v1553 = vmax.f32 %v1518, 0.0
    %v1554 = vmax.f32 %v1472, 0.0
    %v1555 = vmax.f32 %v1521, 0.0
    %v1556 = vmax.f32 %v1474, 0.0
    %v1557 = vmax.f32 %v1523, 0.0
    %v1558 = vmax.f32 %v1477, 0.0
    %v1559 = vmax.f32 %v1526, 0.0
    %v1560 = vmax.f32 %v1479, 0.0
    %v1561 = vmax.f32 %v1528, 0.0
    %v1562 = vpack.c.bf16 %v1532, %v1530
    %v1563 = vpack.c.bf16 %v1533, %v1531
    %v1564 = vpack.c.bf16 %v1536, %v1534
    %v1565 = vpack.c.bf16 %v1537, %v1535
    %v1566 = vpack.c.bf16 %v1540, %v1538
    %v1567 = vpack.c.bf16 %v1541, %v1539
    %v1568 = vpack.c.bf16 %v1544, %v1542
    %v1569 = vpack.c.bf16 %v1545, %v1543
    %v1570 = vpack.c.bf16 %v1548, %v1546
    %v1571 = vpack.c.bf16 %v1549, %v1547
    %v1572 = vpack.c.bf16 %v1552, %v1550
    %v1573 = vpack.c.bf16 %v1553, %v1551
    %v1574 = vpack.c.bf16 %v1556, %v1554
    %v1575 = vpack.c.bf16 %v1557, %v1555
    %v1576 = vpack.c.bf16 %v1560, %v1558
    %v1577 = vpack.c.bf16 %v1561, %v1559
    %v1578 = vld [vmem:[%s11] sm:$0xf]
    %v1579 = vld [vmem:[%s11 + $0x4] sm:$0xf]
    %v1580 = vld [vmem:[%s11 + $0x8] sm:$0xf]
    %v1581 = vld [vmem:[%s11 + $0xc] sm:$0xf]
    %v1582 = vld [vmem:[%s11 + $0x10] sm:$0xf]
    %v1583 = vld [vmem:[%s11 + $0x14] sm:$0xf]
    %v1584 = vld [vmem:[%s11 + $0x18] sm:$0xf]
    %v1585 = vld [vmem:[%s11 + $0x1c] sm:$0xf]
    %v1586 = vld [vmem:[%s11 + $0x20] sm:$0xf]
    %v1587 = vld [vmem:[%s11 + $0x24] sm:$0xf]
    %v1588 = vld [vmem:[%s11 + $0x28] sm:$0xf]
    %v1589 = vld [vmem:[%s11 + $0x2c] sm:$0xf]
    %v1590 = vld [vmem:[%s11 + $0x30] sm:$0xf]
    %v1591 = vld [vmem:[%s11 + $0x34] sm:$0xf]
    %v1592 = vld [vmem:[%s11 + $0x38] sm:$0xf]
    %v1593 = vld [vmem:[%s11 + $0x3c] sm:$0xf]
    %v1594 = vld [vmem:[%s11 + $0x40] sm:$0xf]
    %v1595 = vld [vmem:[%s11 + $0x44] sm:$0xf]
    %v1596 = vld [vmem:[%s11 + $0x48] sm:$0xf]
    %v1597 = vld [vmem:[%s11 + $0x4c] sm:$0xf]
    %v1598 = vld [vmem:[%s11 + $0x50] sm:$0xf]
    %v1599 = vld [vmem:[%s11 + $0x54] sm:$0xf]
    %v1600 = vld [vmem:[%s11 + $0x58] sm:$0xf]
    %v1601 = vld [vmem:[%s11 + $0x5c] sm:$0xf]
    %v1602 = vld [vmem:[%s11 + $0x60] sm:$0xf]
    %v1603 = vld [vmem:[%s11 + $0x64] sm:$0xf]
    %v1604 = vld [vmem:[%s11 + $0x68] sm:$0xf]
    %v1605 = vld [vmem:[%s11 + $0x6c] sm:$0xf]
    %v1606 = vld [vmem:[%s11 + $0x70] sm:$0xf]
    %v1607 = vld [vmem:[%s11 + $0x74] sm:$0xf]
    %v1608 = vld [vmem:[%s11 + $0x78] sm:$0xf]
    %v1609 = vld [vmem:[%s11 + $0x7c] sm:$0xf]
    %v1610 = vld [vmem:[%s12] sm:$0x1]
    %v1612 = vperm.slane %v1610, 0
    %v1646 = vunpack.c.l.b16 %v1578
    %v1647 = vunpack.c.l.b16 %v1579
    %v1648 = vunpack.c.l.b16 %v1580
    %v1649 = vunpack.c.l.b16 %v1581
    %v1650 = vunpack.c.l.b16 %v1582
    %v1651 = vunpack.c.l.b16 %v1583
    %v1652 = vunpack.c.l.b16 %v1584
    %v1653 = vunpack.c.l.b16 %v1585
    %v1654 = vunpack.c.l.b16 %v1586
    %v1655 = vunpack.c.l.b16 %v1587
    %v1656 = vunpack.c.l.b16 %v1588
    %v1657 = vunpack.c.l.b16 %v1589
    %v1658 = vunpack.c.l.b16 %v1590
    %v1659 = vunpack.c.l.b16 %v1591
    %v1660 = vunpack.c.l.b16 %v1592
    %v1661 = vunpack.c.l.b16 %v1593
    %v1662 = vunpack.c.l.b16 %v1594
    %v1663 = vunpack.c.l.b16 %v1595
    %v1664 = vunpack.c.l.b16 %v1596
    %v1665 = vunpack.c.l.b16 %v1597
    %v1666 = vunpack.c.l.b16 %v1598
    %v1667 = vunpack.c.l.b16 %v1599
    %v1668 = vunpack.c.l.b16 %v1600
    %v1669 = vunpack.c.l.b16 %v1601
    %v1670 = vunpack.c.l.b16 %v1602
    %v1671 = vunpack.c.l.b16 %v1603
    %v1672 = vunpack.c.l.b16 %v1604
    %v1673 = vunpack.c.l.b16 %v1605
    %v1674 = vunpack.c.l.b16 %v1606
    %v1675 = vunpack.c.l.b16 %v1607
    %v1676 = vunpack.c.l.b16 %v1608
    %v1677 = vunpack.c.l.b16 %v1609
    %v1678 = vpack.c.b16 %v1647, %v1646
    %v1679 = vpack.c.b16 %v1649, %v1648
    %v1680 = vpack.c.b16 %v1651, %v1650
    %v1681 = vpack.c.b16 %v1653, %v1652
    %v1682 = vpack.c.b16 %v1655, %v1654
    %v1683 = vpack.c.b16 %v1657, %v1656
    %v1684 = vpack.c.b16 %v1659, %v1658
    %v1685 = vpack.c.b16 %v1661, %v1660
    %v1686 = vpack.c.b16 %v1663, %v1662
    %v1687 = vpack.c.b16 %v1665, %v1664
    %v1688 = vpack.c.b16 %v1667, %v1666
    %v1689 = vpack.c.b16 %v1669, %v1668
    %v1690 = vpack.c.b16 %v1671, %v1670
    %v1691 = vpack.c.b16 %v1673, %v1672
    %v1692 = vpack.c.b16 %v1675, %v1674
    %v1693 = vpack.c.b16 %v1677, %v1676
    %1710 = vmatpush.bf16.msra.mxu0 %v1685
    %1711 = vmatpush.bf16.msra.mxu0 %v1684
    %1712 = vmatpush.bf16.msra.mxu0 %v1683
    %1713 = vmatpush.bf16.msra.mxu0 %v1682
    %1714 = vmatpush.bf16.msra.mxu0 %v1681
    %1715 = vmatpush.bf16.msra.mxu0 %v1680
    %1716 = vmatpush.bf16.msra.mxu0 %v1679
    %1717 = vmatpush.bf16.msra.mxu0 %v1678
    %1718 = vmatmul.bf16.gmra.mxu0 %v1562
    %v1719 = vpop.f32.mrf.mxu0
    %v1720 = vadd.f32 %v1612, %v1719
    %v1721 = vpop.f32.mrf.mxu0
    %v1722 = vadd.f32 %v1612, %v1721
    %1723 = vmatmul.bf16.gmra.mxu0 %v1564
    %v1724 = vpop.f32.mrf.mxu0
    %v1725 = vadd.f32 %v1612, %v1724
    %v1726 = vpop.f32.mrf.mxu0
    %v1727 = vadd.f32 %v1612, %v1726
    %1728 = vmatmul.bf16.gmra.mxu0 %v1566
    %v1729 = vpop.f32.mrf.mxu0
    %v1730 = vadd.f32 %v1612, %v1729
    %v1731 = vpop.f32.mrf.mxu0
    %v1732 = vadd.f32 %v1612, %v1731
    %1733 = vmatmul.bf16.gmra.mxu0 %v1568
    %v1734 = vpop.f32.mrf.mxu0
    %v1735 = vadd.f32 %v1612, %v1734
    %v1736 = vpop.f32.mrf.mxu0
    %v1737 = vadd.f32 %v1612, %v1736
    %1738 = vmatmul.bf16.gmra.mxu0 %v1570
    %v1739 = vpop.f32.mrf.mxu0
    %v1740 = vadd.f32 %v1612, %v1739
    %v1741 = vpop.f32.mrf.mxu0
    %v1742 = vadd.f32 %v1612, %v1741
    %1743 = vmatmul.bf16.gmra.mxu0 %v1572
    %v1744 = vpop.f32.mrf.mxu0
    %v1745 = vadd.f32 %v1612, %v1744
    %v1746 = vpop.f32.mrf.mxu0
    %v1747 = vadd.f32 %v1612, %v1746
    %1748 = vmatmul.bf16.gmra.mxu0 %v1574
    %v1749 = vpop.f32.mrf.mxu0
    %v1750 = vadd.f32 %v1612, %v1749
    %v1751 = vpop.f32.mrf.mxu0
    %v1752 = vadd.f32 %v1612, %v1751
    %1753 = vmatmul.bf16.gmra.mxu0 %v1576
    %v1754 = vpop.f32.mrf.mxu0
    %v1755 = vadd.f32 %v1612, %v1754
    %v1756 = vpop.f32.mrf.mxu0
    %v1757 = vadd.f32 %v1612, %v1756
    %1758 = vdwg.mxu0
    %1759 = vmatpush.bf16.msra.mxu0 %v1693
    %1760 = vmatpush.bf16.msra.mxu0 %v1692
    %1761 = vmatpush.bf16.msra.mxu0 %v1691
    %1762 = vmatpush.bf16.msra.mxu0 %v1690
    %1763 = vmatpush.bf16.msra.mxu0 %v1689
    %1764 = vmatpush.bf16.msra.mxu0 %v1688
    %1765 = vmatpush.bf16.msra.mxu0 %v1687
    %1766 = vmatpush.bf16.msra.mxu0 %v1686
    %1767 = vmatmul.bf16.gmra.mxu0 %v1563
    %v1768 = vpop.f32.mrf.mxu0
    %v1769 = vadd.f32 %v1720, %v1768
    %v1770 = vpop.f32.mrf.mxu0
    %v1771 = vadd.f32 %v1722, %v1770
    %1772 = vmatmul.bf16.gmra.mxu0 %v1565
    %v1773 = vpop.f32.mrf.mxu0
    %v1774 = vadd.f32 %v1725, %v1773
    %v1775 = vpop.f32.mrf.mxu0
    %v1776 = vadd.f32 %v1727, %v1775
    %1777 = vmatmul.bf16.gmra.mxu0 %v1567
    %v1778 = vpop.f32.mrf.mxu0
    %v1779 = vadd.f32 %v1730, %v1778
    %v1780 = vpop.f32.mrf.mxu0
    %v1781 = vadd.f32 %v1732, %v1780
    %1782 = vmatmul.bf16.gmra.mxu0 %v1569
    %v1783 = vpop.f32.mrf.mxu0
    %v1784 = vadd.f32 %v1735, %v1783
    %v1785 = vpop.f32.mrf.mxu0
    %v1786 = vadd.f32 %v1737, %v1785
    %1787 = vmatmul.bf16.gmra.mxu0 %v1571
    %v1788 = vpop.f32.mrf.mxu0
    %v1789 = vadd.f32 %v1740, %v1788
    %v1790 = vpop.f32.mrf.mxu0
    %v1791 = vadd.f32 %v1742, %v1790
    %1792 = vmatmul.bf16.gmra.mxu0 %v1573
    %v1793 = vpop.f32.mrf.mxu0
    %v1794 = vadd.f32 %v1745, %v1793
    %v1795 = vpop.f32.mrf.mxu0
    %v1796 = vadd.f32 %v1747, %v1795
    %1797 = vmatmul.bf16.gmra.mxu0 %v1575
    %v1798 = vpop.f32.mrf.mxu0
    %v1799 = vadd.f32 %v1750, %v1798
    %v1800 = vpop.f32.mrf.mxu0
    %v1801 = vadd.f32 %v1752, %v1800
    %1802 = vmatmul.bf16.gmra.mxu0 %v1577
    %v1803 = vpop.f32.mrf.mxu0
    %v1804 = vadd.f32 %v1755, %v1803
    %v1805 = vpop.f32.mrf.mxu0
    %v1806 = vadd.f32 %v1757, %v1805
    %1807 = vdwg.mxu0
    %v1808 = vadd.f32 %v1330, %v1769
    %v1809 = vadd.f32 %v1331, %v1771
    %v1810 = vadd.f32 %v1332, %v1774
    %v1811 = vadd.f32 %v1333, %v1776
    %v1812 = vadd.f32 %v1334, %v1779
    %v1813 = vadd.f32 %v1335, %v1781
    %v1814 = vadd.f32 %v1336, %v1784
    %v1815 = vadd.f32 %v1337, %v1786
    %v1816 = vadd.f32 %v1338, %v1789
    %v1817 = vadd.f32 %v1339, %v1791
    %v1818 = vadd.f32 %v1340, %v1794
    %v1819 = vadd.f32 %v1341, %v1796
    %v1820 = vadd.f32 %v1342, %v1799
    %v1821 = vadd.f32 %v1343, %v1801
    %v1822 = vadd.f32 %v1344, %v1804
    %v1823 = vadd.f32 %v1345, %v1806
    %v1824 = vld [vmem:[%s13] sm:$0x1]
    %v1825 = vld [vmem:[#allocation14] sm:$0x1]
    %v1826 = vsel %vm289, %v1808, 0.0
    %1827 = vadd.xlane.f32.xlu0 %v1826
    %v1828 = vpop.xlane.xlu0 %1827
    %v1829 = vsel %vm289, %v1809, 0.0
    %1830 = vadd.xlane.f32.xlu0 %v1829
    %v1831 = vpop.xlane.xlu0 %1830
    %v1832 = vsel %vm289, %v1810, 0.0
    %1833 = vadd.xlane.f32.xlu0 %v1832
    %v1834 = vpop.xlane.xlu0 %1833
    %v1835 = vsel %vm289, %v1811, 0.0
    %1836 = vadd.xlane.f32.xlu0 %v1835
    %v1837 = vpop.xlane.xlu0 %1836
    %v1838 = vsel %vm289, %v1812, 0.0
    %1839 = vadd.xlane.f32.xlu0 %v1838
    %v1840 = vpop.xlane.xlu0 %1839
    %v1841 = vsel %vm289, %v1813, 0.0
    %1842 = vadd.xlane.f32.xlu0 %v1841
    %v1843 = vpop.xlane.xlu0 %1842
    %v1844 = vsel %vm289, %v1814, 0.0
    %1845 = vadd.xlane.f32.xlu0 %v1844
    %v1846 = vpop.xlane.xlu0 %1845
    %v1847 = vsel %vm289, %v1815, 0.0
    %1848 = vadd.xlane.f32.xlu0 %v1847
    %v1849 = vpop.xlane.xlu0 %1848
    %v1850 = vsel %vm289, %v1816, 0.0
    %1851 = vadd.xlane.f32.xlu0 %v1850
    %v1852 = vpop.xlane.xlu0 %1851
    %v1853 = vsel %vm289, %v1817, 0.0
    %1854 = vadd.xlane.f32.xlu0 %v1853
    %v1855 = vpop.xlane.xlu0 %1854
    %v1856 = vsel %vm289, %v1818, 0.0
    %1857 = vadd.xlane.f32.xlu0 %v1856
    %v1858 = vpop.xlane.xlu0 %1857
    %v1859 = vsel %vm289, %v1819, 0.0
    %1860 = vadd.xlane.f32.xlu0 %v1859
    %v1861 = vpop.xlane.xlu0 %1860
    %v1862 = vsel %vm289, %v1820, 0.0
    %1863 = vadd.xlane.f32.xlu0 %v1862
    %v1864 = vpop.xlane.xlu0 %1863
    %v1865 = vsel %vm289, %v1821, 0.0
    %1866 = vadd.xlane.f32.xlu0 %v1865
    %v1867 = vpop.xlane.xlu0 %1866
    %v1868 = vsel %vm289, %v1822, 0.0
    %1869 = vadd.xlane.f32.xlu0 %v1868
    %v1870 = vpop.xlane.xlu0 %1869
    %v1871 = vsel %vm289, %v1823, 0.0
    %1872 = vadd.xlane.f32.xlu0 %v1871
    %v1873 = vpop.xlane.xlu0 %1872
    %v1874 = vmul.f32 %v1828, %v1003
    %v1875 = vmul.f32 %v1831, %v1003
    %v1876 = vmul.f32 %v1834, %v1003
    %v1877 = vmul.f32 %v1837, %v1003
    %v1878 = vmul.f32 %v1840, %v1003
    %v1879 = vmul.f32 %v1843, %v1003
    %v1880 = vmul.f32 %v1846, %v1003
    %v1881 = vmul.f32 %v1849, %v1003
    %v1882 = vmul.f32 %v1852, %v1003
    %v1883 = vmul.f32 %v1855, %v1003
    %v1884 = vmul.f32 %v1858, %v1003
    %v1885 = vmul.f32 %v1861, %v1003
    %v1886 = vmul.f32 %v1864, %v1003
    %v1887 = vmul.f32 %v1867, %v1003
    %v1888 = vmul.f32 %v1870, %v1003
    %v1889 = vmul.f32 %v1873, %v1003
    %v1890 = vsub.f32 %v1808, %v1874
    %v1891 = vsub.f32 %v1809, %v1875
    %v1892 = vsub.f32 %v1810, %v1876
    %v1893 = vsub.f32 %v1811, %v1877
    %v1894 = vsub.f32 %v1812, %v1878
    %v1895 = vsub.f32 %v1813, %v1879
    %v1896 = vsub.f32 %v1814, %v1880
    %v1897 = vsub.f32 %v1815, %v1881
    %v1898 = vsub.f32 %v1816, %v1882
    %v1899 = vsub.f32 %v1817, %v1883
    %v1900 = vsub.f32 %v1818, %v1884
    %v1901 = vsub.f32 %v1819, %v1885
    %v1902 = vsub.f32 %v1820, %v1886
    %v1903 = vsub.f32 %v1821, %v1887
    %v1904 = vsub.f32 %v1822, %v1888
    %v1905 = vsub.f32 %v1823, %v1889
    %v1906 = vmul.f32 %v1890, %v1890
    %v1907 = vmul.f32 %v1891, %v1891
    %v1908 = vmul.f32 %v1892, %v1892
    %v1909 = vmul.f32 %v1893, %v1893
    %v1910 = vmul.f32 %v1894, %v1894
    %v1911 = vmul.f32 %v1895, %v1895
    %v1912 = vmul.f32 %v1896, %v1896
    %v1913 = vmul.f32 %v1897, %v1897
    %v1914 = vmul.f32 %v1898, %v1898
    %v1915 = vmul.f32 %v1899, %v1899
    %v1916 = vmul.f32 %v1900, %v1900
    %v1917 = vmul.f32 %v1901, %v1901
    %v1918 = vmul.f32 %v1902, %v1902
    %v1919 = vmul.f32 %v1903, %v1903
    %v1920 = vmul.f32 %v1904, %v1904
    %v1921 = vmul.f32 %v1905, %v1905
    %v1922 = vsel %vm289, %v1906, 0.0
    %1923 = vadd.xlane.f32.xlu0 %v1922
    %v1924 = vpop.xlane.xlu0 %1923
    %v1925 = vsel %vm289, %v1907, 0.0
    %1926 = vadd.xlane.f32.xlu0 %v1925
    %v1927 = vpop.xlane.xlu0 %1926
    %v1928 = vsel %vm289, %v1908, 0.0
    %1929 = vadd.xlane.f32.xlu0 %v1928
    %v1930 = vpop.xlane.xlu0 %1929
    %v1931 = vsel %vm289, %v1909, 0.0
    %1932 = vadd.xlane.f32.xlu0 %v1931
    %v1933 = vpop.xlane.xlu0 %1932
    %v1934 = vsel %vm289, %v1910, 0.0
    %1935 = vadd.xlane.f32.xlu0 %v1934
    %v1936 = vpop.xlane.xlu0 %1935
    %v1937 = vsel %vm289, %v1911, 0.0
    %1938 = vadd.xlane.f32.xlu0 %v1937
    %v1939 = vpop.xlane.xlu0 %1938
    %v1940 = vsel %vm289, %v1912, 0.0
    %1941 = vadd.xlane.f32.xlu0 %v1940
    %v1942 = vpop.xlane.xlu0 %1941
    %v1943 = vsel %vm289, %v1913, 0.0
    %1944 = vadd.xlane.f32.xlu0 %v1943
    %v1945 = vpop.xlane.xlu0 %1944
    %v1946 = vsel %vm289, %v1914, 0.0
    %1947 = vadd.xlane.f32.xlu0 %v1946
    %v1948 = vpop.xlane.xlu0 %1947
    %v1949 = vsel %vm289, %v1915, 0.0
    %1950 = vadd.xlane.f32.xlu0 %v1949
    %v1951 = vpop.xlane.xlu0 %1950
    %v1952 = vsel %vm289, %v1916, 0.0
    %1953 = vadd.xlane.f32.xlu0 %v1952
    %v1954 = vpop.xlane.xlu0 %1953
    %v1955 = vsel %vm289, %v1917, 0.0
    %1956 = vadd.xlane.f32.xlu0 %v1955
    %v1957 = vpop.xlane.xlu0 %1956
    %v1958 = vsel %vm289, %v1918, 0.0
    %1959 = vadd.xlane.f32.xlu0 %v1958
    %v1960 = vpop.xlane.xlu0 %1959
    %v1961 = vsel %vm289, %v1919, 0.0
    %1962 = vadd.xlane.f32.xlu0 %v1961
    %v1963 = vpop.xlane.xlu0 %1962
    %v1964 = vsel %vm289, %v1920, 0.0
    %1965 = vadd.xlane.f32.xlu0 %v1964
    %v1966 = vpop.xlane.xlu0 %1965
    %v1967 = vsel %vm289, %v1921, 0.0
    %1968 = vadd.xlane.f32.xlu0 %v1967
    %v1969 = vpop.xlane.xlu0 %1968
    %v1970 = vmul.f32 %v1924, %v1003
    %v1971 = vmul.f32 %v1927, %v1003
    %v1972 = vmul.f32 %v1930, %v1003
    %v1973 = vmul.f32 %v1933, %v1003
    %v1974 = vmul.f32 %v1936, %v1003
    %v1975 = vmul.f32 %v1939, %v1003
    %v1976 = vmul.f32 %v1942, %v1003
    %v1977 = vmul.f32 %v1945, %v1003
    %v1978 = vmul.f32 %v1948, %v1003
    %v1979 = vmul.f32 %v1951, %v1003
    %v1980 = vmul.f32 %v1954, %v1003
    %v1981 = vmul.f32 %v1957, %v1003
    %v1982 = vmul.f32 %v1960, %v1003
    %v1983 = vmul.f32 %v1963, %v1003
    %v1984 = vmul.f32 %v1966, %v1003
    %v1985 = vmul.f32 %v1969, %v1003
    %v1986 = vadd.f32 %v1970, 1e-05
    %v1987 = vadd.f32 %v1971, 1e-05
    %v1988 = vadd.f32 %v1972, 1e-05
    %v1989 = vadd.f32 %v1973, 1e-05
    %v1990 = vadd.f32 %v1974, 1e-05
    %v1991 = vadd.f32 %v1975, 1e-05
    %v1992 = vadd.f32 %v1976, 1e-05
    %v1993 = vadd.f32 %v1977, 1e-05
    %v1994 = vadd.f32 %v1978, 1e-05
    %v1995 = vadd.f32 %v1979, 1e-05
    %v1996 = vadd.f32 %v1980, 1e-05
    %v1997 = vadd.f32 %v1981, 1e-05
    %v1998 = vadd.f32 %v1982, 1e-05
    %v1999 = vadd.f32 %v1983, 1e-05
    %v2000 = vadd.f32 %v1984, 1e-05
    %v2001 = vadd.f32 %v1985, 1e-05
    %v2002 = vrsqrt.pop %v1986
    %v2003 = vmul.f32 %v2002, %v1986
    %v2004 = vmul.f32 %v2003, %v2002
    %v2005 = vmul.f32 0.5, %v2004
    %v2006 = vsub.f32 1.5, %v2005
    %v2007 = vmul.f32 %v2002, %v2006
    %vm2008 = vweird.f32 %v1986
    %vm2009 = vweird.f32 %v2002
    %vm2010 = vmor %vm2008, %vm2009
    %v2011 = vsel %vm2010, %v2002, %v2007
    %v2012 = vrsqrt.pop %v1987
    %v2013 = vmul.f32 %v2012, %v1987
    %v2014 = vmul.f32 %v2013, %v2012
    %v2015 = vmul.f32 0.5, %v2014
    %v2016 = vsub.f32 1.5, %v2015
    %v2017 = vmul.f32 %v2012, %v2016
    %vm2018 = vweird.f32 %v1987
    %vm2019 = vweird.f32 %v2012
    %vm2020 = vmor %vm2018, %vm2019
    %v2021 = vsel %vm2020, %v2012, %v2017
    %v2022 = vrsqrt.pop %v1988
    %v2023 = vmul.f32 %v2022, %v1988
    %v2024 = vmul.f32 %v2023, %v2022
    %v2025 = vmul.f32 0.5, %v2024
    %v2026 = vsub.f32 1.5, %v2025
    %v2027 = vmul.f32 %v2022, %v2026
    %vm2028 = vweird.f32 %v1988
    %vm2029 = vweird.f32 %v2022
    %vm2030 = vmor %vm2028, %vm2029
    %v2031 = vsel %vm2030, %v2022, %v2027
    %v2032 = vrsqrt.pop %v1989
    %v2033 = vmul.f32 %v2032, %v1989
    %v2034 = vmul.f32 %v2033, %v2032
    %v2035 = vmul.f32 0.5, %v2034
    %v2036 = vsub.f32 1.5, %v2035
    %v2037 = vmul.f32 %v2032, %v2036
    %vm2038 = vweird.f32 %v1989
    %vm2039 = vweird.f32 %v2032
    %vm2040 = vmor %vm2038, %vm2039
    %v2041 = vsel %vm2040, %v2032, %v2037
    %v2042 = vrsqrt.pop %v1990
    %v2043 = vmul.f32 %v2042, %v1990
    %v2044 = vmul.f32 %v2043, %v2042
    %v2045 = vmul.f32 0.5, %v2044
    %v2046 = vsub.f32 1.5, %v2045
    %v2047 = vmul.f32 %v2042, %v2046
    %vm2048 = vweird.f32 %v1990
    %vm2049 = vweird.f32 %v2042
    %vm2050 = vmor %vm2048, %vm2049
    %v2051 = vsel %vm2050, %v2042, %v2047
    %v2052 = vrsqrt.pop %v1991
    %v2053 = vmul.f32 %v2052, %v1991
    %v2054 = vmul.f32 %v2053, %v2052
    %v2055 = vmul.f32 0.5, %v2054
    %v2056 = vsub.f32 1.5, %v2055
    %v2057 = vmul.f32 %v2052, %v2056
    %vm2058 = vweird.f32 %v1991
    %vm2059 = vweird.f32 %v2052
    %vm2060 = vmor %vm2058, %vm2059
    %v2061 = vsel %vm2060, %v2052, %v2057
    %v2062 = vrsqrt.pop %v1992
    %v2063 = vmul.f32 %v2062, %v1992
    %v2064 = vmul.f32 %v2063, %v2062
    %v2065 = vmul.f32 0.5, %v2064
    %v2066 = vsub.f32 1.5, %v2065
    %v2067 = vmul.f32 %v2062, %v2066
    %vm2068 = vweird.f32 %v1992
    %vm2069 = vweird.f32 %v2062
    %vm2070 = vmor %vm2068, %vm2069
    %v2071 = vsel %vm2070, %v2062, %v2067
    %v2072 = vrsqrt.pop %v1993
    %v2073 = vmul.f32 %v2072, %v1993
    %v2074 = vmul.f32 %v2073, %v2072
    %v2075 = vmul.f32 0.5, %v2074
    %v2076 = vsub.f32 1.5, %v2075
    %v2077 = vmul.f32 %v2072, %v2076
    %vm2078 = vweird.f32 %v1993
    %vm2079 = vweird.f32 %v2072
    %vm2080 = vmor %vm2078, %vm2079
    %v2081 = vsel %vm2080, %v2072, %v2077
    %v2082 = vrsqrt.pop %v1994
    %v2083 = vmul.f32 %v2082, %v1994
    %v2084 = vmul.f32 %v2083, %v2082
    %v2085 = vmul.f32 0.5, %v2084
    %v2086 = vsub.f32 1.5, %v2085
    %v2087 = vmul.f32 %v2082, %v2086
    %vm2088 = vweird.f32 %v1994
    %vm2089 = vweird.f32 %v2082
    %vm2090 = vmor %vm2088, %vm2089
    %v2091 = vsel %vm2090, %v2082, %v2087
    %v2092 = vrsqrt.pop %v1995
    %v2093 = vmul.f32 %v2092, %v1995
    %v2094 = vmul.f32 %v2093, %v2092
    %v2095 = vmul.f32 0.5, %v2094
    %v2096 = vsub.f32 1.5, %v2095
    %v2097 = vmul.f32 %v2092, %v2096
    %vm2098 = vweird.f32 %v1995
    %vm2099 = vweird.f32 %v2092
    %vm2100 = vmor %vm2098, %vm2099
    %v2101 = vsel %vm2100, %v2092, %v2097
    %v2102 = vrsqrt.pop %v1996
    %v2103 = vmul.f32 %v2102, %v1996
    %v2104 = vmul.f32 %v2103, %v2102
    %v2105 = vmul.f32 0.5, %v2104
    %v2106 = vsub.f32 1.5, %v2105
    %v2107 = vmul.f32 %v2102, %v2106
    %vm2108 = vweird.f32 %v1996
    %vm2109 = vweird.f32 %v2102
    %vm2110 = vmor %vm2108, %vm2109
    %v2111 = vsel %vm2110, %v2102, %v2107
    %v2112 = vrsqrt.pop %v1997
    %v2113 = vmul.f32 %v2112, %v1997
    %v2114 = vmul.f32 %v2113, %v2112
    %v2115 = vmul.f32 0.5, %v2114
    %v2116 = vsub.f32 1.5, %v2115
    %v2117 = vmul.f32 %v2112, %v2116
    %vm2118 = vweird.f32 %v1997
    %vm2119 = vweird.f32 %v2112
    %vm2120 = vmor %vm2118, %vm2119
    %v2121 = vsel %vm2120, %v2112, %v2117
    %v2122 = vrsqrt.pop %v1998
    %v2123 = vmul.f32 %v2122, %v1998
    %v2124 = vmul.f32 %v2123, %v2122
    %v2125 = vmul.f32 0.5, %v2124
    %v2126 = vsub.f32 1.5, %v2125
    %v2127 = vmul.f32 %v2122, %v2126
    %vm2128 = vweird.f32 %v1998
    %vm2129 = vweird.f32 %v2122
    %vm2130 = vmor %vm2128, %vm2129
    %v2131 = vsel %vm2130, %v2122, %v2127
    %v2132 = vrsqrt.pop %v1999
    %v2133 = vmul.f32 %v2132, %v1999
    %v2134 = vmul.f32 %v2133, %v2132
    %v2135 = vmul.f32 0.5, %v2134
    %v2136 = vsub.f32 1.5, %v2135
    %v2137 = vmul.f32 %v2132, %v2136
    %vm2138 = vweird.f32 %v1999
    %vm2139 = vweird.f32 %v2132
    %vm2140 = vmor %vm2138, %vm2139
    %v2141 = vsel %vm2140, %v2132, %v2137
    %v2142 = vrsqrt.pop %v2000
    %v2143 = vmul.f32 %v2142, %v2000
    %v2144 = vmul.f32 %v2143, %v2142
    %v2145 = vmul.f32 0.5, %v2144
    %v2146 = vsub.f32 1.5, %v2145
    %v2147 = vmul.f32 %v2142, %v2146
    %vm2148 = vweird.f32 %v2000
    %vm2149 = vweird.f32 %v2142
    %vm2150 = vmor %vm2148, %vm2149
    %v2151 = vsel %vm2150, %v2142, %v2147
    %v2152 = vrsqrt.pop %v2001
    %v2153 = vmul.f32 %v2152, %v2001
    %v2154 = vmul.f32 %v2153, %v2152
    %v2155 = vmul.f32 0.5, %v2154
    %v2156 = vsub.f32 1.5, %v2155
    %v2157 = vmul.f32 %v2152, %v2156
    %vm2158 = vweird.f32 %v2001
    %vm2159 = vweird.f32 %v2152
    %vm2160 = vmor %vm2158, %vm2159
    %v2161 = vsel %vm2160, %v2152, %v2157
    %v2162 = vmul.f32 %v1890, %v2011
    %v2163 = vmul.f32 %v1891, %v2021
    %v2164 = vmul.f32 %v1892, %v2031
    %v2165 = vmul.f32 %v1893, %v2041
    %v2166 = vmul.f32 %v1894, %v2051
    %v2167 = vmul.f32 %v1895, %v2061
    %v2168 = vmul.f32 %v1896, %v2071
    %v2169 = vmul.f32 %v1897, %v2081
    %v2170 = vmul.f32 %v1898, %v2091
    %v2171 = vmul.f32 %v1899, %v2101
    %v2172 = vmul.f32 %v1900, %v2111
    %v2173 = vmul.f32 %v1901, %v2121
    %v2174 = vmul.f32 %v1902, %v2131
    %v2175 = vmul.f32 %v1903, %v2141
    %v2176 = vmul.f32 %v1904, %v2151
    %v2177 = vmul.f32 %v1905, %v2161
    %v2179 = vperm.slane %v1824, 0
    %v2181 = vmul.f32 %v2162, %v2179
    %v2182 = vmul.f32 %v2163, %v2179
    %v2183 = vmul.f32 %v2164, %v2179
    %v2184 = vmul.f32 %v2165, %v2179
    %v2185 = vmul.f32 %v2166, %v2179
    %v2186 = vmul.f32 %v2167, %v2179
    %v2187 = vmul.f32 %v2168, %v2179
    %v2188 = vmul.f32 %v2169, %v2179
    %v2189 = vmul.f32 %v2170, %v2179
    %v2190 = vmul.f32 %v2171, %v2179
    %v2191 = vmul.f32 %v2172, %v2179
    %v2192 = vmul.f32 %v2173, %v2179
    %v2193 = vmul.f32 %v2174, %v2179
    %v2194 = vmul.f32 %v2175, %v2179
    %v2195 = vmul.f32 %v2176, %v2179
    %v2196 = vmul.f32 %v2177, %v2179
    %v2198 = vperm.slane %v1825, 0
    %v2200 = vadd.f32 %v2181, %v2198
    %v2201 = vadd.f32 %v2182, %v2198
    %v2202 = vadd.f32 %v2183, %v2198
    %v2203 = vadd.f32 %v2184, %v2198
    %v2204 = vadd.f32 %v2185, %v2198
    %v2205 = vadd.f32 %v2186, %v2198
    %v2206 = vadd.f32 %v2187, %v2198
    %v2207 = vadd.f32 %v2188, %v2198
    %v2208 = vadd.f32 %v2189, %v2198
    %v2209 = vadd.f32 %v2190, %v2198
    %v2210 = vadd.f32 %v2191, %v2198
    %v2211 = vadd.f32 %v2192, %v2198
    %v2212 = vadd.f32 %v2193, %v2198
    %v2213 = vadd.f32 %v2194, %v2198
    %v2214 = vadd.f32 %v2195, %v2198
    %v2215 = vadd.f32 %v2196, %v2198
    %v2216 = vpack.c.bf16 %v2201, %v2200
    %v2217 = vpack.c.bf16 %v2203, %v2202
    %v2218 = vpack.c.bf16 %v2205, %v2204
    %v2219 = vpack.c.bf16 %v2207, %v2206
    %v2220 = vpack.c.bf16 %v2209, %v2208
    %v2221 = vpack.c.bf16 %v2211, %v2210
    %v2222 = vpack.c.bf16 %v2213, %v2212
    %v2223 = vpack.c.bf16 %v2215, %v2214
    %s2224 = scalar_lea.vmem %s3, 64
    %v2225 = vld [vmem:[%s2224] sm:$0xff]
    %v2226 = vld [vmem:[%s2224 + $0x8] sm:$0xff]
    %v2227 = vld [vmem:[%s2224 + $0x10] sm:$0xff]
    %v2228 = vld [vmem:[%s2224 + $0x18] sm:$0xff]
    %v2229 = vld [vmem:[%s2224 + $0x20] sm:$0xff]
    %v2230 = vld [vmem:[%s2224 + $0x28] sm:$0xff]
    %v2231 = vld [vmem:[%s2224 + $0x30] sm:$0xff]
    %v2232 = vld [vmem:[%s2224 + $0x38] sm:$0xff]
    %s2233 = scalar_lea.vmem [#allocation5], 2
    %v2234 = vld [vmem:[%s2233] sm:$0x3]
    %v2236 = vperm.slane %v2234, 0
    %v2237 = vperm.slane %v2234, 1
    %v2248 = vunpack.c.l.b16 %v2225
    %v2249 = vunpack.c.h.b16 %v2225
    %v2250 = vunpack.c.l.b16 %v2226
    %v2251 = vunpack.c.h.b16 %v2226
    %v2252 = vunpack.c.l.b16 %v2227
    %v2253 = vunpack.c.h.b16 %v2227
    %v2254 = vunpack.c.l.b16 %v2228
    %v2255 = vunpack.c.h.b16 %v2228
    %v2256 = vunpack.c.l.b16 %v2229
    %v2257 = vunpack.c.h.b16 %v2229
    %v2258 = vunpack.c.l.b16 %v2230
    %v2259 = vunpack.c.h.b16 %v2230
    %v2260 = vunpack.c.l.b16 %v2231
    %v2261 = vunpack.c.h.b16 %v2231
    %v2262 = vunpack.c.l.b16 %v2232
    %v2263 = vunpack.c.h.b16 %v2232
    %v2264 = vpack.c.b16 %v2250, %v2248
    %v2265 = vpack.c.b16 %v2251, %v2249
    %v2266 = vpack.c.b16 %v2254, %v2252
    %v2267 = vpack.c.b16 %v2255, %v2253
    %v2268 = vpack.c.b16 %v2258, %v2256
    %v2269 = vpack.c.b16 %v2259, %v2257
    %v2270 = vpack.c.b16 %v2262, %v2260
    %v2271 = vpack.c.b16 %v2263, %v2261
    %v2281 = vsel %vm289, %v2216, 0
    %v2284 = vsel %vm289, %v2217, 0
    %v2287 = vsel %vm289, %v2218, 0
    %v2290 = vsel %vm289, %v2219, 0
    %v2293 = vsel %vm289, %v2220, 0
    %v2296 = vsel %vm289, %v2221, 0
    %v2299 = vsel %vm289, %v2222, 0
    %v2302 = vsel %vm289, %v2223, 0
    %2304 = vmatpush.bf16.msra.mxu0 0
    %2305 = vmatpush.bf16.msra.mxu0 0
    %2306 = vmatpush.bf16.msra.mxu0 0
    %2307 = vmatpush.bf16.msra.mxu0 0
    %2308 = vmatpush.bf16.msra.mxu0 %v2270
    %2309 = vmatpush.bf16.msra.mxu0 %v2268
    %2310 = vmatpush.bf16.msra.mxu0 %v2266
    %2311 = vmatpush.bf16.msra.mxu0 %v2264
    %2312 = vmatmul.bf16.gmra.mxu0 %v2281
    %v2313 = vpop.f32.mrf.mxu0
    %v2314 = vadd.f32 %v2236, %v2313
    %v2315 = vpop.f32.mrf.mxu0
    %v2316 = vadd.f32 %v2236, %v2315
    %2317 = vmatmul.bf16.gmra.mxu0 %v2284
    %v2318 = vpop.f32.mrf.mxu0
    %v2319 = vadd.f32 %v2236, %v2318
    %v2320 = vpop.f32.mrf.mxu0
    %v2321 = vadd.f32 %v2236, %v2320
    %2322 = vmatmul.bf16.gmra.mxu0 %v2287
    %v2323 = vpop.f32.mrf.mxu0
    %v2324 = vadd.f32 %v2236, %v2323
    %v2325 = vpop.f32.mrf.mxu0
    %v2326 = vadd.f32 %v2236, %v2325
    %2327 = vmatmul.bf16.gmra.mxu0 %v2290
    %v2328 = vpop.f32.mrf.mxu0
    %v2329 = vadd.f32 %v2236, %v2328
    %v2330 = vpop.f32.mrf.mxu0
    %v2331 = vadd.f32 %v2236, %v2330
    %2332 = vmatmul.bf16.gmra.mxu0 %v2293
    %v2333 = vpop.f32.mrf.mxu0
    %v2334 = vadd.f32 %v2236, %v2333
    %v2335 = vpop.f32.mrf.mxu0
    %v2336 = vadd.f32 %v2236, %v2335
    %2337 = vmatmul.bf16.gmra.mxu0 %v2296
    %v2338 = vpop.f32.mrf.mxu0
    %v2339 = vadd.f32 %v2236, %v2338
    %v2340 = vpop.f32.mrf.mxu0
    %v2341 = vadd.f32 %v2236, %v2340
    %2342 = vmatmul.bf16.gmra.mxu0 %v2299
    %v2343 = vpop.f32.mrf.mxu0
    %v2344 = vadd.f32 %v2236, %v2343
    %v2345 = vpop.f32.mrf.mxu0
    %v2346 = vadd.f32 %v2236, %v2345
    %2347 = vmatmul.bf16.gmra.mxu0 %v2302
    %v2348 = vpop.f32.mrf.mxu0
    %v2349 = vadd.f32 %v2236, %v2348
    %v2350 = vpop.f32.mrf.mxu0
    %v2351 = vadd.f32 %v2236, %v2350
    %2352 = vdwg.mxu0
    %2353 = vmatpush.bf16.msra.mxu0 0
    %2354 = vmatpush.bf16.msra.mxu0 0
    %2355 = vmatpush.bf16.msra.mxu0 0
    %2356 = vmatpush.bf16.msra.mxu0 0
    %2357 = vmatpush.bf16.msra.mxu0 %v2271
    %2358 = vmatpush.bf16.msra.mxu0 %v2269
    %2359 = vmatpush.bf16.msra.mxu0 %v2267
    %2360 = vmatpush.bf16.msra.mxu0 %v2265
    %2361 = vmatmul.bf16.gmra.mxu0 %v2281
    %v2362 = vpop.f32.mrf.mxu0
    %v2363 = vadd.f32 %v2237, %v2362
    %v2364 = vpop.f32.mrf.mxu0
    %v2365 = vadd.f32 %v2237, %v2364
    %2366 = vmatmul.bf16.gmra.mxu0 %v2284
    %v2367 = vpop.f32.mrf.mxu0
    %v2368 = vadd.f32 %v2237, %v2367
    %v2369 = vpop.f32.mrf.mxu0
    %v2370 = vadd.f32 %v2237, %v2369
    %2371 = vmatmul.bf16.gmra.mxu0 %v2287
    %v2372 = vpop.f32.mrf.mxu0
    %v2373 = vadd.f32 %v2237, %v2372
    %v2374 = vpop.f32.mrf.mxu0
    %v2375 = vadd.f32 %v2237, %v2374
    %2376 = vmatmul.bf16.gmra.mxu0 %v2290
    %v2377 = vpop.f32.mrf.mxu0
    %v2378 = vadd.f32 %v2237, %v2377
    %v2379 = vpop.f32.mrf.mxu0
    %v2380 = vadd.f32 %v2237, %v2379
    %2381 = vmatmul.bf16.gmra.mxu0 %v2293
    %v2382 = vpop.f32.mrf.mxu0
    %v2383 = vadd.f32 %v2237, %v2382
    %v2384 = vpop.f32.mrf.mxu0
    %v2385 = vadd.f32 %v2237, %v2384
    %2386 = vmatmul.bf16.gmra.mxu0 %v2296
    %v2387 = vpop.f32.mrf.mxu0
    %v2388 = vadd.f32 %v2237, %v2387
    %v2389 = vpop.f32.mrf.mxu0
    %v2390 = vadd.f32 %v2237, %v2389
    %2391 = vmatmul.bf16.gmra.mxu0 %v2299
    %v2392 = vpop.f32.mrf.mxu0
    %v2393 = vadd.f32 %v2237, %v2392
    %v2394 = vpop.f32.mrf.mxu0
    %v2395 = vadd.f32 %v2237, %v2394
    %2396 = vmatmul.bf16.gmra.mxu0 %v2302
    %v2397 = vpop.f32.mrf.mxu0
    %v2398 = vadd.f32 %v2237, %v2397
    %v2399 = vpop.f32.mrf.mxu0
    %v2400 = vadd.f32 %v2237, %v2399
    %2401 = vdwg.mxu0
    %v2402 = vpack.c.bf16 %v2363, %v2314
    %v2403 = vpack.c.bf16 %v2365, %v2316
    %v2404 = vpack.c.bf16 %v2368, %v2319
    %v2405 = vpack.c.bf16 %v2370, %v2321
    %v2406 = vpack.c.bf16 %v2373, %v2324
    %v2407 = vpack.c.bf16 %v2375, %v2326
    %v2408 = vpack.c.bf16 %v2378, %v2329
    %v2409 = vpack.c.bf16 %v2380, %v2331
    %v2410 = vpack.c.bf16 %v2383, %v2334
    %v2411 = vpack.c.bf16 %v2385, %v2336
    %v2412 = vpack.c.bf16 %v2388, %v2339
    %v2413 = vpack.c.bf16 %v2390, %v2341
    %v2414 = vpack.c.bf16 %v2393, %v2344
    %v2415 = vpack.c.bf16 %v2395, %v2346
    %v2416 = vpack.c.bf16 %v2398, %v2349
    %v2417 = vpack.c.bf16 %v2400, %v2351
    %v2434 = vunpack.c.l.b16 %v2402
    %v2435 = vunpack.c.l.b16 %v2403
    %v2436 = vunpack.c.l.b16 %v2404
    %v2437 = vunpack.c.l.b16 %v2405
    %v2438 = vunpack.c.l.b16 %v2406
    %v2439 = vunpack.c.l.b16 %v2407
    %v2440 = vunpack.c.l.b16 %v2408
    %v2441 = vunpack.c.l.b16 %v2409
    %v2442 = vunpack.c.l.b16 %v2410
    %v2443 = vunpack.c.l.b16 %v2411
    %v2444 = vunpack.c.l.b16 %v2412
    %v2445 = vunpack.c.l.b16 %v2413
    %v2446 = vunpack.c.l.b16 %v2414
    %v2447 = vunpack.c.l.b16 %v2415
    %v2448 = vunpack.c.l.b16 %v2416
    %v2449 = vunpack.c.l.b16 %v2417
    %v2450 = vpack.c.b16 %v2435, %v2434
    %v2451 = vpack.c.b16 %v2437, %v2436
    %v2452 = vpack.c.b16 %v2439, %v2438
    %v2453 = vpack.c.b16 %v2441, %v2440
    %v2454 = vpack.c.b16 %v2443, %v2442
    %v2455 = vpack.c.b16 %v2445, %v2444
    %v2456 = vpack.c.b16 %v2447, %v2446
    %v2457 = vpack.c.b16 %v2449, %v2448
    %2458 = vrot.lane.b32.xlu0 %v2450, 64
    %v2459 = vpop.permute.xlu0 %2458
    %2460 = vrot.lane.b32.xlu0 %v2451, 64
    %v2461 = vpop.permute.xlu0 %2460
    %2462 = vrot.lane.b32.xlu0 %v2452, 64
    %v2463 = vpop.permute.xlu0 %2462
    %2464 = vrot.lane.b32.xlu0 %v2453, 64
    %v2465 = vpop.permute.xlu0 %2464
    %2466 = vrot.lane.b32.xlu0 %v2454, 64
    %v2467 = vpop.permute.xlu0 %2466
    %2468 = vrot.lane.b32.xlu0 %v2455, 64
    %v2469 = vpop.permute.xlu0 %2468
    %2470 = vrot.lane.b32.xlu0 %v2456, 64
    %v2471 = vpop.permute.xlu0 %2470
    %2472 = vrot.lane.b32.xlu0 %v2457, 64
    %v2473 = vpop.permute.xlu0 %2472
    %v2475 = vsel %vm289, %v2450, 0
    %v2478 = vsel %vm289, %v2451, 0
    %v2481 = vsel %vm289, %v2452, 0
    %v2484 = vsel %vm289, %v2453, 0
    %v2487 = vsel %vm289, %v2454, 0
    %v2490 = vsel %vm289, %v2455, 0
    %v2493 = vsel %vm289, %v2456, 0
    %v2496 = vsel %vm289, %v2457, 0
    %v2499 = vsel %vm289, %v2459, 0
    %v2502 = vsel %vm289, %v2461, 0
    %v2505 = vsel %vm289, %v2463, 0
    %v2508 = vsel %vm289, %v2465, 0
    %v2511 = vsel %vm289, %v2467, 0
    %v2514 = vsel %vm289, %v2469, 0
    %v2517 = vsel %vm289, %v2471, 0
    %v2520 = vsel %vm289, %v2473, 0
    %2522 = vmatpush.bf16.xpose.msra.mxu0 %v2520
    %2523 = vmatpush.bf16.xpose.msra.mxu0 %v2517
    %2524 = vmatpush.bf16.xpose.msra.mxu0 %v2514
    %2525 = vmatpush.bf16.xpose.msra.mxu0 %v2511
    %2526 = vmatpush.bf16.xpose.msra.mxu0 %v2508
    %2527 = vmatpush.bf16.xpose.msra.mxu0 %v2505
    %2528 = vmatpush.bf16.xpose.msra.mxu0 %v2502
    %2529 = vmatpush.bf16.xpose.msra.mxu0 %v2499
    %2530 = vmatmul.bf16.gmra.mxu0 %v2475
    %v2531 = vpop.f32.mrf.mxu0
    %v2532 = vadd.f32 %v211, %v2531
    %v2533 = vpop.f32.mrf.mxu0
    %v2534 = vadd.f32 %v212, %v2533
    %2535 = vmatmul.bf16.gmra.mxu0 %v2478
    %v2536 = vpop.f32.mrf.mxu0
    %v2537 = vadd.f32 %v213, %v2536
    %v2538 = vpop.f32.mrf.mxu0
    %v2539 = vadd.f32 %v214, %v2538
    %2540 = vmatmul.bf16.gmra.mxu0 %v2481
    %v2541 = vpop.f32.mrf.mxu0
    %v2542 = vadd.f32 %v215, %v2541
    %v2543 = vpop.f32.mrf.mxu0
    %v2544 = vadd.f32 %v216, %v2543
    %2545 = vmatmul.bf16.gmra.mxu0 %v2484
    %v2546 = vpop.f32.mrf.mxu0
    %v2547 = vadd.f32 %v217, %v2546
    %v2548 = vpop.f32.mrf.mxu0
    %v2549 = vadd.f32 %v218, %v2548
    %2550 = vmatmul.bf16.gmra.mxu0 %v2487
    %v2551 = vpop.f32.mrf.mxu0
    %v2552 = vadd.f32 %v219, %v2551
    %v2553 = vpop.f32.mrf.mxu0
    %v2554 = vadd.f32 %v220, %v2553
    %2555 = vmatmul.bf16.gmra.mxu0 %v2490
    %v2556 = vpop.f32.mrf.mxu0
    %v2557 = vadd.f32 %v221, %v2556
    %v2558 = vpop.f32.mrf.mxu0
    %v2559 = vadd.f32 %v222, %v2558
    %2560 = vmatmul.bf16.gmra.mxu0 %v2493
    %v2561 = vpop.f32.mrf.mxu0
    %v2562 = vadd.f32 %v223, %v2561
    %v2563 = vpop.f32.mrf.mxu0
    %v2564 = vadd.f32 %v224, %v2563
    %2565 = vmatmul.bf16.gmra.mxu0 %v2496
    %v2566 = vpop.f32.mrf.mxu0
    %v2567 = vadd.f32 %v225, %v2566
    %v2568 = vpop.f32.mrf.mxu0
    %v2569 = vadd.f32 %v226, %v2568
    %2570 = vdwg.mxu0
    %2571 = vmax.xlane.f32.xlu0 %v2532
    %v2572 = vpop.xlane.xlu0 %2571
    %2573 = vmax.xlane.f32.xlu0 %v2534
    %v2574 = vpop.xlane.xlu0 %2573
    %2575 = vmax.xlane.f32.xlu0 %v2537
    %v2576 = vpop.xlane.xlu0 %2575
    %2577 = vmax.xlane.f32.xlu0 %v2539
    %v2578 = vpop.xlane.xlu0 %2577
    %2579 = vmax.xlane.f32.xlu0 %v2542
    %v2580 = vpop.xlane.xlu0 %2579
    %2581 = vmax.xlane.f32.xlu0 %v2544
    %v2582 = vpop.xlane.xlu0 %2581
    %2583 = vmax.xlane.f32.xlu0 %v2547
    %v2584 = vpop.xlane.xlu0 %2583
    %2585 = vmax.xlane.f32.xlu0 %v2549
    %v2586 = vpop.xlane.xlu0 %2585
    %2587 = vmax.xlane.f32.xlu0 %v2552
    %v2588 = vpop.xlane.xlu0 %2587
    %2589 = vmax.xlane.f32.xlu0 %v2554
    %v2590 = vpop.xlane.xlu0 %2589
    %2591 = vmax.xlane.f32.xlu0 %v2557
    %v2592 = vpop.xlane.xlu0 %2591
    %2593 = vmax.xlane.f32.xlu0 %v2559
    %v2594 = vpop.xlane.xlu0 %2593
    %2595 = vmax.xlane.f32.xlu0 %v2562
    %v2596 = vpop.xlane.xlu0 %2595
    %2597 = vmax.xlane.f32.xlu0 %v2564
    %v2598 = vpop.xlane.xlu0 %2597
    %2599 = vmax.xlane.f32.xlu0 %v2567
    %v2600 = vpop.xlane.xlu0 %2599
    %2601 = vmax.xlane.f32.xlu0 %v2569
    %v2602 = vpop.xlane.xlu0 %2601
    %v2603 = vsub.f32 %v2532, %v2572
    %v2604 = vsub.f32 %v2534, %v2574
    %v2605 = vsub.f32 %v2537, %v2576
    %v2606 = vsub.f32 %v2539, %v2578
    %v2607 = vsub.f32 %v2542, %v2580
    %v2608 = vsub.f32 %v2544, %v2582
    %v2609 = vsub.f32 %v2547, %v2584
    %v2610 = vsub.f32 %v2549, %v2586
    %v2611 = vsub.f32 %v2552, %v2588
    %v2612 = vsub.f32 %v2554, %v2590
    %v2613 = vsub.f32 %v2557, %v2592
    %v2614 = vsub.f32 %v2559, %v2594
    %v2615 = vsub.f32 %v2562, %v2596
    %v2616 = vsub.f32 %v2564, %v2598
    %v2617 = vsub.f32 %v2567, %v2600
    %v2618 = vsub.f32 %v2569, %v2602
    %v2619 = vmul.f32 %v2603, 1.442695
    %v2620 = vpow.pop %v2619
    %v2621 = vmul.f32 %v2604, 1.442695
    %v2622 = vpow.pop %v2621
    %v2623 = vmul.f32 %v2605, 1.442695
    %v2624 = vpow.pop %v2623
    %v2625 = vmul.f32 %v2606, 1.442695
    %v2626 = vpow.pop %v2625
    %v2627 = vmul.f32 %v2607, 1.442695
    %v2628 = vpow.pop %v2627
    %v2629 = vmul.f32 %v2608, 1.442695
    %v2630 = vpow.pop %v2629
    %v2631 = vmul.f32 %v2609, 1.442695
    %v2632 = vpow.pop %v2631
    %v2633 = vmul.f32 %v2610, 1.442695
    %v2634 = vpow.pop %v2633
    %v2635 = vmul.f32 %v2611, 1.442695
    %v2636 = vpow.pop %v2635
    %v2637 = vmul.f32 %v2612, 1.442695
    %v2638 = vpow.pop %v2637
    %v2639 = vmul.f32 %v2613, 1.442695
    %v2640 = vpow.pop %v2639
    %v2641 = vmul.f32 %v2614, 1.442695
    %v2642 = vpow.pop %v2641
    %v2643 = vmul.f32 %v2615, 1.442695
    %v2644 = vpow.pop %v2643
    %v2645 = vmul.f32 %v2616, 1.442695
    %v2646 = vpow.pop %v2645
    %v2647 = vmul.f32 %v2617, 1.442695
    %v2648 = vpow.pop %v2647
    %v2649 = vmul.f32 %v2618, 1.442695
    %v2650 = vpow.pop %v2649
    %2651 = vadd.xlane.f32.xlu0 %v2620
    %v2652 = vpop.xlane.xlu0 %2651
    %2653 = vadd.xlane.f32.xlu0 %v2622
    %v2654 = vpop.xlane.xlu0 %2653
    %2655 = vadd.xlane.f32.xlu0 %v2624
    %v2656 = vpop.xlane.xlu0 %2655
    %2657 = vadd.xlane.f32.xlu0 %v2626
    %v2658 = vpop.xlane.xlu0 %2657
    %2659 = vadd.xlane.f32.xlu0 %v2628
    %v2660 = vpop.xlane.xlu0 %2659
    %2661 = vadd.xlane.f32.xlu0 %v2630
    %v2662 = vpop.xlane.xlu0 %2661
    %2663 = vadd.xlane.f32.xlu0 %v2632
    %v2664 = vpop.xlane.xlu0 %2663
    %2665 = vadd.xlane.f32.xlu0 %v2634
    %v2666 = vpop.xlane.xlu0 %2665
    %2667 = vadd.xlane.f32.xlu0 %v2636
    %v2668 = vpop.xlane.xlu0 %2667
    %2669 = vadd.xlane.f32.xlu0 %v2638
    %v2670 = vpop.xlane.xlu0 %2669
    %2671 = vadd.xlane.f32.xlu0 %v2640
    %v2672 = vpop.xlane.xlu0 %2671
    %2673 = vadd.xlane.f32.xlu0 %v2642
    %v2674 = vpop.xlane.xlu0 %2673
    %2675 = vadd.xlane.f32.xlu0 %v2644
    %v2676 = vpop.xlane.xlu0 %2675
    %2677 = vadd.xlane.f32.xlu0 %v2646
    %v2678 = vpop.xlane.xlu0 %2677
    %2679 = vadd.xlane.f32.xlu0 %v2648
    %v2680 = vpop.xlane.xlu0 %2679
    %2681 = vadd.xlane.f32.xlu0 %v2650
    %v2682 = vpop.xlane.xlu0 %2681
    %v2683 = vrcp.pop %v2652
    %v2684 = vrcp.pop %v2654
    %v2685 = vrcp.pop %v2656
    %v2686 = vrcp.pop %v2658
    %v2687 = vrcp.pop %v2660
    %v2688 = vrcp.pop %v2662
    %v2689 = vrcp.pop %v2664
    %v2690 = vrcp.pop %v2666
    %v2691 = vrcp.pop %v2668
    %v2692 = vrcp.pop %v2670
    %v2693 = vrcp.pop %v2672
    %v2694 = vrcp.pop %v2674
    %v2695 = vrcp.pop %v2676
    %v2696 = vrcp.pop %v2678
    %v2697 = vrcp.pop %v2680
    %v2698 = vrcp.pop %v2682
    %v2699 = vmul.f32 %v2620, %v2683
    %v2700 = vmul.f32 %v2622, %v2684
    %v2701 = vmul.f32 %v2624, %v2685
    %v2702 = vmul.f32 %v2626, %v2686
    %v2703 = vmul.f32 %v2628, %v2687
    %v2704 = vmul.f32 %v2630, %v2688
    %v2705 = vmul.f32 %v2632, %v2689
    %v2706 = vmul.f32 %v2634, %v2690
    %v2707 = vmul.f32 %v2636, %v2691
    %v2708 = vmul.f32 %v2638, %v2692
    %v2709 = vmul.f32 %v2640, %v2693
    %v2710 = vmul.f32 %v2642, %v2694
    %v2711 = vmul.f32 %v2644, %v2695
    %v2712 = vmul.f32 %v2646, %v2696
    %v2713 = vmul.f32 %v2648, %v2697
    %v2714 = vmul.f32 %v2650, %v2698
    %v2715 = vpack.c.bf16 %v2700, %v2699
    %v2716 = vpack.c.bf16 %v2702, %v2701
    %v2717 = vpack.c.bf16 %v2704, %v2703
    %v2718 = vpack.c.bf16 %v2706, %v2705
    %v2719 = vpack.c.bf16 %v2708, %v2707
    %v2720 = vpack.c.bf16 %v2710, %v2709
    %v2721 = vpack.c.bf16 %v2712, %v2711
    %v2722 = vpack.c.bf16 %v2714, %v2713
    %v2723 = vunpack.c.h.b16 %v2402
    %v2724 = vunpack.c.h.b16 %v2403
    %v2725 = vunpack.c.h.b16 %v2404
    %v2726 = vunpack.c.h.b16 %v2405
    %v2727 = vunpack.c.h.b16 %v2406
    %v2728 = vunpack.c.h.b16 %v2407
    %v2729 = vunpack.c.h.b16 %v2408
    %v2730 = vunpack.c.h.b16 %v2409
    %v2731 = vunpack.c.h.b16 %v2410
    %v2732 = vunpack.c.h.b16 %v2411
    %v2733 = vunpack.c.h.b16 %v2412
    %v2734 = vunpack.c.h.b16 %v2413
    %v2735 = vunpack.c.h.b16 %v2414
    %v2736 = vunpack.c.h.b16 %v2415
    %v2737 = vunpack.c.h.b16 %v2416
    %v2738 = vunpack.c.h.b16 %v2417
    %v2739 = vpack.c.b16 %v2724, %v2723
    %v2740 = vpack.c.b16 %v2726, %v2725
    %v2741 = vpack.c.b16 %v2728, %v2727
    %v2742 = vpack.c.b16 %v2730, %v2729
    %v2743 = vpack.c.b16 %v2732, %v2731
    %v2744 = vpack.c.b16 %v2734, %v2733
    %v2745 = vpack.c.b16 %v2736, %v2735
    %v2746 = vpack.c.b16 %v2738, %v2737
    %2755 = vmatpush.bf16.msra.mxu0 %v2746
    %2756 = vmatpush.bf16.msra.mxu0 %v2745
    %2757 = vmatpush.bf16.msra.mxu0 %v2744
    %2758 = vmatpush.bf16.msra.mxu0 %v2743
    %2759 = vmatpush.bf16.msra.mxu0 %v2742
    %2760 = vmatpush.bf16.msra.mxu0 %v2741
    %2761 = vmatpush.bf16.msra.mxu0 %v2740
    %2762 = vmatpush.bf16.msra.mxu0 %v2739
    %2763 = vmatmul.bf16.gmra.mxu0 %v2715
    %v2764 = vpop.f32.mrf.mxu0
    %v2765 = vadd.f32 0.0, %v2764
    %v2766 = vpop.f32.mrf.mxu0
    %v2767 = vadd.f32 0.0, %v2766
    %2768 = vmatmul.bf16.gmra.mxu0 %v2716
    %v2769 = vpop.f32.mrf.mxu0
    %v2770 = vadd.f32 0.0, %v2769
    %v2771 = vpop.f32.mrf.mxu0
    %v2772 = vadd.f32 0.0, %v2771
    %2773 = vmatmul.bf16.gmra.mxu0 %v2717
    %v2774 = vpop.f32.mrf.mxu0
    %v2775 = vadd.f32 0.0, %v2774
    %v2776 = vpop.f32.mrf.mxu0
    %v2777 = vadd.f32 0.0, %v2776
    %2778 = vmatmul.bf16.gmra.mxu0 %v2718
    %v2779 = vpop.f32.mrf.mxu0
    %v2780 = vadd.f32 0.0, %v2779
    %v2781 = vpop.f32.mrf.mxu0
    %v2782 = vadd.f32 0.0, %v2781
    %2783 = vmatmul.bf16.gmra.mxu0 %v2719
    %v2784 = vpop.f32.mrf.mxu0
    %v2785 = vadd.f32 0.0, %v2784
    %v2786 = vpop.f32.mrf.mxu0
    %v2787 = vadd.f32 0.0, %v2786
    %2788 = vmatmul.bf16.gmra.mxu0 %v2720
    %v2789 = vpop.f32.mrf.mxu0
    %v2790 = vadd.f32 0.0, %v2789
    %v2791 = vpop.f32.mrf.mxu0
    %v2792 = vadd.f32 0.0, %v2791
    %2793 = vmatmul.bf16.gmra.mxu0 %v2721
    %v2794 = vpop.f32.mrf.mxu0
    %v2795 = vadd.f32 0.0, %v2794
    %v2796 = vpop.f32.mrf.mxu0
    %v2797 = vadd.f32 0.0, %v2796
    %2798 = vmatmul.bf16.gmra.mxu0 %v2722
    %v2799 = vpop.f32.mrf.mxu0
    %v2800 = vadd.f32 0.0, %v2799
    %v2801 = vpop.f32.mrf.mxu0
    %v2802 = vadd.f32 0.0, %v2801
    %2803 = vdwg.mxu0
    %v2804 = vpack.c.bf16 %v2767, %v2765
    %v2805 = vpack.c.bf16 %v2772, %v2770
    %v2806 = vpack.c.bf16 %v2777, %v2775
    %v2807 = vpack.c.bf16 %v2782, %v2780
    %v2808 = vpack.c.bf16 %v2787, %v2785
    %v2809 = vpack.c.bf16 %v2792, %v2790
    %v2810 = vpack.c.bf16 %v2797, %v2795
    %v2811 = vpack.c.bf16 %v2802, %v2800
    %s2812 = scalar_lea.vmem [#allocation7], 32
    %v2813 = vld [vmem:[%s2812] sm:$0xf]
    %v2814 = vld [vmem:[%s2812 + $0x4] sm:$0xf]
    %v2815 = vld [vmem:[%s2812 + $0x8] sm:$0xf]
    %v2816 = vld [vmem:[%s2812 + $0xc] sm:$0xf]
    %v2817 = vld [vmem:[%s2812 + $0x10] sm:$0xf]
    %v2818 = vld [vmem:[%s2812 + $0x14] sm:$0xf]
    %v2819 = vld [vmem:[%s2812 + $0x18] sm:$0xf]
    %v2820 = vld [vmem:[%s2812 + $0x1c] sm:$0xf]
    %s2821 = scalar_lea.vmem [#allocation8], 1
    %v2822 = vld [vmem:[%s2821] sm:$0x1]
    %v2824 = vperm.slane %v2822, 0
    %v2834 = vunpack.c.l.b16 %v2813
    %v2835 = vunpack.c.l.b16 %v2814
    %v2836 = vunpack.c.l.b16 %v2815
    %v2837 = vunpack.c.l.b16 %v2816
    %v2838 = vunpack.c.l.b16 %v2817
    %v2839 = vunpack.c.l.b16 %v2818
    %v2840 = vunpack.c.l.b16 %v2819
    %v2841 = vunpack.c.l.b16 %v2820
    %v2842 = vpack.c.b16 %v2835, %v2834
    %v2843 = vpack.c.b16 %v2837, %v2836
    %v2844 = vpack.c.b16 %v2839, %v2838
    %v2845 = vpack.c.b16 %v2841, %v2840
    %v2851 = vsel %vm289, %v2804, 0
    %v2854 = vsel %vm289, %v2805, 0
    %v2857 = vsel %vm289, %v2806, 0
    %v2860 = vsel %vm289, %v2807, 0
    %v2863 = vsel %vm289, %v2808, 0
    %v2866 = vsel %vm289, %v2809, 0
    %v2869 = vsel %vm289, %v2810, 0
    %v2872 = vsel %vm289, %v2811, 0
    %2874 = vmatpush.bf16.msra.mxu0 0
    %2875 = vmatpush.bf16.msra.mxu0 0
    %2876 = vmatpush.bf16.msra.mxu0 0
    %2877 = vmatpush.bf16.msra.mxu0 0
    %2878 = vmatpush.bf16.msra.mxu0 %v2845
    %2879 = vmatpush.bf16.msra.mxu0 %v2844
    %2880 = vmatpush.bf16.msra.mxu0 %v2843
    %2881 = vmatpush.bf16.msra.mxu0 %v2842
    %2882 = vmatmul.bf16.gmra.mxu0 %v2851
    %v2883 = vpop.f32.mrf.mxu0
    %v2884 = vadd.f32 %v2824, %v2883
    %v2885 = vpop.f32.mrf.mxu0
    %v2886 = vadd.f32 %v2824, %v2885
    %2887 = vmatmul.bf16.gmra.mxu0 %v2854
    %v2888 = vpop.f32.mrf.mxu0
    %v2889 = vadd.f32 %v2824, %v2888
    %v2890 = vpop.f32.mrf.mxu0
    %v2891 = vadd.f32 %v2824, %v2890
    %2892 = vmatmul.bf16.gmra.mxu0 %v2857
    %v2893 = vpop.f32.mrf.mxu0
    %v2894 = vadd.f32 %v2824, %v2893
    %v2895 = vpop.f32.mrf.mxu0
    %v2896 = vadd.f32 %v2824, %v2895
    %2897 = vmatmul.bf16.gmra.mxu0 %v2860
    %v2898 = vpop.f32.mrf.mxu0
    %v2899 = vadd.f32 %v2824, %v2898
    %v2900 = vpop.f32.mrf.mxu0
    %v2901 = vadd.f32 %v2824, %v2900
    %2902 = vmatmul.bf16.gmra.mxu0 %v2863
    %v2903 = vpop.f32.mrf.mxu0
    %v2904 = vadd.f32 %v2824, %v2903
    %v2905 = vpop.f32.mrf.mxu0
    %v2906 = vadd.f32 %v2824, %v2905
    %2907 = vmatmul.bf16.gmra.mxu0 %v2866
    %v2908 = vpop.f32.mrf.mxu0
    %v2909 = vadd.f32 %v2824, %v2908
    %v2910 = vpop.f32.mrf.mxu0
    %v2911 = vadd.f32 %v2824, %v2910
    %2912 = vmatmul.bf16.gmra.mxu0 %v2869
    %v2913 = vpop.f32.mrf.mxu0
    %v2914 = vadd.f32 %v2824, %v2913
    %v2915 = vpop.f32.mrf.mxu0
    %v2916 = vadd.f32 %v2824, %v2915
    %2917 = vmatmul.bf16.gmra.mxu0 %v2872
    %v2918 = vpop.f32.mrf.mxu0
    %v2919 = vadd.f32 %v2824, %v2918
    %v2920 = vpop.f32.mrf.mxu0
    %v2921 = vadd.f32 %v2824, %v2920
    %2922 = vdwg.mxu0
    %v2923 = vadd.f32 %v2200, %v2884
    %v2924 = vadd.f32 %v2201, %v2886
    %v2925 = vadd.f32 %v2202, %v2889
    %v2926 = vadd.f32 %v2203, %v2891
    %v2927 = vadd.f32 %v2204, %v2894
    %v2928 = vadd.f32 %v2205, %v2896
    %v2929 = vadd.f32 %v2206, %v2899
    %v2930 = vadd.f32 %v2207, %v2901
    %v2931 = vadd.f32 %v2208, %v2904
    %v2932 = vadd.f32 %v2209, %v2906
    %v2933 = vadd.f32 %v2210, %v2909
    %v2934 = vadd.f32 %v2211, %v2911
    %v2935 = vadd.f32 %v2212, %v2914
    %v2936 = vadd.f32 %v2213, %v2916
    %v2937 = vadd.f32 %v2214, %v2919
    %v2938 = vadd.f32 %v2215, %v2921
    %s2939 = scalar_lea.vmem [#allocation10], 1
    %v2940 = vld [vmem:[%s2939] sm:$0x1]
    %s2941 = scalar_lea.vmem [#allocation11], 1
    %v2942 = vld [vmem:[%s2941] sm:$0x1]
    %v2943 = vsel %vm289, %v2923, 0.0
    %2944 = vadd.xlane.f32.xlu0 %v2943
    %v2945 = vpop.xlane.xlu0 %2944
    %v2946 = vsel %vm289, %v2924, 0.0
    %2947 = vadd.xlane.f32.xlu0 %v2946
    %v2948 = vpop.xlane.xlu0 %2947
    %v2949 = vsel %vm289, %v2925, 0.0
    %2950 = vadd.xlane.f32.xlu0 %v2949
    %v2951 = vpop.xlane.xlu0 %2950
    %v2952 = vsel %vm289, %v2926, 0.0
    %2953 = vadd.xlane.f32.xlu0 %v2952
    %v2954 = vpop.xlane.xlu0 %2953
    %v2955 = vsel %vm289, %v2927, 0.0
    %2956 = vadd.xlane.f32.xlu0 %v2955
    %v2957 = vpop.xlane.xlu0 %2956
    %v2958 = vsel %vm289, %v2928, 0.0
    %2959 = vadd.xlane.f32.xlu0 %v2958
    %v2960 = vpop.xlane.xlu0 %2959
    %v2961 = vsel %vm289, %v2929, 0.0
    %2962 = vadd.xlane.f32.xlu0 %v2961
    %v2963 = vpop.xlane.xlu0 %2962
    %v2964 = vsel %vm289, %v2930, 0.0
    %2965 = vadd.xlane.f32.xlu0 %v2964
    %v2966 = vpop.xlane.xlu0 %2965
    %v2967 = vsel %vm289, %v2931, 0.0
    %2968 = vadd.xlane.f32.xlu0 %v2967
    %v2969 = vpop.xlane.xlu0 %2968
    %v2970 = vsel %vm289, %v2932, 0.0
    %2971 = vadd.xlane.f32.xlu0 %v2970
    %v2972 = vpop.xlane.xlu0 %2971
    %v2973 = vsel %vm289, %v2933, 0.0
    %2974 = vadd.xlane.f32.xlu0 %v2973
    %v2975 = vpop.xlane.xlu0 %2974
    %v2976 = vsel %vm289, %v2934, 0.0
    %2977 = vadd.xlane.f32.xlu0 %v2976
    %v2978 = vpop.xlane.xlu0 %2977
    %v2979 = vsel %vm289, %v2935, 0.0
    %2980 = vadd.xlane.f32.xlu0 %v2979
    %v2981 = vpop.xlane.xlu0 %2980
    %v2982 = vsel %vm289, %v2936, 0.0
    %2983 = vadd.xlane.f32.xlu0 %v2982
    %v2984 = vpop.xlane.xlu0 %2983
    %v2985 = vsel %vm289, %v2937, 0.0
    %2986 = vadd.xlane.f32.xlu0 %v2985
    %v2987 = vpop.xlane.xlu0 %2986
    %v2988 = vsel %vm289, %v2938, 0.0
    %2989 = vadd.xlane.f32.xlu0 %v2988
    %v2990 = vpop.xlane.xlu0 %2989
    %v2991 = vmul.f32 %v2945, %v1003
    %v2992 = vmul.f32 %v2948, %v1003
    %v2993 = vmul.f32 %v2951, %v1003
    %v2994 = vmul.f32 %v2954, %v1003
    %v2995 = vmul.f32 %v2957, %v1003
    %v2996 = vmul.f32 %v2960, %v1003
    %v2997 = vmul.f32 %v2963, %v1003
    %v2998 = vmul.f32 %v2966, %v1003
    %v2999 = vmul.f32 %v2969, %v1003
    %v3000 = vmul.f32 %v2972, %v1003
    %v3001 = vmul.f32 %v2975, %v1003
    %v3002 = vmul.f32 %v2978, %v1003
    %v3003 = vmul.f32 %v2981, %v1003
    %v3004 = vmul.f32 %v2984, %v1003
    %v3005 = vmul.f32 %v2987, %v1003
    %v3006 = vmul.f32 %v2990, %v1003
    %v3007 = vsub.f32 %v2923, %v2991
    %v3008 = vsub.f32 %v2924, %v2992
    %v3009 = vsub.f32 %v2925, %v2993
    %v3010 = vsub.f32 %v2926, %v2994
    %v3011 = vsub.f32 %v2927, %v2995
    %v3012 = vsub.f32 %v2928, %v2996
    %v3013 = vsub.f32 %v2929, %v2997
    %v3014 = vsub.f32 %v2930, %v2998
    %v3015 = vsub.f32 %v2931, %v2999
    %v3016 = vsub.f32 %v2932, %v3000
    %v3017 = vsub.f32 %v2933, %v3001
    %v3018 = vsub.f32 %v2934, %v3002
    %v3019 = vsub.f32 %v2935, %v3003
    %v3020 = vsub.f32 %v2936, %v3004
    %v3021 = vsub.f32 %v2937, %v3005
    %v3022 = vsub.f32 %v2938, %v3006
    %v3023 = vmul.f32 %v3007, %v3007
    %v3024 = vmul.f32 %v3008, %v3008
    %v3025 = vmul.f32 %v3009, %v3009
    %v3026 = vmul.f32 %v3010, %v3010
    %v3027 = vmul.f32 %v3011, %v3011
    %v3028 = vmul.f32 %v3012, %v3012
    %v3029 = vmul.f32 %v3013, %v3013
    %v3030 = vmul.f32 %v3014, %v3014
    %v3031 = vmul.f32 %v3015, %v3015
    %v3032 = vmul.f32 %v3016, %v3016
    %v3033 = vmul.f32 %v3017, %v3017
    %v3034 = vmul.f32 %v3018, %v3018
    %v3035 = vmul.f32 %v3019, %v3019
    %v3036 = vmul.f32 %v3020, %v3020
    %v3037 = vmul.f32 %v3021, %v3021
    %v3038 = vmul.f32 %v3022, %v3022
    %v3039 = vsel %vm289, %v3023, 0.0
    %3040 = vadd.xlane.f32.xlu0 %v3039
    %v3041 = vpop.xlane.xlu0 %3040
    %v3042 = vsel %vm289, %v3024, 0.0
    %3043 = vadd.xlane.f32.xlu0 %v3042
    %v3044 = vpop.xlane.xlu0 %3043
    %v3045 = vsel %vm289, %v3025, 0.0
    %3046 = vadd.xlane.f32.xlu0 %v3045
    %v3047 = vpop.xlane.xlu0 %3046
    %v3048 = vsel %vm289, %v3026, 0.0
    %3049 = vadd.xlane.f32.xlu0 %v3048
    %v3050 = vpop.xlane.xlu0 %3049
    %v3051 = vsel %vm289, %v3027, 0.0
    %3052 = vadd.xlane.f32.xlu0 %v3051
    %v3053 = vpop.xlane.xlu0 %3052
    %v3054 = vsel %vm289, %v3028, 0.0
    %3055 = vadd.xlane.f32.xlu0 %v3054
    %v3056 = vpop.xlane.xlu0 %3055
    %v3057 = vsel %vm289, %v3029, 0.0
    %3058 = vadd.xlane.f32.xlu0 %v3057
    %v3059 = vpop.xlane.xlu0 %3058
    %v3060 = vsel %vm289, %v3030, 0.0
    %3061 = vadd.xlane.f32.xlu0 %v3060
    %v3062 = vpop.xlane.xlu0 %3061
    %v3063 = vsel %vm289, %v3031, 0.0
    %3064 = vadd.xlane.f32.xlu0 %v3063
    %v3065 = vpop.xlane.xlu0 %3064
    %v3066 = vsel %vm289, %v3032, 0.0
    %3067 = vadd.xlane.f32.xlu0 %v3066
    %v3068 = vpop.xlane.xlu0 %3067
    %v3069 = vsel %vm289, %v3033, 0.0
    %3070 = vadd.xlane.f32.xlu0 %v3069
    %v3071 = vpop.xlane.xlu0 %3070
    %v3072 = vsel %vm289, %v3034, 0.0
    %3073 = vadd.xlane.f32.xlu0 %v3072
    %v3074 = vpop.xlane.xlu0 %3073
    %v3075 = vsel %vm289, %v3035, 0.0
    %3076 = vadd.xlane.f32.xlu0 %v3075
    %v3077 = vpop.xlane.xlu0 %3076
    %v3078 = vsel %vm289, %v3036, 0.0
    %3079 = vadd.xlane.f32.xlu0 %v3078
    %v3080 = vpop.xlane.xlu0 %3079
    %v3081 = vsel %vm289, %v3037, 0.0
    %3082 = vadd.xlane.f32.xlu0 %v3081
    %v3083 = vpop.xlane.xlu0 %3082
    %v3084 = vsel %vm289, %v3038, 0.0
    %3085 = vadd.xlane.f32.xlu0 %v3084
    %v3086 = vpop.xlane.xlu0 %3085
    %v3087 = vmul.f32 %v3041, %v1003
    %v3088 = vmul.f32 %v3044, %v1003
    %v3089 = vmul.f32 %v3047, %v1003
    %v3090 = vmul.f32 %v3050, %v1003
    %v3091 = vmul.f32 %v3053, %v1003
    %v3092 = vmul.f32 %v3056, %v1003
    %v3093 = vmul.f32 %v3059, %v1003
    %v3094 = vmul.f32 %v3062, %v1003
    %v3095 = vmul.f32 %v3065, %v1003
    %v3096 = vmul.f32 %v3068, %v1003
    %v3097 = vmul.f32 %v3071, %v1003
    %v3098 = vmul.f32 %v3074, %v1003
    %v3099 = vmul.f32 %v3077, %v1003
    %v3100 = vmul.f32 %v3080, %v1003
    %v3101 = vmul.f32 %v3083, %v1003
    %v3102 = vmul.f32 %v3086, %v1003
    %v3103 = vadd.f32 %v3087, 1e-05
    %v3104 = vadd.f32 %v3088, 1e-05
    %v3105 = vadd.f32 %v3089, 1e-05
    %v3106 = vadd.f32 %v3090, 1e-05
    %v3107 = vadd.f32 %v3091, 1e-05
    %v3108 = vadd.f32 %v3092, 1e-05
    %v3109 = vadd.f32 %v3093, 1e-05
    %v3110 = vadd.f32 %v3094, 1e-05
    %v3111 = vadd.f32 %v3095, 1e-05
    %v3112 = vadd.f32 %v3096, 1e-05
    %v3113 = vadd.f32 %v3097, 1e-05
    %v3114 = vadd.f32 %v3098, 1e-05
    %v3115 = vadd.f32 %v3099, 1e-05
    %v3116 = vadd.f32 %v3100, 1e-05
    %v3117 = vadd.f32 %v3101, 1e-05
    %v3118 = vadd.f32 %v3102, 1e-05
    %v3119 = vrsqrt.pop %v3103
    %v3120 = vmul.f32 %v3119, %v3103
    %v3121 = vmul.f32 %v3120, %v3119
    %v3122 = vmul.f32 0.5, %v3121
    %v3123 = vsub.f32 1.5, %v3122
    %v3124 = vmul.f32 %v3119, %v3123
    %vm3125 = vweird.f32 %v3103
    %vm3126 = vweird.f32 %v3119
    %vm3127 = vmor %vm3125, %vm3126
    %v3128 = vsel %vm3127, %v3119, %v3124
    %v3129 = vrsqrt.pop %v3104
    %v3130 = vmul.f32 %v3129, %v3104
    %v3131 = vmul.f32 %v3130, %v3129
    %v3132 = vmul.f32 0.5, %v3131
    %v3133 = vsub.f32 1.5, %v3132
    %v3134 = vmul.f32 %v3129, %v3133
    %vm3135 = vweird.f32 %v3104
    %vm3136 = vweird.f32 %v3129
    %vm3137 = vmor %vm3135, %vm3136
    %v3138 = vsel %vm3137, %v3129, %v3134
    %v3139 = vrsqrt.pop %v3105
    %v3140 = vmul.f32 %v3139, %v3105
    %v3141 = vmul.f32 %v3140, %v3139
    %v3142 = vmul.f32 0.5, %v3141
    %v3143 = vsub.f32 1.5, %v3142
    %v3144 = vmul.f32 %v3139, %v3143
    %vm3145 = vweird.f32 %v3105
    %vm3146 = vweird.f32 %v3139
    %vm3147 = vmor %vm3145, %vm3146
    %v3148 = vsel %vm3147, %v3139, %v3144
    %v3149 = vrsqrt.pop %v3106
    %v3150 = vmul.f32 %v3149, %v3106
    %v3151 = vmul.f32 %v3150, %v3149
    %v3152 = vmul.f32 0.5, %v3151
    %v3153 = vsub.f32 1.5, %v3152
    %v3154 = vmul.f32 %v3149, %v3153
    %vm3155 = vweird.f32 %v3106
    %vm3156 = vweird.f32 %v3149
    %vm3157 = vmor %vm3155, %vm3156
    %v3158 = vsel %vm3157, %v3149, %v3154
    %v3159 = vrsqrt.pop %v3107
    %v3160 = vmul.f32 %v3159, %v3107
    %v3161 = vmul.f32 %v3160, %v3159
    %v3162 = vmul.f32 0.5, %v3161
    %v3163 = vsub.f32 1.5, %v3162
    %v3164 = vmul.f32 %v3159, %v3163
    %vm3165 = vweird.f32 %v3107
    %vm3166 = vweird.f32 %v3159
    %vm3167 = vmor %vm3165, %vm3166
    %v3168 = vsel %vm3167, %v3159, %v3164
    %v3169 = vrsqrt.pop %v3108
    %v3170 = vmul.f32 %v3169, %v3108
    %v3171 = vmul.f32 %v3170, %v3169
    %v3172 = vmul.f32 0.5, %v3171
    %v3173 = vsub.f32 1.5, %v3172
    %v3174 = vmul.f32 %v3169, %v3173
    %vm3175 = vweird.f32 %v3108
    %vm3176 = vweird.f32 %v3169
    %vm3177 = vmor %vm3175, %vm3176
    %v3178 = vsel %vm3177, %v3169, %v3174
    %v3179 = vrsqrt.pop %v3109
    %v3180 = vmul.f32 %v3179, %v3109
    %v3181 = vmul.f32 %v3180, %v3179
    %v3182 = vmul.f32 0.5, %v3181
    %v3183 = vsub.f32 1.5, %v3182
    %v3184 = vmul.f32 %v3179, %v3183
    %vm3185 = vweird.f32 %v3109
    %vm3186 = vweird.f32 %v3179
    %vm3187 = vmor %vm3185, %vm3186
    %v3188 = vsel %vm3187, %v3179, %v3184
    %v3189 = vrsqrt.pop %v3110
    %v3190 = vmul.f32 %v3189, %v3110
    %v3191 = vmul.f32 %v3190, %v3189
    %v3192 = vmul.f32 0.5, %v3191
    %v3193 = vsub.f32 1.5, %v3192
    %v3194 = vmul.f32 %v3189, %v3193
    %vm3195 = vweird.f32 %v3110
    %vm3196 = vweird.f32 %v3189
    %vm3197 = vmor %vm3195, %vm3196
    %v3198 = vsel %vm3197, %v3189, %v3194
    %v3199 = vrsqrt.pop %v3111
    %v3200 = vmul.f32 %v3199, %v3111
    %v3201 = vmul.f32 %v3200, %v3199
    %v3202 = vmul.f32 0.5, %v3201
    %v3203 = vsub.f32 1.5, %v3202
    %v3204 = vmul.f32 %v3199, %v3203
    %vm3205 = vweird.f32 %v3111
    %vm3206 = vweird.f32 %v3199
    %vm3207 = vmor %vm3205, %vm3206
    %v3208 = vsel %vm3207, %v3199, %v3204
    %v3209 = vrsqrt.pop %v3112
    %v3210 = vmul.f32 %v3209, %v3112
    %v3211 = vmul.f32 %v3210, %v3209
    %v3212 = vmul.f32 0.5, %v3211
    %v3213 = vsub.f32 1.5, %v3212
    %v3214 = vmul.f32 %v3209, %v3213
    %vm3215 = vweird.f32 %v3112
    %vm3216 = vweird.f32 %v3209
    %vm3217 = vmor %vm3215, %vm3216
    %v3218 = vsel %vm3217, %v3209, %v3214
    %v3219 = vrsqrt.pop %v3113
    %v3220 = vmul.f32 %v3219, %v3113
    %v3221 = vmul.f32 %v3220, %v3219
    %v3222 = vmul.f32 0.5, %v3221
    %v3223 = vsub.f32 1.5, %v3222
    %v3224 = vmul.f32 %v3219, %v3223
    %vm3225 = vweird.f32 %v3113
    %vm3226 = vweird.f32 %v3219
    %vm3227 = vmor %vm3225, %vm3226
    %v3228 = vsel %vm3227, %v3219, %v3224
    %v3229 = vrsqrt.pop %v3114
    %v3230 = vmul.f32 %v3229, %v3114
    %v3231 = vmul.f32 %v3230, %v3229
    %v3232 = vmul.f32 0.5, %v3231
    %v3233 = vsub.f32 1.5, %v3232
    %v3234 = vmul.f32 %v3229, %v3233
    %vm3235 = vweird.f32 %v3114
    %vm3236 = vweird.f32 %v3229
    %vm3237 = vmor %vm3235, %vm3236
    %v3238 = vsel %vm3237, %v3229, %v3234
    %v3239 = vrsqrt.pop %v3115
    %v3240 = vmul.f32 %v3239, %v3115
    %v3241 = vmul.f32 %v3240, %v3239
    %v3242 = vmul.f32 0.5, %v3241
    %v3243 = vsub.f32 1.5, %v3242
    %v3244 = vmul.f32 %v3239, %v3243
    %vm3245 = vweird.f32 %v3115
    %vm3246 = vweird.f32 %v3239
    %vm3247 = vmor %vm3245, %vm3246
    %v3248 = vsel %vm3247, %v3239, %v3244
    %v3249 = vrsqrt.pop %v3116
    %v3250 = vmul.f32 %v3249, %v3116
    %v3251 = vmul.f32 %v3250, %v3249
    %v3252 = vmul.f32 0.5, %v3251
    %v3253 = vsub.f32 1.5, %v3252
    %v3254 = vmul.f32 %v3249, %v3253
    %vm3255 = vweird.f32 %v3116
    %vm3256 = vweird.f32 %v3249
    %vm3257 = vmor %vm3255, %vm3256
    %v3258 = vsel %vm3257, %v3249, %v3254
    %v3259 = vrsqrt.pop %v3117
    %v3260 = vmul.f32 %v3259, %v3117
    %v3261 = vmul.f32 %v3260, %v3259
    %v3262 = vmul.f32 0.5, %v3261
    %v3263 = vsub.f32 1.5, %v3262
    %v3264 = vmul.f32 %v3259, %v3263
    %vm3265 = vweird.f32 %v3117
    %vm3266 = vweird.f32 %v3259
    %vm3267 = vmor %vm3265, %vm3266
    %v3268 = vsel %vm3267, %v3259, %v3264
    %v3269 = vrsqrt.pop %v3118
    %v3270 = vmul.f32 %v3269, %v3118
    %v3271 = vmul.f32 %v3270, %v3269
    %v3272 = vmul.f32 0.5, %v3271
    %v3273 = vsub.f32 1.5, %v3272
    %v3274 = vmul.f32 %v3269, %v3273
    %vm3275 = vweird.f32 %v3118
    %vm3276 = vweird.f32 %v3269
    %vm3277 = vmor %vm3275, %vm3276
    %v3278 = vsel %vm3277, %v3269, %v3274
    %v3279 = vmul.f32 %v3007, %v3128
    %v3280 = vmul.f32 %v3008, %v3138
    %v3281 = vmul.f32 %v3009, %v3148
    %v3282 = vmul.f32 %v3010, %v3158
    %v3283 = vmul.f32 %v3011, %v3168
    %v3284 = vmul.f32 %v3012, %v3178
    %v3285 = vmul.f32 %v3013, %v3188
    %v3286 = vmul.f32 %v3014, %v3198
    %v3287 = vmul.f32 %v3015, %v3208
    %v3288 = vmul.f32 %v3016, %v3218
    %v3289 = vmul.f32 %v3017, %v3228
    %v3290 = vmul.f32 %v3018, %v3238
    %v3291 = vmul.f32 %v3019, %v3248
    %v3292 = vmul.f32 %v3020, %v3258
    %v3293 = vmul.f32 %v3021, %v3268
    %v3294 = vmul.f32 %v3022, %v3278
    %v3296 = vperm.slane %v2940, 0
    %v3298 = vmul.f32 %v3279, %v3296
    %v3299 = vmul.f32 %v3280, %v3296
    %v3300 = vmul.f32 %v3281, %v3296
    %v3301 = vmul.f32 %v3282, %v3296
    %v3302 = vmul.f32 %v3283, %v3296
    %v3303 = vmul.f32 %v3284, %v3296
    %v3304 = vmul.f32 %v3285, %v3296
    %v3305 = vmul.f32 %v3286, %v3296
    %v3306 = vmul.f32 %v3287, %v3296
    %v3307 = vmul.f32 %v3288, %v3296
    %v3308 = vmul.f32 %v3289, %v3296
    %v3309 = vmul.f32 %v3290, %v3296
    %v3310 = vmul.f32 %v3291, %v3296
    %v3311 = vmul.f32 %v3292, %v3296
    %v3312 = vmul.f32 %v3293, %v3296
    %v3313 = vmul.f32 %v3294, %v3296
    %v3315 = vperm.slane %v2942, 0
    %v3317 = vadd.f32 %v3298, %v3315
    %v3318 = vadd.f32 %v3299, %v3315
    %v3319 = vadd.f32 %v3300, %v3315
    %v3320 = vadd.f32 %v3301, %v3315
    %v3321 = vadd.f32 %v3302, %v3315
    %v3322 = vadd.f32 %v3303, %v3315
    %v3323 = vadd.f32 %v3304, %v3315
    %v3324 = vadd.f32 %v3305, %v3315
    %v3325 = vadd.f32 %v3306, %v3315
    %v3326 = vadd.f32 %v3307, %v3315
    %v3327 = vadd.f32 %v3308, %v3315
    %v3328 = vadd.f32 %v3309, %v3315
    %v3329 = vadd.f32 %v3310, %v3315
    %v3330 = vadd.f32 %v3311, %v3315
    %v3331 = vadd.f32 %v3312, %v3315
    %v3332 = vadd.f32 %v3313, %v3315
    %v3333 = vpack.c.bf16 %v3318, %v3317
    %v3334 = vpack.c.bf16 %v3320, %v3319
    %v3335 = vpack.c.bf16 %v3322, %v3321
    %v3336 = vpack.c.bf16 %v3324, %v3323
    %v3337 = vpack.c.bf16 %v3326, %v3325
    %v3338 = vpack.c.bf16 %v3328, %v3327
    %v3339 = vpack.c.bf16 %v3330, %v3329
    %v3340 = vpack.c.bf16 %v3332, %v3331
    %s3341 = scalar_lea.vmem [#allocation13], 64
    %v3342 = vld [vmem:[%s3341] sm:$0xff]
    %v3343 = vld [vmem:[%s3341 + $0x8] sm:$0xff]
    %v3344 = vld [vmem:[%s3341 + $0x10] sm:$0xff]
    %v3345 = vld [vmem:[%s3341 + $0x18] sm:$0xff]
    %v3346 = vld [vmem:[%s3341 + $0x20] sm:$0xff]
    %v3347 = vld [vmem:[%s3341 + $0x28] sm:$0xff]
    %v3348 = vld [vmem:[%s3341 + $0x30] sm:$0xff]
    %v3349 = vld [vmem:[%s3341 + $0x38] sm:$0xff]
    %s3350 = scalar_lea.vmem %s10, 2
    %v3351 = vld [vmem:[%s3350] sm:$0x3]
    %v3353 = vperm.slane %v3351, 0
    %v3354 = vperm.slane %v3351, 1
    %v3365 = vunpack.c.l.b16 %v3342
    %v3366 = vunpack.c.h.b16 %v3342
    %v3367 = vunpack.c.l.b16 %v3343
    %v3368 = vunpack.c.h.b16 %v3343
    %v3369 = vunpack.c.l.b16 %v3344
    %v3370 = vunpack.c.h.b16 %v3344
    %v3371 = vunpack.c.l.b16 %v3345
    %v3372 = vunpack.c.h.b16 %v3345
    %v3373 = vunpack.c.l.b16 %v3346
    %v3374 = vunpack.c.h.b16 %v3346
    %v3375 = vunpack.c.l.b16 %v3347
    %v3376 = vunpack.c.h.b16 %v3347
    %v3377 = vunpack.c.l.b16 %v3348
    %v3378 = vunpack.c.h.b16 %v3348
    %v3379 = vunpack.c.l.b16 %v3349
    %v3380 = vunpack.c.h.b16 %v3349
    %v3381 = vpack.c.b16 %v3367, %v3365
    %v3382 = vpack.c.b16 %v3368, %v3366
    %v3383 = vpack.c.b16 %v3371, %v3369
    %v3384 = vpack.c.b16 %v3372, %v3370
    %v3385 = vpack.c.b16 %v3375, %v3373
    %v3386 = vpack.c.b16 %v3376, %v3374
    %v3387 = vpack.c.b16 %v3379, %v3377
    %v3388 = vpack.c.b16 %v3380, %v3378
    %v3398 = vsel %vm289, %v3333, 0
    %v3401 = vsel %vm289, %v3334, 0
    %v3404 = vsel %vm289, %v3335, 0
    %v3407 = vsel %vm289, %v3336, 0
    %v3410 = vsel %vm289, %v3337, 0
    %v3413 = vsel %vm289, %v3338, 0
    %v3416 = vsel %vm289, %v3339, 0
    %v3419 = vsel %vm289, %v3340, 0
    %3421 = vmatpush.bf16.msra.mxu0 0
    %3422 = vmatpush.bf16.msra.mxu0 0
    %3423 = vmatpush.bf16.msra.mxu0 0
    %3424 = vmatpush.bf16.msra.mxu0 0
    %3425 = vmatpush.bf16.msra.mxu0 %v3387
    %3426 = vmatpush.bf16.msra.mxu0 %v3385
    %3427 = vmatpush.bf16.msra.mxu0 %v3383
    %3428 = vmatpush.bf16.msra.mxu0 %v3381
    %3429 = vmatmul.bf16.gmra.mxu0 %v3398
    %v3430 = vpop.f32.mrf.mxu0
    %v3431 = vadd.f32 %v3353, %v3430
    %v3432 = vpop.f32.mrf.mxu0
    %v3433 = vadd.f32 %v3353, %v3432
    %3434 = vmatmul.bf16.gmra.mxu0 %v3401
    %v3435 = vpop.f32.mrf.mxu0
    %v3436 = vadd.f32 %v3353, %v3435
    %v3437 = vpop.f32.mrf.mxu0
    %v3438 = vadd.f32 %v3353, %v3437
    %3439 = vmatmul.bf16.gmra.mxu0 %v3404
    %v3440 = vpop.f32.mrf.mxu0
    %v3441 = vadd.f32 %v3353, %v3440
    %v3442 = vpop.f32.mrf.mxu0
    %v3443 = vadd.f32 %v3353, %v3442
    %3444 = vmatmul.bf16.gmra.mxu0 %v3407
    %v3445 = vpop.f32.mrf.mxu0
    %v3446 = vadd.f32 %v3353, %v3445
    %v3447 = vpop.f32.mrf.mxu0
    %v3448 = vadd.f32 %v3353, %v3447
    %3449 = vmatmul.bf16.gmra.mxu0 %v3410
    %v3450 = vpop.f32.mrf.mxu0
    %v3451 = vadd.f32 %v3353, %v3450
    %v3452 = vpop.f32.mrf.mxu0
    %v3453 = vadd.f32 %v3353, %v3452
    %3454 = vmatmul.bf16.gmra.mxu0 %v3413
    %v3455 = vpop.f32.mrf.mxu0
    %v3456 = vadd.f32 %v3353, %v3455
    %v3457 = vpop.f32.mrf.mxu0
    %v3458 = vadd.f32 %v3353, %v3457
    %3459 = vmatmul.bf16.gmra.mxu0 %v3416
    %v3460 = vpop.f32.mrf.mxu0
    %v3461 = vadd.f32 %v3353, %v3460
    %v3462 = vpop.f32.mrf.mxu0
    %v3463 = vadd.f32 %v3353, %v3462
    %3464 = vmatmul.bf16.gmra.mxu0 %v3419
    %v3465 = vpop.f32.mrf.mxu0
    %v3466 = vadd.f32 %v3353, %v3465
    %v3467 = vpop.f32.mrf.mxu0
    %v3468 = vadd.f32 %v3353, %v3467
    %3469 = vdwg.mxu0
    %3470 = vmatpush.bf16.msra.mxu0 0
    %3471 = vmatpush.bf16.msra.mxu0 0
    %3472 = vmatpush.bf16.msra.mxu0 0
    %3473 = vmatpush.bf16.msra.mxu0 0
    %3474 = vmatpush.bf16.msra.mxu0 %v3388
    %3475 = vmatpush.bf16.msra.mxu0 %v3386
    %3476 = vmatpush.bf16.msra.mxu0 %v3384
    %3477 = vmatpush.bf16.msra.mxu0 %v3382
    %3478 = vmatmul.bf16.gmra.mxu0 %v3398
    %v3479 = vpop.f32.mrf.mxu0
    %v3480 = vadd.f32 %v3354, %v3479
    %v3481 = vpop.f32.mrf.mxu0
    %v3482 = vadd.f32 %v3354, %v3481
    %3483 = vmatmul.bf16.gmra.mxu0 %v3401
    %v3484 = vpop.f32.mrf.mxu0
    %v3485 = vadd.f32 %v3354, %v3484
    %v3486 = vpop.f32.mrf.mxu0
    %v3487 = vadd.f32 %v3354, %v3486
    %3488 = vmatmul.bf16.gmra.mxu0 %v3404
    %v3489 = vpop.f32.mrf.mxu0
    %v3490 = vadd.f32 %v3354, %v3489
    %v3491 = vpop.f32.mrf.mxu0
    %v3492 = vadd.f32 %v3354, %v3491
    %3493 = vmatmul.bf16.gmra.mxu0 %v3407
    %v3494 = vpop.f32.mrf.mxu0
    %v3495 = vadd.f32 %v3354, %v3494
    %v3496 = vpop.f32.mrf.mxu0
    %v3497 = vadd.f32 %v3354, %v3496
    %3498 = vmatmul.bf16.gmra.mxu0 %v3410
    %v3499 = vpop.f32.mrf.mxu0
    %v3500 = vadd.f32 %v3354, %v3499
    %v3501 = vpop.f32.mrf.mxu0
    %v3502 = vadd.f32 %v3354, %v3501
    %3503 = vmatmul.bf16.gmra.mxu0 %v3413
    %v3504 = vpop.f32.mrf.mxu0
    %v3505 = vadd.f32 %v3354, %v3504
    %v3506 = vpop.f32.mrf.mxu0
    %v3507 = vadd.f32 %v3354, %v3506
    %3508 = vmatmul.bf16.gmra.mxu0 %v3416
    %v3509 = vpop.f32.mrf.mxu0
    %v3510 = vadd.f32 %v3354, %v3509
    %v3511 = vpop.f32.mrf.mxu0
    %v3512 = vadd.f32 %v3354, %v3511
    %3513 = vmatmul.bf16.gmra.mxu0 %v3419
    %v3514 = vpop.f32.mrf.mxu0
    %v3515 = vadd.f32 %v3354, %v3514
    %v3516 = vpop.f32.mrf.mxu0
    %v3517 = vadd.f32 %v3354, %v3516
    %3518 = vdwg.mxu0
    %v3519 = vmax.f32 %v3431, 0.0
    %v3520 = vmax.f32 %v3480, 0.0
    %v3521 = vmax.f32 %v3433, 0.0
    %v3522 = vmax.f32 %v3482, 0.0
    %v3523 = vmax.f32 %v3436, 0.0
    %v3524 = vmax.f32 %v3485, 0.0
    %v3525 = vmax.f32 %v3438, 0.0
    %v3526 = vmax.f32 %v3487, 0.0
    %v3527 = vmax.f32 %v3441, 0.0
    %v3528 = vmax.f32 %v3490, 0.0
    %v3529 = vmax.f32 %v3443, 0.0
    %v3530 = vmax.f32 %v3492, 0.0
    %v3531 = vmax.f32 %v3446, 0.0
    %v3532 = vmax.f32 %v3495, 0.0
    %v3533 = vmax.f32 %v3448, 0.0
    %v3534 = vmax.f32 %v3497, 0.0
    %v3535 = vmax.f32 %v3451, 0.0
    %v3536 = vmax.f32 %v3500, 0.0
    %v3537 = vmax.f32 %v3453, 0.0
    %v3538 = vmax.f32 %v3502, 0.0
    %v3539 = vmax.f32 %v3456, 0.0
    %v3540 = vmax.f32 %v3505, 0.0
    %v3541 = vmax.f32 %v3458, 0.0
    %v3542 = vmax.f32 %v3507, 0.0
    %v3543 = vmax.f32 %v3461, 0.0
    %v3544 = vmax.f32 %v3510, 0.0
    %v3545 = vmax.f32 %v3463, 0.0
    %v3546 = vmax.f32 %v3512, 0.0
    %v3547 = vmax.f32 %v3466, 0.0
    %v3548 = vmax.f32 %v3515, 0.0
    %v3549 = vmax.f32 %v3468, 0.0
    %v3550 = vmax.f32 %v3517, 0.0
    %v3551 = vpack.c.bf16 %v3521, %v3519
    %v3552 = vpack.c.bf16 %v3522, %v3520
    %v3553 = vpack.c.bf16 %v3525, %v3523
    %v3554 = vpack.c.bf16 %v3526, %v3524
    %v3555 = vpack.c.bf16 %v3529, %v3527
    %v3556 = vpack.c.bf16 %v3530, %v3528
    %v3557 = vpack.c.bf16 %v3533, %v3531
    %v3558 = vpack.c.bf16 %v3534, %v3532
    %v3559 = vpack.c.bf16 %v3537, %v3535
    %v3560 = vpack.c.bf16 %v3538, %v3536
    %v3561 = vpack.c.bf16 %v3541, %v3539
    %v3562 = vpack.c.bf16 %v3542, %v3540
    %v3563 = vpack.c.bf16 %v3545, %v3543
    %v3564 = vpack.c.bf16 %v3546, %v3544
    %v3565 = vpack.c.bf16 %v3549, %v3547
    %v3566 = vpack.c.bf16 %v3550, %v3548
    %s3567 = scalar_lea.vmem %s11, 128
    %v3568 = vld [vmem:[%s3567] sm:$0xf]
    %v3569 = vld [vmem:[%s3567 + $0x4] sm:$0xf]
    %v3570 = vld [vmem:[%s3567 + $0x8] sm:$0xf]
    %v3571 = vld [vmem:[%s3567 + $0xc] sm:$0xf]
    %v3572 = vld [vmem:[%s3567 + $0x10] sm:$0xf]
    %v3573 = vld [vmem:[%s3567 + $0x14] sm:$0xf]
    %v3574 = vld [vmem:[%s3567 + $0x18] sm:$0xf]
    %v3575 = vld [vmem:[%s3567 + $0x1c] sm:$0xf]
    %v3576 = vld [vmem:[%s3567 + $0x20] sm:$0xf]
    %v3577 = vld [vmem:[%s3567 + $0x24] sm:$0xf]
    %v3578 = vld [vmem:[%s3567 + $0x28] sm:$0xf]
    %v3579 = vld [vmem:[%s3567 + $0x2c] sm:$0xf]
    %v3580 = vld [vmem:[%s3567 + $0x30] sm:$0xf]
    %v3581 = vld [vmem:[%s3567 + $0x34] sm:$0xf]
    %v3582 = vld [vmem:[%s3567 + $0x38] sm:$0xf]
    %v3583 = vld [vmem:[%s3567 + $0x3c] sm:$0xf]
    %v3584 = vld [vmem:[%s3567 + $0x40] sm:$0xf]
    %v3585 = vld [vmem:[%s3567 + $0x44] sm:$0xf]
    %v3586 = vld [vmem:[%s3567 + $0x48] sm:$0xf]
    %v3587 = vld [vmem:[%s3567 + $0x4c] sm:$0xf]
    %v3588 = vld [vmem:[%s3567 + $0x50] sm:$0xf]
    %v3589 = vld [vmem:[%s3567 + $0x54] sm:$0xf]
    %v3590 = vld [vmem:[%s3567 + $0x58] sm:$0xf]
    %v3591 = vld [vmem:[%s3567 + $0x5c] sm:$0xf]
    %v3592 = vld [vmem:[%s3567 + $0x60] sm:$0xf]
    %v3593 = vld [vmem:[%s3567 + $0x64] sm:$0xf]
    %v3594 = vld [vmem:[%s3567 + $0x68] sm:$0xf]
    %v3595 = vld [vmem:[%s3567 + $0x6c] sm:$0xf]
    %v3596 = vld [vmem:[%s3567 + $0x70] sm:$0xf]
    %v3597 = vld [vmem:[%s3567 + $0x74] sm:$0xf]
    %v3598 = vld [vmem:[%s3567 + $0x78] sm:$0xf]
    %v3599 = vld [vmem:[%s3567 + $0x7c] sm:$0xf]
    %s3600 = scalar_lea.vmem %s12, 1
    %v3601 = vld [vmem:[%s3600] sm:$0x1]
    %v3603 = vperm.slane %v3601, 0
    %v3637 = vunpack.c.l.b16 %v3568
    %v3638 = vunpack.c.l.b16 %v3569
    %v3639 = vunpack.c.l.b16 %v3570
    %v3640 = vunpack.c.l.b16 %v3571
    %v3641 = vunpack.c.l.b16 %v3572
    %v3642 = vunpack.c.l.b16 %v3573
    %v3643 = vunpack.c.l.b16 %v3574
    %v3644 = vunpack.c.l.b16 %v3575
    %v3645 = vunpack.c.l.b16 %v3576
    %v3646 = vunpack.c.l.b16 %v3577
    %v3647 = vunpack.c.l.b16 %v3578
    %v3648 = vunpack.c.l.b16 %v3579
    %v3649 = vunpack.c.l.b16 %v3580
    %v3650 = vunpack.c.l.b16 %v3581
    %v3651 = vunpack.c.l.b16 %v3582
    %v3652 = vunpack.c.l.b16 %v3583
    %v3653 = vunpack.c.l.b16 %v3584
    %v3654 = vunpack.c.l.b16 %v3585
    %v3655 = vunpack.c.l.b16 %v3586
    %v3656 = vunpack.c.l.b16 %v3587
    %v3657 = vunpack.c.l.b16 %v3588
    %v3658 = vunpack.c.l.b16 %v3589
    %v3659 = vunpack.c.l.b16 %v3590
    %v3660 = vunpack.c.l.b16 %v3591
    %v3661 = vunpack.c.l.b16 %v3592
    %v3662 = vunpack.c.l.b16 %v3593
    %v3663 = vunpack.c.l.b16 %v3594
    %v3664 = vunpack.c.l.b16 %v3595
    %v3665 = vunpack.c.l.b16 %v3596
    %v3666 = vunpack.c.l.b16 %v3597
    %v3667 = vunpack.c.l.b16 %v3598
    %v3668 = vunpack.c.l.b16 %v3599
    %v3669 = vpack.c.b16 %v3638, %v3637
    %v3670 = vpack.c.b16 %v3640, %v3639
    %v3671 = vpack.c.b16 %v3642, %v3641
    %v3672 = vpack.c.b16 %v3644, %v3643
    %v3673 = vpack.c.b16 %v3646, %v3645
    %v3674 = vpack.c.b16 %v3648, %v3647
    %v3675 = vpack.c.b16 %v3650, %v3649
    %v3676 = vpack.c.b16 %v3652, %v3651
    %v3677 = vpack.c.b16 %v3654, %v3653
    %v3678 = vpack.c.b16 %v3656, %v3655
    %v3679 = vpack.c.b16 %v3658, %v3657
    %v3680 = vpack.c.b16 %v3660, %v3659
    %v3681 = vpack.c.b16 %v3662, %v3661
    %v3682 = vpack.c.b16 %v3664, %v3663
    %v3683 = vpack.c.b16 %v3666, %v3665
    %v3684 = vpack.c.b16 %v3668, %v3667
    %3701 = vmatpush.bf16.msra.mxu0 %v3676
    %3702 = vmatpush.bf16.msra.mxu0 %v3675
    %3703 = vmatpush.bf16.msra.mxu0 %v3674
    %3704 = vmatpush.bf16.msra.mxu0 %v3673
    %3705 = vmatpush.bf16.msra.mxu0 %v3672
    %3706 = vmatpush.bf16.msra.mxu0 %v3671
    %3707 = vmatpush.bf16.msra.mxu0 %v3670
    %3708 = vmatpush.bf16.msra.mxu0 %v3669
    %3709 = vmatmul.bf16.gmra.mxu0 %v3551
    %v3710 = vpop.f32.mrf.mxu0
    %v3711 = vadd.f32 %v3603, %v3710
    %v3712 = vpop.f32.mrf.mxu0
    %3713 = vmatmul.bf16.gmra.mxu0 %v3553
    %v3714 = vpop.f32.mrf.mxu0
    %v3715 = vadd.f32 %v3603, %v3714
    %v3716 = vpop.f32.mrf.mxu0
    %3717 = vmatmul.bf16.gmra.mxu0 %v3555
    %v3718 = vpop.f32.mrf.mxu0
    %v3719 = vadd.f32 %v3603, %v3718
    %v3720 = vpop.f32.mrf.mxu0
    %3721 = vmatmul.bf16.gmra.mxu0 %v3557
    %v3722 = vpop.f32.mrf.mxu0
    %v3723 = vadd.f32 %v3603, %v3722
    %v3724 = vpop.f32.mrf.mxu0
    %3725 = vmatmul.bf16.gmra.mxu0 %v3559
    %v3726 = vpop.f32.mrf.mxu0
    %v3727 = vadd.f32 %v3603, %v3726
    %v3728 = vpop.f32.mrf.mxu0
    %3729 = vmatmul.bf16.gmra.mxu0 %v3561
    %v3730 = vpop.f32.mrf.mxu0
    %v3731 = vadd.f32 %v3603, %v3730
    %v3732 = vpop.f32.mrf.mxu0
    %3733 = vmatmul.bf16.gmra.mxu0 %v3563
    %v3734 = vpop.f32.mrf.mxu0
    %v3735 = vadd.f32 %v3603, %v3734
    %v3736 = vpop.f32.mrf.mxu0
    %3737 = vmatmul.bf16.gmra.mxu0 %v3565
    %v3738 = vpop.f32.mrf.mxu0
    %v3739 = vadd.f32 %v3603, %v3738
    %v3740 = vpop.f32.mrf.mxu0
    %3741 = vdwg.mxu0
    %3742 = vmatpush.bf16.msra.mxu0 %v3684
    %3743 = vmatpush.bf16.msra.mxu0 %v3683
    %3744 = vmatpush.bf16.msra.mxu0 %v3682
    %3745 = vmatpush.bf16.msra.mxu0 %v3681
    %3746 = vmatpush.bf16.msra.mxu0 %v3680
    %3747 = vmatpush.bf16.msra.mxu0 %v3679
    %3748 = vmatpush.bf16.msra.mxu0 %v3678
    %3749 = vmatpush.bf16.msra.mxu0 %v3677
    %3750 = vmatmul.bf16.gmra.mxu0 %v3552
    %v3751 = vpop.f32.mrf.mxu0
    %v3752 = vadd.f32 %v3711, %v3751
    %v3753 = vpop.f32.mrf.mxu0
    %3754 = vmatmul.bf16.gmra.mxu0 %v3554
    %v3755 = vpop.f32.mrf.mxu0
    %v3756 = vadd.f32 %v3715, %v3755
    %v3757 = vpop.f32.mrf.mxu0
    %3758 = vmatmul.bf16.gmra.mxu0 %v3556
    %v3759 = vpop.f32.mrf.mxu0
    %v3760 = vadd.f32 %v3719, %v3759
    %v3761 = vpop.f32.mrf.mxu0
    %3762 = vmatmul.bf16.gmra.mxu0 %v3558
    %v3763 = vpop.f32.mrf.mxu0
    %v3764 = vadd.f32 %v3723, %v3763
    %v3765 = vpop.f32.mrf.mxu0
    %3766 = vmatmul.bf16.gmra.mxu0 %v3560
    %v3767 = vpop.f32.mrf.mxu0
    %v3768 = vadd.f32 %v3727, %v3767
    %v3769 = vpop.f32.mrf.mxu0
    %3770 = vmatmul.bf16.gmra.mxu0 %v3562
    %v3771 = vpop.f32.mrf.mxu0
    %v3772 = vadd.f32 %v3731, %v3771
    %v3773 = vpop.f32.mrf.mxu0
    %3774 = vmatmul.bf16.gmra.mxu0 %v3564
    %v3775 = vpop.f32.mrf.mxu0
    %v3776 = vadd.f32 %v3735, %v3775
    %v3777 = vpop.f32.mrf.mxu0
    %3778 = vmatmul.bf16.gmra.mxu0 %v3566
    %v3779 = vpop.f32.mrf.mxu0
    %v3780 = vadd.f32 %v3739, %v3779
    %v3781 = vpop.f32.mrf.mxu0
    %3782 = vdwg.mxu0
    %v3783 = vadd.f32 %v3317, %v3752
    %v3784 = vadd.f32 %v3319, %v3756
    %v3785 = vadd.f32 %v3321, %v3760
    %v3786 = vadd.f32 %v3323, %v3764
    %v3787 = vadd.f32 %v3325, %v3768
    %v3788 = vadd.f32 %v3327, %v3772
    %v3789 = vadd.f32 %v3329, %v3776
    %v3790 = vadd.f32 %v3331, %v3780
    %s3791 = scalar_lea.vmem %s13, 1
    %v3792 = vld [vmem:[%s3791] sm:$0x1]
    %s3793 = scalar_lea.vmem [#allocation14], 1
    %v3794 = vld [vmem:[%s3793] sm:$0x1]
    %v3795 = vsel %vm289, %v3783, 0.0
    %3796 = vadd.xlane.f32.xlu0 %v3795
    %v3797 = vpop.xlane.xlu0 %3796
    %v3798 = vsel %vm289, %v3784, 0.0
    %3799 = vadd.xlane.f32.xlu0 %v3798
    %v3800 = vpop.xlane.xlu0 %3799
    %v3801 = vsel %vm289, %v3785, 0.0
    %3802 = vadd.xlane.f32.xlu0 %v3801
    %v3803 = vpop.xlane.xlu0 %3802
    %v3804 = vsel %vm289, %v3786, 0.0
    %3805 = vadd.xlane.f32.xlu0 %v3804
    %v3806 = vpop.xlane.xlu0 %3805
    %v3807 = vsel %vm289, %v3787, 0.0
    %3808 = vadd.xlane.f32.xlu0 %v3807
    %v3809 = vpop.xlane.xlu0 %3808
    %v3810 = vsel %vm289, %v3788, 0.0
    %3811 = vadd.xlane.f32.xlu0 %v3810
    %v3812 = vpop.xlane.xlu0 %3811
    %v3813 = vsel %vm289, %v3789, 0.0
    %3814 = vadd.xlane.f32.xlu0 %v3813
    %v3815 = vpop.xlane.xlu0 %3814
    %v3816 = vsel %vm289, %v3790, 0.0
    %3817 = vadd.xlane.f32.xlu0 %v3816
    %v3818 = vpop.xlane.xlu0 %3817
    %v3819 = vmul.f32 %v3797, %v1003
    %v3820 = vmul.f32 %v3800, %v1003
    %v3821 = vmul.f32 %v3803, %v1003
    %v3822 = vmul.f32 %v3806, %v1003
    %v3823 = vmul.f32 %v3809, %v1003
    %v3824 = vmul.f32 %v3812, %v1003
    %v3825 = vmul.f32 %v3815, %v1003
    %v3826 = vmul.f32 %v3818, %v1003
    %v3827 = vsub.f32 %v3783, %v3819
    %v3828 = vsub.f32 %v3784, %v3820
    %v3829 = vsub.f32 %v3785, %v3821
    %v3830 = vsub.f32 %v3786, %v3822
    %v3831 = vsub.f32 %v3787, %v3823
    %v3832 = vsub.f32 %v3788, %v3824
    %v3833 = vsub.f32 %v3789, %v3825
    %v3834 = vsub.f32 %v3790, %v3826
    %v3835 = vmul.f32 %v3827, %v3827
    %v3836 = vmul.f32 %v3828, %v3828
    %v3837 = vmul.f32 %v3829, %v3829
    %v3838 = vmul.f32 %v3830, %v3830
    %v3839 = vmul.f32 %v3831, %v3831
    %v3840 = vmul.f32 %v3832, %v3832
    %v3841 = vmul.f32 %v3833, %v3833
    %v3842 = vmul.f32 %v3834, %v3834
    %v3843 = vsel %vm289, %v3835, 0.0
    %3844 = vadd.xlane.f32.xlu0 %v3843
    %v3845 = vpop.xlane.xlu0 %3844
    %v3846 = vsel %vm289, %v3836, 0.0
    %3847 = vadd.xlane.f32.xlu0 %v3846
    %v3848 = vpop.xlane.xlu0 %3847
    %v3849 = vsel %vm289, %v3837, 0.0
    %3850 = vadd.xlane.f32.xlu0 %v3849
    %v3851 = vpop.xlane.xlu0 %3850
    %v3852 = vsel %vm289, %v3838, 0.0
    %3853 = vadd.xlane.f32.xlu0 %v3852
    %v3854 = vpop.xlane.xlu0 %3853
    %v3855 = vsel %vm289, %v3839, 0.0
    %3856 = vadd.xlane.f32.xlu0 %v3855
    %v3857 = vpop.xlane.xlu0 %3856
    %v3858 = vsel %vm289, %v3840, 0.0
    %3859 = vadd.xlane.f32.xlu0 %v3858
    %v3860 = vpop.xlane.xlu0 %3859
    %v3861 = vsel %vm289, %v3841, 0.0
    %3862 = vadd.xlane.f32.xlu0 %v3861
    %v3863 = vpop.xlane.xlu0 %3862
    %v3864 = vsel %vm289, %v3842, 0.0
    %3865 = vadd.xlane.f32.xlu0 %v3864
    %v3866 = vpop.xlane.xlu0 %3865
    %v3867 = vmul.f32 %v3845, %v1003
    %v3868 = vmul.f32 %v3848, %v1003
    %v3869 = vmul.f32 %v3851, %v1003
    %v3870 = vmul.f32 %v3854, %v1003
    %v3871 = vmul.f32 %v3857, %v1003
    %v3872 = vmul.f32 %v3860, %v1003
    %v3873 = vmul.f32 %v3863, %v1003
    %v3874 = vmul.f32 %v3866, %v1003
    %v3875 = vadd.f32 %v3867, 1e-05
    %v3876 = vadd.f32 %v3868, 1e-05
    %v3877 = vadd.f32 %v3869, 1e-05
    %v3878 = vadd.f32 %v3870, 1e-05
    %v3879 = vadd.f32 %v3871, 1e-05
    %v3880 = vadd.f32 %v3872, 1e-05
    %v3881 = vadd.f32 %v3873, 1e-05
    %v3882 = vadd.f32 %v3874, 1e-05
    %v3883 = vrsqrt.pop %v3875
    %v3884 = vmul.f32 %v3883, %v3875
    %v3885 = vmul.f32 %v3884, %v3883
    %v3886 = vmul.f32 0.5, %v3885
    %v3887 = vsub.f32 1.5, %v3886
    %v3888 = vmul.f32 %v3883, %v3887
    %vm3889 = vweird.f32 %v3875
    %vm3890 = vweird.f32 %v3883
    %vm3891 = vmor %vm3889, %vm3890
    %v3892 = vsel %vm3891, %v3883, %v3888
    %v3893 = vrsqrt.pop %v3876
    %v3894 = vmul.f32 %v3893, %v3876
    %v3895 = vmul.f32 %v3894, %v3893
    %v3896 = vmul.f32 0.5, %v3895
    %v3897 = vsub.f32 1.5, %v3896
    %v3898 = vmul.f32 %v3893, %v3897
    %vm3899 = vweird.f32 %v3876
    %vm3900 = vweird.f32 %v3893
    %vm3901 = vmor %vm3899, %vm3900
    %v3902 = vsel %vm3901, %v3893, %v3898
    %v3903 = vrsqrt.pop %v3877
    %v3904 = vmul.f32 %v3903, %v3877
    %v3905 = vmul.f32 %v3904, %v3903
    %v3906 = vmul.f32 0.5, %v3905
    %v3907 = vsub.f32 1.5, %v3906
    %v3908 = vmul.f32 %v3903, %v3907
    %vm3909 = vweird.f32 %v3877
    %vm3910 = vweird.f32 %v3903
    %vm3911 = vmor %vm3909, %vm3910
    %v3912 = vsel %vm3911, %v3903, %v3908
    %v3913 = vrsqrt.pop %v3878
    %v3914 = vmul.f32 %v3913, %v3878
    %v3915 = vmul.f32 %v3914, %v3913
    %v3916 = vmul.f32 0.5, %v3915
    %v3917 = vsub.f32 1.5, %v3916
    %v3918 = vmul.f32 %v3913, %v3917
    %vm3919 = vweird.f32 %v3878
    %vm3920 = vweird.f32 %v3913
    %vm3921 = vmor %vm3919, %vm3920
    %v3922 = vsel %vm3921, %v3913, %v3918
    %v3923 = vrsqrt.pop %v3879
    %v3924 = vmul.f32 %v3923, %v3879
    %v3925 = vmul.f32 %v3924, %v3923
    %v3926 = vmul.f32 0.5, %v3925
    %v3927 = vsub.f32 1.5, %v3926
    %v3928 = vmul.f32 %v3923, %v3927
    %vm3929 = vweird.f32 %v3879
    %vm3930 = vweird.f32 %v3923
    %vm3931 = vmor %vm3929, %vm3930
    %v3932 = vsel %vm3931, %v3923, %v3928
    %v3933 = vrsqrt.pop %v3880
    %v3934 = vmul.f32 %v3933, %v3880
    %v3935 = vmul.f32 %v3934, %v3933
    %v3936 = vmul.f32 0.5, %v3935
    %v3937 = vsub.f32 1.5, %v3936
    %v3938 = vmul.f32 %v3933, %v3937
    %vm3939 = vweird.f32 %v3880
    %vm3940 = vweird.f32 %v3933
    %vm3941 = vmor %vm3939, %vm3940
    %v3942 = vsel %vm3941, %v3933, %v3938
    %v3943 = vrsqrt.pop %v3881
    %v3944 = vmul.f32 %v3943, %v3881
    %v3945 = vmul.f32 %v3944, %v3943
    %v3946 = vmul.f32 0.5, %v3945
    %v3947 = vsub.f32 1.5, %v3946
    %v3948 = vmul.f32 %v3943, %v3947
    %vm3949 = vweird.f32 %v3881
    %vm3950 = vweird.f32 %v3943
    %vm3951 = vmor %vm3949, %vm3950
    %v3952 = vsel %vm3951, %v3943, %v3948
    %v3953 = vrsqrt.pop %v3882
    %v3954 = vmul.f32 %v3953, %v3882
    %v3955 = vmul.f32 %v3954, %v3953
    %v3956 = vmul.f32 0.5, %v3955
    %v3957 = vsub.f32 1.5, %v3956
    %v3958 = vmul.f32 %v3953, %v3957
    %vm3959 = vweird.f32 %v3882
    %vm3960 = vweird.f32 %v3953
    %vm3961 = vmor %vm3959, %vm3960
    %v3962 = vsel %vm3961, %v3953, %v3958
    %v3963 = vmul.f32 %v3827, %v3892
    %v3964 = vmul.f32 %v3828, %v3902
    %v3965 = vmul.f32 %v3829, %v3912
    %v3966 = vmul.f32 %v3830, %v3922
    %v3967 = vmul.f32 %v3831, %v3932
    %v3968 = vmul.f32 %v3832, %v3942
    %v3969 = vmul.f32 %v3833, %v3952
    %v3970 = vmul.f32 %v3834, %v3962
    %v3972 = vperm.slane %v3792, 0
    %v3974 = vmul.f32 %v3963, %v3972
    %v3975 = vmul.f32 %v3964, %v3972
    %v3976 = vmul.f32 %v3965, %v3972
    %v3977 = vmul.f32 %v3966, %v3972
    %v3978 = vmul.f32 %v3967, %v3972
    %v3979 = vmul.f32 %v3968, %v3972
    %v3980 = vmul.f32 %v3969, %v3972
    %v3981 = vmul.f32 %v3970, %v3972
    %v3983 = vperm.slane %v3794, 0
    %v3985 = vadd.f32 %v3974, %v3983
    %v3986 = vadd.f32 %v3975, %v3983
    %v3987 = vadd.f32 %v3976, %v3983
    %v3988 = vadd.f32 %v3977, %v3983
    %v3989 = vadd.f32 %v3978, %v3983
    %v3990 = vadd.f32 %v3979, %v3983
    %v3991 = vadd.f32 %v3980, %v3983
    %v3992 = vadd.f32 %v3981, %v3983
    %vm3993 = vcmask 516096
    %3994 = vst.msk [vmem:[#allocation16] sm:$0x1] %vm3993, %v3985
    %3995 = vst.msk [vmem:[#allocation16 + $0x1] sm:$0x1] %vm3993, %v3986
    %3996 = vst.msk [vmem:[#allocation16 + $0x2] sm:$0x1] %vm3993, %v3987
    %3997 = vst.msk [vmem:[#allocation16 + $0x3] sm:$0x1] %vm3993, %v3988
    %3998 = vst.msk [vmem:[#allocation16 + $0x4] sm:$0x1] %vm3993, %v3989
    %3999 = vst.msk [vmem:[#allocation16 + $0x5] sm:$0x1] %vm3993, %v3990
    %4000 = vst.msk [vmem:[#allocation16 + $0x6] sm:$0x1] %vm3993, %v3991
    %4001 = vst.msk [vmem:[#allocation16 + $0x7] sm:$0x1] %vm3993, %v3992
    // Predicated region
    $region94: #{tpu_custom_call.1} parent=1 // pred_check
      _
    $region95: #{tpu_custom_call.1} parent=1 // pred_check_branch
      %4003 = sbr.rel (0) target = $region97
    $region96: #{tpu_custom_call.1} parent=1 // pred_region
      %4005 = vsyncadd [#allocation4], 0
      %s4006 = sshll.u32 [#allocation16], 4
      %s4007 = int_to_ptr.vmem [resolvable:$true] %s4006
      %s4008 = sshll.u32 %s15, 4
      %s4009 = int_to_ptr.hbm [resolvable:$true] %s4008
      %4014 = dma.vmem_to_hbm [thread:$0]  %s4007, 128, %s4009, [#allocation4], 16, 16, 1
    $region97: #{tpu_custom_call.1} parent=1 // pred_fallthru
      _
    // Predicated region
    $region98: #{tpu_custom_call.1} parent=1 // pred_check
      _
    $region99: #{tpu_custom_call.1} parent=1 // pred_check_branch
      %4016 = sbr.rel (0) target = $region101
    $region100: #{tpu_custom_call.1} parent=1 // pred_region
      %4018 = dma.done [#allocation4], 128
    $region101: #{tpu_custom_call.1} parent=1 // pred_fallthru
      _
    %4019 = vsyncpa [#allocation3], 1
    %4020 = vsyncpa [#allocation6], 1
    %4021 = vsyncpa [#allocation9], 1
    %4022 = vsyncpa [#allocation12], 1
    %4023 = vsyncpa [#allocation15], 1
    %4024 = vsyncpa [#allocation4], 1

</llo_original>
